<compile_context>
chip_gen: v7x
topology: tpu7x:2x2x1
jax: 0.10.0
libtpu: 0.0.40
codegen_flags: <defaults>
</compile_context>

<pallas_src>
import functools

import numpy as np
import jax
import jax.numpy as jnp
from jax.experimental import pallas as pl
from jax.experimental.pallas import tpu as pltpu

NDEPTHS = (48, 32, 8)                  # StageNet(ndepths=(48, 32, 8))
DEPTH_INTERVAL_RATIO = (4, 2, 1)


# --------------------------------------------------------------------------
# Fused kernel: per-view similarity + entropy + vis head + projected-cost
# accumulation + softmax-over-depth + depth regression + confidence + REM
# --------------------------------------------------------------------------
def _stage_fused_kernel(ref_ref, warp_ref, nc_ref, mask_ref,
                        w1_ref, b1_ref, w2_ref, b2_ref, w3_ref, b3_ref,
                        w4_ref, b4_ref, wcr_ref, bcr_ref, wrem_ref, brem_ref,
                        dvals_ref, *rest, H, W, num_ch, has_init):
    if has_init:
        (init_ref, prob_ref, depth_ref, conf_ref, unc_ref,
         cost_acc, vis_acc) = rest
    else:
        (prob_ref, depth_ref, conf_ref, unc_ref, cost_acc, vis_acc) = rest
        init_ref = None

    v = pl.program_id(1)
    HW = H * W

    # --- similarity volume + channel-projected cost, channel by channel -----
    # (avoids materializing the (C, D, HW) in-product temporary)
    ref = ref_ref[0, 0].astype(jnp.float32)                 # (C, HW)
    refw = ref * wcr_ref[...]                               # cost_reg weights (C,1)
    wch = warp_ref[0, 0, 0].astype(jnp.float32)             # (D, HW)
    sim = wch * ref[0:1, :]
    proj = wch * refw[0:1, :]
    for c in range(1, num_ch):
        wch = warp_ref[0, 0, c].astype(jnp.float32)
        sim = sim + wch * ref[c:c + 1, :]
        proj = proj + wch * refw[c:c + 1, :]

    # --- softmax-over-depth entropy (logZ form, NaN-safe) -------------------
    m = jnp.max(sim, axis=0, keepdims=True)
    z = sim - m
    e = jnp.exp(z)
    s = jnp.sum(e, axis=0, keepdims=True)
    p = e / s
    entropy = jnp.log(s) - jnp.sum(p * z, axis=0, keepdims=True)      # (1, HW)

    # --- vis head: 3x (3x3 conv + folded BN + ReLU) + 1x1 conv + sigmoid ----
    # Per-tap MXU matmuls (bf16 x bf16 -> f32); boundary masks precomputed.
    def conv3x3_relu(x, w_taps_ref, b_ref_):
        acc = None
        t = 0
        for dy in (-1, 0, 1):
            for dx in (-1, 0, 1):
                if dy == 0 and dx == 0:
                    tap = x
                else:
                    shift = (-(dy * W + dx)) % HW
                    tap = pltpu.roll(x, shift=shift, axis=1) * mask_ref[t:t + 1, :]
                y = jnp.dot(w_taps_ref[t], tap.astype(jnp.bfloat16),
                            preferred_element_type=jnp.float32)
                acc = y if acc is None else acc + y
                t += 1
        return jnp.maximum(acc + b_ref_[...], 0.0)

    nc = nc_ref[0, 0].astype(jnp.float32)                             # (1, HW)
    h = conv3x3_relu(jnp.concatenate([entropy, nc], axis=0), w1_ref, b1_ref)
    h = conv3x3_relu(h, w2_ref, b2_ref)
    h = conv3x3_relu(h, w3_ref, b3_ref)
    vis = jax.nn.sigmoid(
        jnp.dot(w4_ref[...], h.astype(jnp.bfloat16),
                preferred_element_type=jnp.float32) + b4_ref[0])      # (1, HW)

    # --- vis-weighted accumulation over views (VMEM-resident scratch) -------
    contrib = proj * vis                                              # (D, HW)

    @pl.when(v == 0)
    def _first_view():           # first-view overwrite: no zero-init + RMW
        cost_acc[...] = contrib
        vis_acc[...] = vis

    @pl.when(v > 0)
    def _other_views():
        cost_acc[...] = cost_acc[...] + contrib
        vis_acc[...] = vis_acc[...] + vis

    # --- fused DepthNet('unification') + photometric confidence + REM -------
    @pl.when(v == pl.num_programs(1) - 1)
    def _finalize():
        cost = cost_acc[...] / (vis_acc[...] + 1e-6) + bcr_ref[0]     # (D, HW)
        if init_ref is not None:
            cost = cost + init_ref[0]
        mm = jnp.max(cost, axis=0, keepdims=True)
        ee = jnp.exp(cost - mm)
        ss = jnp.sum(ee, axis=0, keepdims=True)
        pp = ee / ss                                                  # (D, HW)
        prob_ref[0] = pp
        conf_ref[0] = jnp.max(pp, axis=0, keepdims=True)
        # TODO(synk): unity_regression approximated by expectation regression.
        depth_ref[0] = jnp.sum(pp * dvals_ref[0], axis=0, keepdims=True)
        unc_ref[0] = jax.nn.sigmoid(
            jnp.sum(pp * wrem_ref[...], axis=0, keepdims=True) + brem_ref[0])


def stage_fused(ref_stack, warped_stack, nc_stack, masks, vis_p, cr_p, rem_p,
                depth_values, H, W, prob_volume_init=None):
    """ref_stack: [V,B,C,HW] bf16; warped_stack: [V,B,C,D,HW] bf16;
    nc_stack: [V,B,1,HW] bf16; masks: [9,HW] f32; depth_values: [B,D] f32."""
    V, B, C, HW = ref_stack.shape
    D = warped_stack.shape[3]
    has_init = prob_volume_init is not None
    kern = functools.partial(_stage_fused_kernel, H=H, W=W, num_ch=C,
                             has_init=has_init)

    def whole(arr):
        nd = arr.ndim
        return pl.BlockSpec(arr.shape, lambda b, v, _nd=nd: (0,) * _nd)

    smem = pl.BlockSpec(memory_space=pltpu.MemorySpace.SMEM)

    in_specs = [
        pl.BlockSpec((1, 1, C, HW), lambda b, v: (v, b, 0, 0)),        # ref
        pl.BlockSpec((1, 1, C, D, HW), lambda b, v: (v, b, 0, 0, 0)),  # warped
        pl.BlockSpec((1, 1, 1, HW), lambda b, v: (v, b, 0, 0)),        # nc
        whole(masks),                                                  # conv masks
        whole(vis_p["w1"]), whole(vis_p["b1"]),
        whole(vis_p["w2"]), whole(vis_p["b2"]),
        whole(vis_p["w3"]), whole(vis_p["b3"]),
        whole(vis_p["w4"]), smem,                                      # w4, b4
        whole(cr_p["w"]), smem,                                        # cost_reg
        whole(rem_p["w"]), smem,                                       # REM
        pl.BlockSpec((1, D, 1), lambda b, v: (b, 0, 0)),               # depth vals
    ]
    args = [ref_stack, warped_stack, nc_stack, masks,
            vis_p["w1"], vis_p["b1"], vis_p["w2"], vis_p["b2"],
            vis_p["w3"], vis_p["b3"], vis_p["w4"], vis_p["b4"],
            cr_p["w"], cr_p["b"], rem_p["w"], rem_p["b"],
            depth_values.reshape(B, D, 1)]
    if has_init:
        in_specs.append(pl.BlockSpec((1, D, HW), lambda b, v: (b, 0, 0)))
        args.append(prob_volume_init.reshape(B, D, HW))

    prob, depth, conf, unc = pl.pallas_call(
        kern,
        out_shape=(jax.ShapeDtypeStruct((B, D, HW), jnp.float32),
                   jax.ShapeDtypeStruct((B, 1, HW), jnp.float32),
                   jax.ShapeDtypeStruct((B, 1, HW), jnp.float32),
                   jax.ShapeDtypeStruct((B, 1, HW), jnp.float32)),
        grid=(B, V),
        in_specs=in_specs,
        out_specs=(pl.BlockSpec((1, D, HW), lambda b, v: (b, 0, 0)),
                   pl.BlockSpec((1, 1, HW), lambda b, v: (b, 0, 0)),
                   pl.BlockSpec((1, 1, HW), lambda b, v: (b, 0, 0)),
                   pl.BlockSpec((1, 1, HW), lambda b, v: (b, 0, 0))),
        scratch_shapes=[pltpu.VMEM((D, HW), jnp.float32),   # projected cost acc
                        pltpu.VMEM((1, HW), jnp.float32)],  # vis_sum acc
        compiler_params=pltpu.CompilerParams(
            dimension_semantics=("parallel", "arbitrary"),
            # toy shapes fit easily; raise toward 64-96 MiB on v5e/v6e for
            # production resolutions (keep <= ~40 MiB on v7x).
            vmem_limit_bytes=32 * 1024 * 1024),
    )(*args)
    return prob, depth, conf, unc


# --------------------------------------------------------------------------
# Plain-JAX glue: projection composition and homography warping (gather)
# --------------------------------------------------------------------------
def compose_proj(proj):
    """proj: [B, 2, 4, 4] (extrinsic, intrinsic) -> composed [B, 4, 4]."""
    p = proj[:, 0]
    top = jnp.einsum("bij,bjk->bik", proj[:, 1, :3, :3], proj[:, 0, :3, :4])
    return p.at[:, :3, :4].set(top)


def homo_warping_3D(src_fea, src_proj, ref_proj, depth_values):
    """src_fea: [N,C,H,W]; projs: [N,4,4]; depth_values: [N,D] -> [N,C,D,H,W]."""
    # TODO(synk): data-dependent bilinear gather kept in plain JAX.
    N, C, H, W = src_fea.shape
    D = depth_values.shape[1]
    proj = src_proj @ jnp.linalg.inv(ref_proj)
    rot = proj[:, :3, :3]
    trans = proj[:, :3, 3:4]
    yy, xx = jnp.meshgrid(jnp.arange(H, dtype=jnp.float32),
                          jnp.arange(W, dtype=jnp.float32), indexing="ij")
    xyz = jnp.stack([xx.reshape(-1), yy.reshape(-1),
                     jnp.ones(H * W, jnp.float32)], axis=0)          # [3, HW]
    rot_xyz = jnp.einsum("nij,jk->nik", rot, xyz)                    # [N, 3, HW]
    rot_depth_xyz = rot_xyz[:, :, None, :] * depth_values[:, None, :, None]
    proj_xyz = rot_depth_xyz + trans[:, :, :, None]                  # [N, 3, D, HW]
    zc = proj_xyz[:, 2]
    zc = jnp.where(jnp.abs(zc) < 1e-6, jnp.full_like(zc, 1e-6), zc)  # guard z ~ 0
    px = proj_xyz[:, 0] / zc                                         # [N, D, HW]
    py = proj_xyz[:, 1] / zc

    # bilinear sampling, zeros padding
    x0 = jnp.floor(px); y0 = jnp.floor(py)
    x1 = x0 + 1.0; y1 = y0 + 1.0
    wa = (x1 - px) * (y1 - py)
    wb = (x1 - px) * (py - y0)
    wc = (px - x0) * (y1 - py)
    wd = (px - x0) * (py - y0)
    flat = src_fea.reshape(N, C, H * W)

    def gather(ix, iy):
        valid = ((ix >= 0) & (ix <= W - 1) & (iy >= 0) & (iy <= H - 1))
        valid = valid.astype(jnp.float32).reshape(N, 1, D * H * W)
        ixc = jnp.clip(ix, 0, W - 1).astype(jnp.int32)
        iyc = jnp.clip(iy, 0, H - 1).astype(jnp.int32)
        idx = (iyc * W + ixc).reshape(N, D * H * W)
        idx = jnp.broadcast_to(idx[:, None, :], (N, C, D * H * W))
        g = jnp.take_along_axis(flat, idx, axis=2)                   # [N, C, DHW]
        return g * valid

    out = (gather(x0, y0) * wa.reshape(N, 1, -1)
           + gather(x0, y1) * wb.reshape(N, 1, -1)
           + gather(x1, y0) * wc.reshape(N, 1, -1)
           + gather(x1, y1) * wd.reshape(N, 1, -1))
    return out.reshape(N, C, D, H, W)


def build_conv_masks(H, W):
    """Precomputed zero-padding validity masks for the 9 taps of a 3x3 conv,
    flattened to (9, H*W) f32; center tap row is all ones."""
    HW = H * W
    pos = np.arange(HW)
    px = pos % W
    py = pos // W
    rows = []
    for dy in (-1, 0, 1):
        for dx in (-1, 0, 1):
            valid = ((px + dx >= 0) & (px + dx < W) &
                     (py + dy >= 0) & (py + dy < H)).astype(np.float32)
            rows.append(valid)
    return jnp.asarray(np.stack(rows, axis=0))


# --------------------------------------------------------------------------
# StageNet forward (eval-mode branch, matches PyTorch semantics)
# --------------------------------------------------------------------------
def stage_net_forward(params, features, proj_matrices, depth_values, interval,
                      num_depth, prob_volume_init=None, stage_idx=0):
    projs = [proj_matrices[:, i] for i in range(proj_matrices.shape[1])]
    assert len(features) == len(projs) - 1, "Different number of images and projection matrices"
    assert depth_values.shape[1] == num_depth
    num_views = len(projs)
    ref_proj_new = compose_proj(projs[0])
    src_projs_new = jnp.stack([compose_proj(p) for p in projs[1:]], axis=0)  # (V,B,4,4)

    ref_stack = jnp.stack([f["ref"][0] for f in features], axis=0)           # (V,B,C,H,W)
    src_stack = jnp.stack([f["src"][0] for f in features], axis=0)
    nc_stack = jnp.stack([f["ref"][2] for f in features], axis=0)            # (V,B,1,H,W)
    nc_sum = sum((f["ref"][1] + f["src"][1]) * 0.5 for f in features)
    nc_mean = nc_sum / (num_views - 1)

    V, B, C, H, W = ref_stack.shape
    D = num_depth
    HW = H * W

    # batched homography warp of all source views at once (plain JAX gather)
    warped = homo_warping_3D(
        src_stack.reshape(V * B, C, H, W),
        src_projs_new.reshape(V * B, 4, 4),
        jnp.tile(ref_proj_new, (V, 1, 1)),
        jnp.tile(depth_values, (V, 1)),
    ).reshape(V, B, C, D, HW)

    # dominant feature volumes fed to the kernel in bf16; f32 accumulation in-kernel
    ref_bf = ref_stack.reshape(V, B, C, HW).astype(jnp.bfloat16)
    warped_bf = warped.astype(jnp.bfloat16)
    nc_bf = nc_stack.reshape(V, B, 1, HW).astype(jnp.bfloat16)
    masks = build_conv_masks(H, W)

    # TODO(synk): `interval` is only consumed by unity_regression (undefined in
    #             the spec); the fused head uses expectation regression.
    prob, depth, conf, unc = stage_fused(
        ref_bf, warped_bf, nc_bf, masks, params["vis"][stage_idx],
        params["cost_reg"], params["rem"], depth_values, H, W,
        prob_volume_init=prob_volume_init)

    return {"depth": depth.reshape(B, H, W),
            "photometric_confidence": conf.reshape(B, H, W),
            "norm_curv": nc_mean,
            "uncertaintyMap": unc.reshape(B, H, W),
            "prob_volume": prob.reshape(B, D, H, W),
            "depth_values": depth_values}


# --------------------------------------------------------------------------
# Deterministic parameter construction
# --------------------------------------------------------------------------
def init_params(key, C, D, num_stages=3):
    # eval-mode BatchNorm fold with default stats: gamma=1, beta=0, mean=0, var=1
    bn_scale = float(1.0 / np.sqrt(1.0 + 1e-5))
    ks = list(jax.random.split(key, num_stages * 5 + 2))
    it = iter(ks)

    def conv_taps(k, cout, cin):
        # (Cout,Cin,3,3) -> (9, Cout, Cin), tap t = (dy+1)*3 + (dx+1), BN folded,
        # pre-cast to bf16 so the kernel never re-casts weights per step.
        w = jax.random.normal(k, (cout, cin, 3, 3), jnp.float32) / np.sqrt(cin * 9)
        taps = jnp.transpose(w * bn_scale, (2, 3, 0, 1)).reshape(9, cout, cin)
        return taps.astype(jnp.bfloat16)

    vis = []
    for _ in range(num_stages):
        w1 = conv_taps(next(it), 16, 2)
        w2 = conv_taps(next(it), 16, 16)
        w3 = conv_taps(next(it), 16, 16)
        w4 = (jax.random.normal(next(it), (1, 16), jnp.float32) * 0.3).astype(jnp.bfloat16)
        b4 = jax.random.normal(next(it), (1,), jnp.float32) * 0.1
        zeros16 = jnp.zeros((16, 1), jnp.float32)   # BN beta - mean*scale = 0
        vis.append({"w1": w1, "b1": zeros16, "w2": w2, "b2": zeros16,
                    "w3": w3, "b3": zeros16, "w4": w4, "b4": b4})

    # TODO(synk): cost_regularization and REM are external modules in the spec;
    #             synthetic linear projections are used and fused into the kernel.
    cost_reg = {"w": jax.random.normal(next(it), (C, 1), jnp.float32) / np.sqrt(C),
                "b": jnp.zeros((1,), jnp.float32)}
    rem = {"w": jax.random.normal(next(it), (D, 1), jnp.float32) / np.sqrt(D),
           "b": jnp.zeros((1,), jnp.float32)}
    return {"vis": vis, "cost_reg": cost_reg, "rem": rem}


def build_proj_matrices(B, num_views, H, W):
    f, cx, cy = 8.0, (W - 1) / 2.0, (H - 1) / 2.0
    K = np.eye(4, dtype=np.float32)
    K[0, 0] = f; K[1, 1] = f; K[0, 2] = cx; K[1, 2] = cy
    projs = np.zeros((B, num_views, 2, 4, 4), np.float32)
    for v in range(num_views):
        E = np.eye(4, dtype=np.float32)
        E[0, 3] = 0.2 * v                      # small baseline along x
        projs[:, v, 0] = E
        projs[:, v, 1] = K
    return jnp.asarray(projs)


# --------------------------------------------------------------------------
if __name__ == "__main__":
    B, C, H, W, D = 2, 4, 16, 16, 8
    NUM_SRC = 2
    STAGE_IDX = 2                               # NDEPTHS[2] == 8 == D

    key = jax.random.PRNGKey(0)
    k_param, k_data = jax.random.split(key)
    params = init_params(k_param, C, D)

    dkeys = jax.random.split(k_data, 4 * NUM_SRC)
    features = []
    for v in range(NUM_SRC):
        kf = dkeys[4 * v: 4 * (v + 1)]
        ref_fea = jax.random.normal(kf[0], (B, C, H, W), jnp.float32)
        src_fea = jax.random.normal(kf[1], (B, C, H, W), jnp.float32)
        ref_nc = jax.random.uniform(kf[2], (B, 1, H, W), jnp.float32)
        ref_nc_sum = jax.random.uniform(kf[3], (B, 1, H, W), jnp.float32)
        src_nc_sum = ref_nc_sum * 0.5 + 0.1
        features.append({"ref": (ref_fea, ref_nc_sum, ref_nc),
                         "src": (src_fea, src_nc_sum, None)})

    proj_matrices = build_proj_matrices(B, NUM_SRC + 1, H, W)
    depth_values = jnp.tile(jnp.linspace(1.0, 2.0, D, dtype=jnp.float32)[None], (B, 1))
    interval = float(1.0 / (D - 1))

    fwd = jax.jit(stage_net_forward, static_argnames=("num_depth", "stage_idx"))
    out = fwd(params, features, proj_matrices, depth_values, interval,
              num_depth=D, stage_idx=STAGE_IDX)
    out = jax.block_until_ready(out)

    assert out["depth"].shape == (B, H, W)
    assert out["photometric_confidence"].shape == (B, H, W)
    assert out["prob_volume"].shape == (B, D, H, W)
    assert out["uncertaintyMap"].shape == (B, H, W)
    assert out["norm_curv"].shape == (B, 1, H, W)
    assert bool(jnp.all(jnp.isfinite(out["depth"])))
    assert bool(jnp.all(jnp.isfinite(out["prob_volume"])))
    assert bool(jnp.all(jnp.isfinite(out["photometric_confidence"])))
    assert bool(jnp.all(jnp.isfinite(out["uncertaintyMap"])))
    # prob_volume is an exact softmax -> rows sum to ~1
    assert bool(jnp.all(jnp.abs(jnp.sum(out["prob_volume"], axis=1) - 1.0) < 1e-3))
    print("KERNEL_OK")
</pallas_src>

<mosaic_0001>
module attributes {stable_mosaic.version = 11 : i64} {
  func.func @_stage_fused_kernel(%arg0: i32, %arg1: i32, %arg2: memref<1x1x4x256xbf16, #tpu.memory_space<vmem>>, %arg3: memref<1x1x4x8x256xbf16, #tpu.memory_space<vmem>>, %arg4: memref<1x1x1x256xbf16, #tpu.memory_space<vmem>>, %arg5: memref<9x256xf32, #tpu.memory_space<vmem>>, %arg6: memref<9x16x2xbf16, #tpu.memory_space<vmem>>, %arg7: memref<16x1xf32, #tpu.memory_space<vmem>>, %arg8: memref<9x16x16xbf16, #tpu.memory_space<vmem>>, %arg9: memref<16x1xf32, #tpu.memory_space<vmem>>, %arg10: memref<9x16x16xbf16, #tpu.memory_space<vmem>>, %arg11: memref<16x1xf32, #tpu.memory_space<vmem>>, %arg12: memref<1x16xbf16, #tpu.memory_space<vmem>>, %arg13: memref<1xf32, #tpu.memory_space<smem>>, %arg14: memref<4x1xf32, #tpu.memory_space<vmem>>, %arg15: memref<1xf32, #tpu.memory_space<smem>>, %arg16: memref<8x1xf32, #tpu.memory_space<vmem>>, %arg17: memref<1xf32, #tpu.memory_space<smem>>, %arg18: memref<1x8x1xf32, #tpu.memory_space<vmem>>, %arg19: memref<1x8x256xf32, #tpu.memory_space<vmem>>, %arg20: memref<1x1x256xf32, #tpu.memory_space<vmem>>, %arg21: memref<1x1x256xf32, #tpu.memory_space<vmem>>, %arg22: memref<1x1x256xf32, #tpu.memory_space<vmem>>, %arg23: memref<8x256xf32, #tpu.memory_space<vmem>>, %arg24: memref<1x256xf32, #tpu.memory_space<vmem>>) attributes {dimension_semantics = [#tpu.dimension_semantics<parallel>, #tpu.dimension_semantics<arbitrary>], iteration_bounds = array<i64: 2, 2>, scalar_prefetch = 0 : i64, scratch_operands = 2 : i64, tpu.core_type = #tpu.core_type<tc>, window_params = [{transform_indices = @transform_0, window_bounds = array<i64: 1, 1, 4, 256>}, {transform_indices = @transform_1, window_bounds = array<i64: 1, 1, 4, 8, 256>}, {transform_indices = @transform_2, window_bounds = array<i64: 1, 1, 1, 256>}, {pipeline_mode = #tpu.pipeline_mode<synchronous>, transform_indices = @transform_3, window_bounds = array<i64: 9, 256>}, {pipeline_mode = #tpu.pipeline_mode<synchronous>, transform_indices = @transform_4, window_bounds = array<i64: 9, 16, 2>}, {pipeline_mode = #tpu.pipeline_mode<synchronous>, transform_indices = @transform_5, window_bounds = array<i64: 16, 1>}, {pipeline_mode = #tpu.pipeline_mode<synchronous>, transform_indices = @transform_6, window_bounds = array<i64: 9, 16, 16>}, {pipeline_mode = #tpu.pipeline_mode<synchronous>, transform_indices = @transform_7, window_bounds = array<i64: 16, 1>}, {pipeline_mode = #tpu.pipeline_mode<synchronous>, transform_indices = @transform_8, window_bounds = array<i64: 9, 16, 16>}, {pipeline_mode = #tpu.pipeline_mode<synchronous>, transform_indices = @transform_9, window_bounds = array<i64: 16, 1>}, {pipeline_mode = #tpu.pipeline_mode<synchronous>, transform_indices = @transform_10, window_bounds = array<i64: 1, 16>}, {transform_indices = @transform_11, window_bounds = array<i64: 1>}, {pipeline_mode = #tpu.pipeline_mode<synchronous>, transform_indices = @transform_12, window_bounds = array<i64: 4, 1>}, {transform_indices = @transform_13, window_bounds = array<i64: 1>}, {pipeline_mode = #tpu.pipeline_mode<synchronous>, transform_indices = @transform_14, window_bounds = array<i64: 8, 1>}, {transform_indices = @transform_15, window_bounds = array<i64: 1>}, {transform_indices = @transform_16, window_bounds = array<i64: 1, 8, 1>}, {transform_indices = @transform_17, window_bounds = array<i64: 1, 8, 256>}, {transform_indices = @transform_18, window_bounds = array<i64: 1, 1, 256>}, {transform_indices = @transform_19, window_bounds = array<i64: 1, 1, 256>}, {transform_indices = @transform_20, window_bounds = array<i64: 1, 1, 256>}]} {
    %c0 = arith.constant 0 : index
    %c0_0 = arith.constant 0 : index
    %c0_1 = arith.constant 0 : index
    %c0_2 = arith.constant 0 : index
    %0 = vector.load %arg2[%c0, %c0_0, %c0_1, %c0_2] : memref<1x1x4x256xbf16, #tpu.memory_space<vmem>>, vector<1x1x4x256xbf16>
    %1 = vector.shape_cast %0 : vector<1x1x4x256xbf16> to vector<4x256xbf16>
    %2 = arith.extf %1 : vector<4x256xbf16> to vector<4x256xf32>
    %c0_3 = arith.constant 0 : index
    %c0_4 = arith.constant 0 : index
    %3 = vector.load %arg14[%c0_3, %c0_4] : memref<4x1xf32, #tpu.memory_space<vmem>>, vector<4x1xf32>
    %4 = vector.broadcast %3 : vector<4x1xf32> to vector<4x256xf32>
    %5 = arith.mulf %2, %4 : vector<4x256xf32>
    %c0_5 = arith.constant 0 : index
    %c0_6 = arith.constant 0 : index
    %c0_7 = arith.constant 0 : index
    %c0_8 = arith.constant 0 : index
    %c0_9 = arith.constant 0 : index
    %6 = vector.load %arg3[%c0_5, %c0_6, %c0_7, %c0_8, %c0_9] : memref<1x1x4x8x256xbf16, #tpu.memory_space<vmem>>, vector<1x1x1x8x256xbf16>
    %7 = vector.shape_cast %6 : vector<1x1x1x8x256xbf16> to vector<8x256xbf16>
    %8 = arith.extf %7 : vector<8x256xbf16> to vector<8x256xf32>
    %9 = vector.extract_strided_slice %2 {offsets = [0, 0], sizes = [1, 256], strides = [1, 1]} : vector<4x256xf32> to vector<1x256xf32>
    %10 = vector.broadcast %9 : vector<1x256xf32> to vector<8x256xf32>
    %11 = arith.mulf %8, %10 : vector<8x256xf32>
    %12 = vector.extract_strided_slice %5 {offsets = [0, 0], sizes = [1, 256], strides = [1, 1]} : vector<4x256xf32> to vector<1x256xf32>
    %13 = vector.broadcast %12 : vector<1x256xf32> to vector<8x256xf32>
    %14 = arith.mulf %8, %13 : vector<8x256xf32>
    %c0_10 = arith.constant 0 : index
    %c0_11 = arith.constant 0 : index
    %c1 = arith.constant 1 : index
    %c0_12 = arith.constant 0 : index
    %c0_13 = arith.constant 0 : index
    %15 = vector.load %arg3[%c0_10, %c0_11, %c1, %c0_12, %c0_13] : memref<1x1x4x8x256xbf16, #tpu.memory_space<vmem>>, vector<1x1x1x8x256xbf16>
    %16 = vector.shape_cast %15 : vector<1x1x1x8x256xbf16> to vector<8x256xbf16>
    %17 = arith.extf %16 : vector<8x256xbf16> to vector<8x256xf32>
    %18 = vector.extract_strided_slice %2 {offsets = [1, 0], sizes = [1, 256], strides = [1, 1]} : vector<4x256xf32> to vector<1x256xf32>
    %19 = vector.broadcast %18 : vector<1x256xf32> to vector<8x256xf32>
    %20 = arith.mulf %17, %19 : vector<8x256xf32>
    %21 = arith.addf %11, %20 : vector<8x256xf32>
    %22 = vector.extract_strided_slice %5 {offsets = [1, 0], sizes = [1, 256], strides = [1, 1]} : vector<4x256xf32> to vector<1x256xf32>
    %23 = vector.broadcast %22 : vector<1x256xf32> to vector<8x256xf32>
    %24 = arith.mulf %17, %23 : vector<8x256xf32>
    %25 = arith.addf %14, %24 : vector<8x256xf32>
    %c0_14 = arith.constant 0 : index
    %c0_15 = arith.constant 0 : index
    %c2 = arith.constant 2 : index
    %c0_16 = arith.constant 0 : index
    %c0_17 = arith.constant 0 : index
    %26 = vector.load %arg3[%c0_14, %c0_15, %c2, %c0_16, %c0_17] : memref<1x1x4x8x256xbf16, #tpu.memory_space<vmem>>, vector<1x1x1x8x256xbf16>
    %27 = vector.shape_cast %26 : vector<1x1x1x8x256xbf16> to vector<8x256xbf16>
    %28 = arith.extf %27 : vector<8x256xbf16> to vector<8x256xf32>
    %29 = vector.extract_strided_slice %2 {offsets = [2, 0], sizes = [1, 256], strides = [1, 1]} : vector<4x256xf32> to vector<1x256xf32>
    %30 = vector.broadcast %29 : vector<1x256xf32> to vector<8x256xf32>
    %31 = arith.mulf %28, %30 : vector<8x256xf32>
    %32 = arith.addf %21, %31 : vector<8x256xf32>
    %33 = vector.extract_strided_slice %5 {offsets = [2, 0], sizes = [1, 256], strides = [1, 1]} : vector<4x256xf32> to vector<1x256xf32>
    %34 = vector.broadcast %33 : vector<1x256xf32> to vector<8x256xf32>
    %35 = arith.mulf %28, %34 : vector<8x256xf32>
    %36 = arith.addf %25, %35 : vector<8x256xf32>
    %c0_18 = arith.constant 0 : index
    %c0_19 = arith.constant 0 : index
    %c3 = arith.constant 3 : index
    %c0_20 = arith.constant 0 : index
    %c0_21 = arith.constant 0 : index
    %37 = vector.load %arg3[%c0_18, %c0_19, %c3, %c0_20, %c0_21] : memref<1x1x4x8x256xbf16, #tpu.memory_space<vmem>>, vector<1x1x1x8x256xbf16>
    %38 = vector.shape_cast %37 : vector<1x1x1x8x256xbf16> to vector<8x256xbf16>
    %39 = arith.extf %38 : vector<8x256xbf16> to vector<8x256xf32>
    %40 = vector.extract_strided_slice %2 {offsets = [3, 0], sizes = [1, 256], strides = [1, 1]} : vector<4x256xf32> to vector<1x256xf32>
    %41 = vector.broadcast %40 : vector<1x256xf32> to vector<8x256xf32>
    %42 = arith.mulf %39, %41 : vector<8x256xf32>
    %43 = arith.addf %32, %42 : vector<8x256xf32>
    %44 = vector.extract_strided_slice %5 {offsets = [3, 0], sizes = [1, 256], strides = [1, 1]} : vector<4x256xf32> to vector<1x256xf32>
    %45 = vector.broadcast %44 : vector<1x256xf32> to vector<8x256xf32>
    %46 = arith.mulf %39, %45 : vector<8x256xf32>
    %47 = arith.addf %36, %46 : vector<8x256xf32>
    %cst = arith.constant dense<0xFF800000> : vector<256xf32>
    %48 = vector.multi_reduction <maximumf>, %43, %cst [0] : vector<8x256xf32> to vector<256xf32>
    %49 = vector.shape_cast %48 : vector<256xf32> to vector<1x256xf32>
    %50 = vector.broadcast %49 : vector<1x256xf32> to vector<8x256xf32>
    %51 = arith.subf %43, %50 : vector<8x256xf32>
    %52 = math.exp %51 : vector<8x256xf32>
    %cst_22 = arith.constant dense<0.000000e+00> : vector<256xf32>
    %53 = vector.multi_reduction <add>, %52, %cst_22 [0] : vector<8x256xf32> to vector<256xf32>
    %54 = vector.shape_cast %53 : vector<256xf32> to vector<1x256xf32>
    %55 = vector.broadcast %54 : vector<1x256xf32> to vector<8x256xf32>
    %56 = arith.divf %52, %55 : vector<8x256xf32>
    %57 = math.log %54 : vector<1x256xf32>
    %58 = arith.mulf %56, %51 : vector<8x256xf32>
    %cst_23 = arith.constant dense<0.000000e+00> : vector<256xf32>
    %59 = vector.multi_reduction <add>, %58, %cst_23 [0] : vector<8x256xf32> to vector<256xf32>
    %60 = vector.shape_cast %59 : vector<256xf32> to vector<1x256xf32>
    %61 = arith.subf %57, %60 : vector<1x256xf32>
    %c0_24 = arith.constant 0 : index
    %c0_25 = arith.constant 0 : index
    %c0_26 = arith.constant 0 : index
    %c0_27 = arith.constant 0 : index
    %62 = vector.load %arg4[%c0_24, %c0_25, %c0_26, %c0_27] : memref<1x1x1x256xbf16, #tpu.memory_space<vmem>>, vector<1x1x1x256xbf16>
    %63 = vector.shape_cast %62 : vector<1x1x1x256xbf16> to vector<1x256xbf16>
    %64 = arith.extf %63 : vector<1x256xbf16> to vector<1x256xf32>
    %65 = tpu.concatenate %61, %64 in 0 : vector<1x256xf32>, vector<1x256xf32> -> vector<2x256xf32>
    %c17_i32 = arith.constant 17 : i32
    %66 = tpu.dynamic_rotate %65 by %c17_i32 dim 1 : vector<2x256xf32>, i32 -> vector<2x256xf32>
    %c0_28 = arith.constant 0 : index
    %c0_29 = arith.constant 0 : index
    %67 = vector.load %arg5[%c0_28, %c0_29] : memref<9x256xf32, #tpu.memory_space<vmem>>, vector<1x256xf32>
    %68 = vector.broadcast %67 : vector<1x256xf32> to vector<2x256xf32>
    %69 = arith.mulf %66, %68 : vector<2x256xf32>
    %c0_30 = arith.constant 0 : index
    %c0_31 = arith.constant 0 : index
    %c0_32 = arith.constant 0 : index
    %70 = vector.load %arg6[%c0_30, %c0_31, %c0_32] : memref<9x16x2xbf16, #tpu.memory_space<vmem>>, vector<1x16x2xbf16>
    %71 = vector.shape_cast %70 : vector<1x16x2xbf16> to vector<16x2xbf16>
    %72 = arith.truncf %69 : vector<2x256xf32> to vector<2x256xbf16>
    %cst_33 = arith.constant dense<0.000000e+00> : vector<16x256xf32>
    %73 = tpu.matmul %71, %72, %cst_33 {dimension_numbers = #tpu.dot_dimension_numbers<[1], [0], [0], [1], [0, 0, 1, 1], [], []>} : vector<16x2xbf16>, vector<2x256xbf16>, vector<16x256xf32> -> vector<16x256xf32>
    %c16_i32 = arith.constant 16 : i32
    %74 = tpu.dynamic_rotate %65 by %c16_i32 dim 1 : vector<2x256xf32>, i32 -> vector<2x256xf32>
    %c1_34 = arith.constant 1 : index
    %c0_35 = arith.constant 0 : index
    %75 = vector.load %arg5[%c1_34, %c0_35] : memref<9x256xf32, #tpu.memory_space<vmem>>, vector<1x256xf32>
    %76 = vector.broadcast %75 : vector<1x256xf32> to vector<2x256xf32>
    %77 = arith.mulf %74, %76 : vector<2x256xf32>
    %c1_36 = arith.constant 1 : index
    %c0_37 = arith.constant 0 : index
    %c0_38 = arith.constant 0 : index
    %78 = vector.load %arg6[%c1_36, %c0_37, %c0_38] : memref<9x16x2xbf16, #tpu.memory_space<vmem>>, vector<1x16x2xbf16>
    %79 = vector.shape_cast %78 : vector<1x16x2xbf16> to vector<16x2xbf16>
    %80 = arith.truncf %77 : vector<2x256xf32> to vector<2x256xbf16>
    %cst_39 = arith.constant dense<0.000000e+00> : vector<16x256xf32>
    %81 = tpu.matmul %79, %80, %cst_39 {dimension_numbers = #tpu.dot_dimension_numbers<[1], [0], [0], [1], [0, 0, 1, 1], [], []>} : vector<16x2xbf16>, vector<2x256xbf16>, vector<16x256xf32> -> vector<16x256xf32>
    %82 = arith.addf %73, %81 : vector<16x256xf32>
    %c15_i32 = arith.constant 15 : i32
    %83 = tpu.dynamic_rotate %65 by %c15_i32 dim 1 : vector<2x256xf32>, i32 -> vector<2x256xf32>
    %c2_40 = arith.constant 2 : index
    %c0_41 = arith.constant 0 : index
    %84 = vector.load %arg5[%c2_40, %c0_41] : memref<9x256xf32, #tpu.memory_space<vmem>>, vector<1x256xf32>
    %85 = vector.broadcast %84 : vector<1x256xf32> to vector<2x256xf32>
    %86 = arith.mulf %83, %85 : vector<2x256xf32>
    %c2_42 = arith.constant 2 : index
    %c0_43 = arith.constant 0 : index
    %c0_44 = arith.constant 0 : index
    %87 = vector.load %arg6[%c2_42, %c0_43, %c0_44] : memref<9x16x2xbf16, #tpu.memory_space<vmem>>, vector<1x16x2xbf16>
    %88 = vector.shape_cast %87 : vector<1x16x2xbf16> to vector<16x2xbf16>
    %89 = arith.truncf %86 : vector<2x256xf32> to vector<2x256xbf16>
    %cst_45 = arith.constant dense<0.000000e+00> : vector<16x256xf32>
    %90 = tpu.matmul %88, %89, %cst_45 {dimension_numbers = #tpu.dot_dimension_numbers<[1], [0], [0], [1], [0, 0, 1, 1], [], []>} : vector<16x2xbf16>, vector<2x256xbf16>, vector<16x256xf32> -> vector<16x256xf32>
    %91 = arith.addf %82, %90 : vector<16x256xf32>
    %c1_i32 = arith.constant 1 : i32
    %92 = tpu.dynamic_rotate %65 by %c1_i32 dim 1 : vector<2x256xf32>, i32 -> vector<2x256xf32>
    %c3_46 = arith.constant 3 : index
    %c0_47 = arith.constant 0 : index
    %93 = vector.load %arg5[%c3_46, %c0_47] : memref<9x256xf32, #tpu.memory_space<vmem>>, vector<1x256xf32>
    %94 = vector.broadcast %93 : vector<1x256xf32> to vector<2x256xf32>
    %95 = arith.mulf %92, %94 : vector<2x256xf32>
    %c3_48 = arith.constant 3 : index
    %c0_49 = arith.constant 0 : index
    %c0_50 = arith.constant 0 : index
    %96 = vector.load %arg6[%c3_48, %c0_49, %c0_50] : memref<9x16x2xbf16, #tpu.memory_space<vmem>>, vector<1x16x2xbf16>
    %97 = vector.shape_cast %96 : vector<1x16x2xbf16> to vector<16x2xbf16>
    %98 = arith.truncf %95 : vector<2x256xf32> to vector<2x256xbf16>
    %cst_51 = arith.constant dense<0.000000e+00> : vector<16x256xf32>
    %99 = tpu.matmul %97, %98, %cst_51 {dimension_numbers = #tpu.dot_dimension_numbers<[1], [0], [0], [1], [0, 0, 1, 1], [], []>} : vector<16x2xbf16>, vector<2x256xbf16>, vector<16x256xf32> -> vector<16x256xf32>
    %100 = arith.addf %91, %99 : vector<16x256xf32>
    %c4 = arith.constant 4 : index
    %c0_52 = arith.constant 0 : index
    %c0_53 = arith.constant 0 : index
    %101 = vector.load %arg6[%c4, %c0_52, %c0_53] : memref<9x16x2xbf16, #tpu.memory_space<vmem>>, vector<1x16x2xbf16>
    %102 = vector.shape_cast %101 : vector<1x16x2xbf16> to vector<16x2xbf16>
    %103 = arith.truncf %65 : vector<2x256xf32> to vector<2x256xbf16>
    %cst_54 = arith.constant dense<0.000000e+00> : vector<16x256xf32>
    %104 = tpu.matmul %102, %103, %cst_54 {dimension_numbers = #tpu.dot_dimension_numbers<[1], [0], [0], [1], [0, 0, 1, 1], [], []>} : vector<16x2xbf16>, vector<2x256xbf16>, vector<16x256xf32> -> vector<16x256xf32>
    %105 = arith.addf %100, %104 : vector<16x256xf32>
    %c255_i32 = arith.constant 255 : i32
    %106 = tpu.dynamic_rotate %65 by %c255_i32 dim 1 : vector<2x256xf32>, i32 -> vector<2x256xf32>
    %c5 = arith.constant 5 : index
    %c0_55 = arith.constant 0 : index
    %107 = vector.load %arg5[%c5, %c0_55] : memref<9x256xf32, #tpu.memory_space<vmem>>, vector<1x256xf32>
    %108 = vector.broadcast %107 : vector<1x256xf32> to vector<2x256xf32>
    %109 = arith.mulf %106, %108 : vector<2x256xf32>
    %c5_56 = arith.constant 5 : index
    %c0_57 = arith.constant 0 : index
    %c0_58 = arith.constant 0 : index
    %110 = vector.load %arg6[%c5_56, %c0_57, %c0_58] : memref<9x16x2xbf16, #tpu.memory_space<vmem>>, vector<1x16x2xbf16>
    %111 = vector.shape_cast %110 : vector<1x16x2xbf16> to vector<16x2xbf16>
    %112 = arith.truncf %109 : vector<2x256xf32> to vector<2x256xbf16>
    %cst_59 = arith.constant dense<0.000000e+00> : vector<16x256xf32>
    %113 = tpu.matmul %111, %112, %cst_59 {dimension_numbers = #tpu.dot_dimension_numbers<[1], [0], [0], [1], [0, 0, 1, 1], [], []>} : vector<16x2xbf16>, vector<2x256xbf16>, vector<16x256xf32> -> vector<16x256xf32>
    %114 = arith.addf %105, %113 : vector<16x256xf32>
    %c241_i32 = arith.constant 241 : i32
    %115 = tpu.dynamic_rotate %65 by %c241_i32 dim 1 : vector<2x256xf32>, i32 -> vector<2x256xf32>
    %c6 = arith.constant 6 : index
    %c0_60 = arith.constant 0 : index
    %116 = vector.load %arg5[%c6, %c0_60] : memref<9x256xf32, #tpu.memory_space<vmem>>, vector<1x256xf32>
    %117 = vector.broadcast %116 : vector<1x256xf32> to vector<2x256xf32>
    %118 = arith.mulf %115, %117 : vector<2x256xf32>
    %c6_61 = arith.constant 6 : index
    %c0_62 = arith.constant 0 : index
    %c0_63 = arith.constant 0 : index
    %119 = vector.load %arg6[%c6_61, %c0_62, %c0_63] : memref<9x16x2xbf16, #tpu.memory_space<vmem>>, vector<1x16x2xbf16>
    %120 = vector.shape_cast %119 : vector<1x16x2xbf16> to vector<16x2xbf16>
    %121 = arith.truncf %118 : vector<2x256xf32> to vector<2x256xbf16>
    %cst_64 = arith.constant dense<0.000000e+00> : vector<16x256xf32>
    %122 = tpu.matmul %120, %121, %cst_64 {dimension_numbers = #tpu.dot_dimension_numbers<[1], [0], [0], [1], [0, 0, 1, 1], [], []>} : vector<16x2xbf16>, vector<2x256xbf16>, vector<16x256xf32> -> vector<16x256xf32>
    %123 = arith.addf %114, %122 : vector<16x256xf32>
    %c240_i32 = arith.constant 240 : i32
    %124 = tpu.dynamic_rotate %65 by %c240_i32 dim 1 : vector<2x256xf32>, i32 -> vector<2x256xf32>
    %c7 = arith.constant 7 : index
    %c0_65 = arith.constant 0 : index
    %125 = vector.load %arg5[%c7, %c0_65] : memref<9x256xf32, #tpu.memory_space<vmem>>, vector<1x256xf32>
    %126 = vector.broadcast %125 : vector<1x256xf32> to vector<2x256xf32>
    %127 = arith.mulf %124, %126 : vector<2x256xf32>
    %c7_66 = arith.constant 7 : index
    %c0_67 = arith.constant 0 : index
    %c0_68 = arith.constant 0 : index
    %128 = vector.load %arg6[%c7_66, %c0_67, %c0_68] : memref<9x16x2xbf16, #tpu.memory_space<vmem>>, vector<1x16x2xbf16>
    %129 = vector.shape_cast %128 : vector<1x16x2xbf16> to vector<16x2xbf16>
    %130 = arith.truncf %127 : vector<2x256xf32> to vector<2x256xbf16>
    %cst_69 = arith.constant dense<0.000000e+00> : vector<16x256xf32>
    %131 = tpu.matmul %129, %130, %cst_69 {dimension_numbers = #tpu.dot_dimension_numbers<[1], [0], [0], [1], [0, 0, 1, 1], [], []>} : vector<16x2xbf16>, vector<2x256xbf16>, vector<16x256xf32> -> vector<16x256xf32>
    %132 = arith.addf %123, %131 : vector<16x256xf32>
    %c239_i32 = arith.constant 239 : i32
    %133 = tpu.dynamic_rotate %65 by %c239_i32 dim 1 : vector<2x256xf32>, i32 -> vector<2x256xf32>
    %c8 = arith.constant 8 : index
    %c0_70 = arith.constant 0 : index
    %134 = vector.load %arg5[%c8, %c0_70] : memref<9x256xf32, #tpu.memory_space<vmem>>, vector<1x256xf32>
    %135 = vector.broadcast %134 : vector<1x256xf32> to vector<2x256xf32>
    %136 = arith.mulf %133, %135 : vector<2x256xf32>
    %c8_71 = arith.constant 8 : index
    %c0_72 = arith.constant 0 : index
    %c0_73 = arith.constant 0 : index
    %137 = vector.load %arg6[%c8_71, %c0_72, %c0_73] : memref<9x16x2xbf16, #tpu.memory_space<vmem>>, vector<1x16x2xbf16>
    %138 = vector.shape_cast %137 : vector<1x16x2xbf16> to vector<16x2xbf16>
    %139 = arith.truncf %136 : vector<2x256xf32> to vector<2x256xbf16>
    %cst_74 = arith.constant dense<0.000000e+00> : vector<16x256xf32>
    %140 = tpu.matmul %138, %139, %cst_74 {dimension_numbers = #tpu.dot_dimension_numbers<[1], [0], [0], [1], [0, 0, 1, 1], [], []>} : vector<16x2xbf16>, vector<2x256xbf16>, vector<16x256xf32> -> vector<16x256xf32>
    %141 = arith.addf %132, %140 : vector<16x256xf32>
    %c0_75 = arith.constant 0 : index
    %c0_76 = arith.constant 0 : index
    %142 = vector.load %arg7[%c0_75, %c0_76] : memref<16x1xf32, #tpu.memory_space<vmem>>, vector<16x1xf32>
    %143 = vector.broadcast %142 : vector<16x1xf32> to vector<16x256xf32>
    %144 = arith.addf %141, %143 : vector<16x256xf32>
    %cst_77 = arith.constant 0.000000e+00 : f32
    %145 = vector.broadcast %cst_77 : f32 to vector<16x256xf32>
    %146 = arith.maximumf %144, %145 : vector<16x256xf32>
    %c17_i32_78 = arith.constant 17 : i32
    %147 = tpu.dynamic_rotate %146 by %c17_i32_78 dim 1 : vector<16x256xf32>, i32 -> vector<16x256xf32>
    %c0_79 = arith.constant 0 : index
    %c0_80 = arith.constant 0 : index
    %148 = vector.load %arg5[%c0_79, %c0_80] : memref<9x256xf32, #tpu.memory_space<vmem>>, vector<1x256xf32>
    %149 = vector.broadcast %148 : vector<1x256xf32> to vector<16x256xf32>
    %150 = arith.mulf %147, %149 : vector<16x256xf32>
    %c0_81 = arith.constant 0 : index
    %c0_82 = arith.constant 0 : index
    %c0_83 = arith.constant 0 : index
    %151 = vector.load %arg8[%c0_81, %c0_82, %c0_83] : memref<9x16x16xbf16, #tpu.memory_space<vmem>>, vector<1x16x16xbf16>
    %152 = vector.shape_cast %151 : vector<1x16x16xbf16> to vector<16x16xbf16>
    %153 = arith.truncf %150 : vector<16x256xf32> to vector<16x256xbf16>
    %cst_84 = arith.constant dense<0.000000e+00> : vector<16x256xf32>
    %154 = tpu.matmul %152, %153, %cst_84 {dimension_numbers = #tpu.dot_dimension_numbers<[1], [0], [0], [1], [0, 0, 1, 1], [], []>} : vector<16x16xbf16>, vector<16x256xbf16>, vector<16x256xf32> -> vector<16x256xf32>
    %c16_i32_85 = arith.constant 16 : i32
    %155 = tpu.dynamic_rotate %146 by %c16_i32_85 dim 1 : vector<16x256xf32>, i32 -> vector<16x256xf32>
    %c1_86 = arith.constant 1 : index
    %c0_87 = arith.constant 0 : index
    %156 = vector.load %arg5[%c1_86, %c0_87] : memref<9x256xf32, #tpu.memory_space<vmem>>, vector<1x256xf32>
    %157 = vector.broadcast %156 : vector<1x256xf32> to vector<16x256xf32>
    %158 = arith.mulf %155, %157 : vector<16x256xf32>
    %c1_88 = arith.constant 1 : index
    %c0_89 = arith.constant 0 : index
    %c0_90 = arith.constant 0 : index
    %159 = vector.load %arg8[%c1_88, %c0_89, %c0_90] : memref<9x16x16xbf16, #tpu.memory_space<vmem>>, vector<1x16x16xbf16>
    %160 = vector.shape_cast %159 : vector<1x16x16xbf16> to vector<16x16xbf16>
    %161 = arith.truncf %158 : vector<16x256xf32> to vector<16x256xbf16>
    %cst_91 = arith.constant dense<0.000000e+00> : vector<16x256xf32>
    %162 = tpu.matmul %160, %161, %cst_91 {dimension_numbers = #tpu.dot_dimension_numbers<[1], [0], [0], [1], [0, 0, 1, 1], [], []>} : vector<16x16xbf16>, vector<16x256xbf16>, vector<16x256xf32> -> vector<16x256xf32>
    %163 = arith.addf %154, %162 : vector<16x256xf32>
    %c15_i32_92 = arith.constant 15 : i32
    %164 = tpu.dynamic_rotate %146 by %c15_i32_92 dim 1 : vector<16x256xf32>, i32 -> vector<16x256xf32>
    %c2_93 = arith.constant 2 : index
    %c0_94 = arith.constant 0 : index
    %165 = vector.load %arg5[%c2_93, %c0_94] : memref<9x256xf32, #tpu.memory_space<vmem>>, vector<1x256xf32>
    %166 = vector.broadcast %165 : vector<1x256xf32> to vector<16x256xf32>
    %167 = arith.mulf %164, %166 : vector<16x256xf32>
    %c2_95 = arith.constant 2 : index
    %c0_96 = arith.constant 0 : index
    %c0_97 = arith.constant 0 : index
    %168 = vector.load %arg8[%c2_95, %c0_96, %c0_97] : memref<9x16x16xbf16, #tpu.memory_space<vmem>>, vector<1x16x16xbf16>
    %169 = vector.shape_cast %168 : vector<1x16x16xbf16> to vector<16x16xbf16>
    %170 = arith.truncf %167 : vector<16x256xf32> to vector<16x256xbf16>
    %cst_98 = arith.constant dense<0.000000e+00> : vector<16x256xf32>
    %171 = tpu.matmul %169, %170, %cst_98 {dimension_numbers = #tpu.dot_dimension_numbers<[1], [0], [0], [1], [0, 0, 1, 1], [], []>} : vector<16x16xbf16>, vector<16x256xbf16>, vector<16x256xf32> -> vector<16x256xf32>
    %172 = arith.addf %163, %171 : vector<16x256xf32>
    %c1_i32_99 = arith.constant 1 : i32
    %173 = tpu.dynamic_rotate %146 by %c1_i32_99 dim 1 : vector<16x256xf32>, i32 -> vector<16x256xf32>
    %c3_100 = arith.constant 3 : index
    %c0_101 = arith.constant 0 : index
    %174 = vector.load %arg5[%c3_100, %c0_101] : memref<9x256xf32, #tpu.memory_space<vmem>>, vector<1x256xf32>
    %175 = vector.broadcast %174 : vector<1x256xf32> to vector<16x256xf32>
    %176 = arith.mulf %173, %175 : vector<16x256xf32>
    %c3_102 = arith.constant 3 : index
    %c0_103 = arith.constant 0 : index
    %c0_104 = arith.constant 0 : index
    %177 = vector.load %arg8[%c3_102, %c0_103, %c0_104] : memref<9x16x16xbf16, #tpu.memory_space<vmem>>, vector<1x16x16xbf16>
    %178 = vector.shape_cast %177 : vector<1x16x16xbf16> to vector<16x16xbf16>
    %179 = arith.truncf %176 : vector<16x256xf32> to vector<16x256xbf16>
    %cst_105 = arith.constant dense<0.000000e+00> : vector<16x256xf32>
    %180 = tpu.matmul %178, %179, %cst_105 {dimension_numbers = #tpu.dot_dimension_numbers<[1], [0], [0], [1], [0, 0, 1, 1], [], []>} : vector<16x16xbf16>, vector<16x256xbf16>, vector<16x256xf32> -> vector<16x256xf32>
    %181 = arith.addf %172, %180 : vector<16x256xf32>
    %c4_106 = arith.constant 4 : index
    %c0_107 = arith.constant 0 : index
    %c0_108 = arith.constant 0 : index
    %182 = vector.load %arg8[%c4_106, %c0_107, %c0_108] : memref<9x16x16xbf16, #tpu.memory_space<vmem>>, vector<1x16x16xbf16>
    %183 = vector.shape_cast %182 : vector<1x16x16xbf16> to vector<16x16xbf16>
    %184 = arith.truncf %146 : vector<16x256xf32> to vector<16x256xbf16>
    %cst_109 = arith.constant dense<0.000000e+00> : vector<16x256xf32>
    %185 = tpu.matmul %183, %184, %cst_109 {dimension_numbers = #tpu.dot_dimension_numbers<[1], [0], [0], [1], [0, 0, 1, 1], [], []>} : vector<16x16xbf16>, vector<16x256xbf16>, vector<16x256xf32> -> vector<16x256xf32>
    %186 = arith.addf %181, %185 : vector<16x256xf32>
    %c255_i32_110 = arith.constant 255 : i32
    %187 = tpu.dynamic_rotate %146 by %c255_i32_110 dim 1 : vector<16x256xf32>, i32 -> vector<16x256xf32>
    %c5_111 = arith.constant 5 : index
    %c0_112 = arith.constant 0 : index
    %188 = vector.load %arg5[%c5_111, %c0_112] : memref<9x256xf32, #tpu.memory_space<vmem>>, vector<1x256xf32>
    %189 = vector.broadcast %188 : vector<1x256xf32> to vector<16x256xf32>
    %190 = arith.mulf %187, %189 : vector<16x256xf32>
    %c5_113 = arith.constant 5 : index
    %c0_114 = arith.constant 0 : index
    %c0_115 = arith.constant 0 : index
    %191 = vector.load %arg8[%c5_113, %c0_114, %c0_115] : memref<9x16x16xbf16, #tpu.memory_space<vmem>>, vector<1x16x16xbf16>
    %192 = vector.shape_cast %191 : vector<1x16x16xbf16> to vector<16x16xbf16>
    %193 = arith.truncf %190 : vector<16x256xf32> to vector<16x256xbf16>
    %cst_116 = arith.constant dense<0.000000e+00> : vector<16x256xf32>
    %194 = tpu.matmul %192, %193, %cst_116 {dimension_numbers = #tpu.dot_dimension_numbers<[1], [0], [0], [1], [0, 0, 1, 1], [], []>} : vector<16x16xbf16>, vector<16x256xbf16>, vector<16x256xf32> -> vector<16x256xf32>
    %195 = arith.addf %186, %194 : vector<16x256xf32>
    %c241_i32_117 = arith.constant 241 : i32
    %196 = tpu.dynamic_rotate %146 by %c241_i32_117 dim 1 : vector<16x256xf32>, i32 -> vector<16x256xf32>
    %c6_118 = arith.constant 6 : index
    %c0_119 = arith.constant 0 : index
    %197 = vector.load %arg5[%c6_118, %c0_119] : memref<9x256xf32, #tpu.memory_space<vmem>>, vector<1x256xf32>
    %198 = vector.broadcast %197 : vector<1x256xf32> to vector<16x256xf32>
    %199 = arith.mulf %196, %198 : vector<16x256xf32>
    %c6_120 = arith.constant 6 : index
    %c0_121 = arith.constant 0 : index
    %c0_122 = arith.constant 0 : index
    %200 = vector.load %arg8[%c6_120, %c0_121, %c0_122] : memref<9x16x16xbf16, #tpu.memory_space<vmem>>, vector<1x16x16xbf16>
    %201 = vector.shape_cast %200 : vector<1x16x16xbf16> to vector<16x16xbf16>
    %202 = arith.truncf %199 : vector<16x256xf32> to vector<16x256xbf16>
    %cst_123 = arith.constant dense<0.000000e+00> : vector<16x256xf32>
    %203 = tpu.matmul %201, %202, %cst_123 {dimension_numbers = #tpu.dot_dimension_numbers<[1], [0], [0], [1], [0, 0, 1, 1], [], []>} : vector<16x16xbf16>, vector<16x256xbf16>, vector<16x256xf32> -> vector<16x256xf32>
    %204 = arith.addf %195, %203 : vector<16x256xf32>
    %c240_i32_124 = arith.constant 240 : i32
    %205 = tpu.dynamic_rotate %146 by %c240_i32_124 dim 1 : vector<16x256xf32>, i32 -> vector<16x256xf32>
    %c7_125 = arith.constant 7 : index
    %c0_126 = arith.constant 0 : index
    %206 = vector.load %arg5[%c7_125, %c0_126] : memref<9x256xf32, #tpu.memory_space<vmem>>, vector<1x256xf32>
    %207 = vector.broadcast %206 : vector<1x256xf32> to vector<16x256xf32>
    %208 = arith.mulf %205, %207 : vector<16x256xf32>
    %c7_127 = arith.constant 7 : index
    %c0_128 = arith.constant 0 : index
    %c0_129 = arith.constant 0 : index
    %209 = vector.load %arg8[%c7_127, %c0_128, %c0_129] : memref<9x16x16xbf16, #tpu.memory_space<vmem>>, vector<1x16x16xbf16>
    %210 = vector.shape_cast %209 : vector<1x16x16xbf16> to vector<16x16xbf16>
    %211 = arith.truncf %208 : vector<16x256xf32> to vector<16x256xbf16>
    %cst_130 = arith.constant dense<0.000000e+00> : vector<16x256xf32>
    %212 = tpu.matmul %210, %211, %cst_130 {dimension_numbers = #tpu.dot_dimension_numbers<[1], [0], [0], [1], [0, 0, 1, 1], [], []>} : vector<16x16xbf16>, vector<16x256xbf16>, vector<16x256xf32> -> vector<16x256xf32>
    %213 = arith.addf %204, %212 : vector<16x256xf32>
    %c239_i32_131 = arith.constant 239 : i32
    %214 = tpu.dynamic_rotate %146 by %c239_i32_131 dim 1 : vector<16x256xf32>, i32 -> vector<16x256xf32>
    %c8_132 = arith.constant 8 : index
    %c0_133 = arith.constant 0 : index
    %215 = vector.load %arg5[%c8_132, %c0_133] : memref<9x256xf32, #tpu.memory_space<vmem>>, vector<1x256xf32>
    %216 = vector.broadcast %215 : vector<1x256xf32> to vector<16x256xf32>
    %217 = arith.mulf %214, %216 : vector<16x256xf32>
    %c8_134 = arith.constant 8 : index
    %c0_135 = arith.constant 0 : index
    %c0_136 = arith.constant 0 : index
    %218 = vector.load %arg8[%c8_134, %c0_135, %c0_136] : memref<9x16x16xbf16, #tpu.memory_space<vmem>>, vector<1x16x16xbf16>
    %219 = vector.shape_cast %218 : vector<1x16x16xbf16> to vector<16x16xbf16>
    %220 = arith.truncf %217 : vector<16x256xf32> to vector<16x256xbf16>
    %cst_137 = arith.constant dense<0.000000e+00> : vector<16x256xf32>
    %221 = tpu.matmul %219, %220, %cst_137 {dimension_numbers = #tpu.dot_dimension_numbers<[1], [0], [0], [1], [0, 0, 1, 1], [], []>} : vector<16x16xbf16>, vector<16x256xbf16>, vector<16x256xf32> -> vector<16x256xf32>
    %222 = arith.addf %213, %221 : vector<16x256xf32>
    %c0_138 = arith.constant 0 : index
    %c0_139 = arith.constant 0 : index
    %223 = vector.load %arg9[%c0_138, %c0_139] : memref<16x1xf32, #tpu.memory_space<vmem>>, vector<16x1xf32>
    %224 = vector.broadcast %223 : vector<16x1xf32> to vector<16x256xf32>
    %225 = arith.addf %222, %224 : vector<16x256xf32>
    %cst_140 = arith.constant 0.000000e+00 : f32
    %226 = vector.broadcast %cst_140 : f32 to vector<16x256xf32>
    %227 = arith.maximumf %225, %226 : vector<16x256xf32>
    %c17_i32_141 = arith.constant 17 : i32
    %228 = tpu.dynamic_rotate %227 by %c17_i32_141 dim 1 : vector<16x256xf32>, i32 -> vector<16x256xf32>
    %c0_142 = arith.constant 0 : index
    %c0_143 = arith.constant 0 : index
    %229 = vector.load %arg5[%c0_142, %c0_143] : memref<9x256xf32, #tpu.memory_space<vmem>>, vector<1x256xf32>
    %230 = vector.broadcast %229 : vector<1x256xf32> to vector<16x256xf32>
    %231 = arith.mulf %228, %230 : vector<16x256xf32>
    %c0_144 = arith.constant 0 : index
    %c0_145 = arith.constant 0 : index
    %c0_146 = arith.constant 0 : index
    %232 = vector.load %arg10[%c0_144, %c0_145, %c0_146] : memref<9x16x16xbf16, #tpu.memory_space<vmem>>, vector<1x16x16xbf16>
    %233 = vector.shape_cast %232 : vector<1x16x16xbf16> to vector<16x16xbf16>
    %234 = arith.truncf %231 : vector<16x256xf32> to vector<16x256xbf16>
    %cst_147 = arith.constant dense<0.000000e+00> : vector<16x256xf32>
    %235 = tpu.matmul %233, %234, %cst_147 {dimension_numbers = #tpu.dot_dimension_numbers<[1], [0], [0], [1], [0, 0, 1, 1], [], []>} : vector<16x16xbf16>, vector<16x256xbf16>, vector<16x256xf32> -> vector<16x256xf32>
    %c16_i32_148 = arith.constant 16 : i32
    %236 = tpu.dynamic_rotate %227 by %c16_i32_148 dim 1 : vector<16x256xf32>, i32 -> vector<16x256xf32>
    %c1_149 = arith.constant 1 : index
    %c0_150 = arith.constant 0 : index
    %237 = vector.load %arg5[%c1_149, %c0_150] : memref<9x256xf32, #tpu.memory_space<vmem>>, vector<1x256xf32>
    %238 = vector.broadcast %237 : vector<1x256xf32> to vector<16x256xf32>
    %239 = arith.mulf %236, %238 : vector<16x256xf32>
    %c1_151 = arith.constant 1 : index
    %c0_152 = arith.constant 0 : index
    %c0_153 = arith.constant 0 : index
    %240 = vector.load %arg10[%c1_151, %c0_152, %c0_153] : memref<9x16x16xbf16, #tpu.memory_space<vmem>>, vector<1x16x16xbf16>
    %241 = vector.shape_cast %240 : vector<1x16x16xbf16> to vector<16x16xbf16>
    %242 = arith.truncf %239 : vector<16x256xf32> to vector<16x256xbf16>
    %cst_154 = arith.constant dense<0.000000e+00> : vector<16x256xf32>
    %243 = tpu.matmul %241, %242, %cst_154 {dimension_numbers = #tpu.dot_dimension_numbers<[1], [0], [0], [1], [0, 0, 1, 1], [], []>} : vector<16x16xbf16>, vector<16x256xbf16>, vector<16x256xf32> -> vector<16x256xf32>
    %244 = arith.addf %235, %243 : vector<16x256xf32>
    %c15_i32_155 = arith.constant 15 : i32
    %245 = tpu.dynamic_rotate %227 by %c15_i32_155 dim 1 : vector<16x256xf32>, i32 -> vector<16x256xf32>
    %c2_156 = arith.constant 2 : index
    %c0_157 = arith.constant 0 : index
    %246 = vector.load %arg5[%c2_156, %c0_157] : memref<9x256xf32, #tpu.memory_space<vmem>>, vector<1x256xf32>
    %247 = vector.broadcast %246 : vector<1x256xf32> to vector<16x256xf32>
    %248 = arith.mulf %245, %247 : vector<16x256xf32>
    %c2_158 = arith.constant 2 : index
    %c0_159 = arith.constant 0 : index
    %c0_160 = arith.constant 0 : index
    %249 = vector.load %arg10[%c2_158, %c0_159, %c0_160] : memref<9x16x16xbf16, #tpu.memory_space<vmem>>, vector<1x16x16xbf16>
    %250 = vector.shape_cast %249 : vector<1x16x16xbf16> to vector<16x16xbf16>
    %251 = arith.truncf %248 : vector<16x256xf32> to vector<16x256xbf16>
    %cst_161 = arith.constant dense<0.000000e+00> : vector<16x256xf32>
    %252 = tpu.matmul %250, %251, %cst_161 {dimension_numbers = #tpu.dot_dimension_numbers<[1], [0], [0], [1], [0, 0, 1, 1], [], []>} : vector<16x16xbf16>, vector<16x256xbf16>, vector<16x256xf32> -> vector<16x256xf32>
    %253 = arith.addf %244, %252 : vector<16x256xf32>
    %c1_i32_162 = arith.constant 1 : i32
    %254 = tpu.dynamic_rotate %227 by %c1_i32_162 dim 1 : vector<16x256xf32>, i32 -> vector<16x256xf32>
    %c3_163 = arith.constant 3 : index
    %c0_164 = arith.constant 0 : index
    %255 = vector.load %arg5[%c3_163, %c0_164] : memref<9x256xf32, #tpu.memory_space<vmem>>, vector<1x256xf32>
    %256 = vector.broadcast %255 : vector<1x256xf32> to vector<16x256xf32>
    %257 = arith.mulf %254, %256 : vector<16x256xf32>
    %c3_165 = arith.constant 3 : index
    %c0_166 = arith.constant 0 : index
    %c0_167 = arith.constant 0 : index
    %258 = vector.load %arg10[%c3_165, %c0_166, %c0_167] : memref<9x16x16xbf16, #tpu.memory_space<vmem>>, vector<1x16x16xbf16>
    %259 = vector.shape_cast %258 : vector<1x16x16xbf16> to vector<16x16xbf16>
    %260 = arith.truncf %257 : vector<16x256xf32> to vector<16x256xbf16>
    %cst_168 = arith.constant dense<0.000000e+00> : vector<16x256xf32>
    %261 = tpu.matmul %259, %260, %cst_168 {dimension_numbers = #tpu.dot_dimension_numbers<[1], [0], [0], [1], [0, 0, 1, 1], [], []>} : vector<16x16xbf16>, vector<16x256xbf16>, vector<16x256xf32> -> vector<16x256xf32>
    %262 = arith.addf %253, %261 : vector<16x256xf32>
    %c4_169 = arith.constant 4 : index
    %c0_170 = arith.constant 0 : index
    %c0_171 = arith.constant 0 : index
    %263 = vector.load %arg10[%c4_169, %c0_170, %c0_171] : memref<9x16x16xbf16, #tpu.memory_space<vmem>>, vector<1x16x16xbf16>
    %264 = vector.shape_cast %263 : vector<1x16x16xbf16> to vector<16x16xbf16>
    %265 = arith.truncf %227 : vector<16x256xf32> to vector<16x256xbf16>
    %cst_172 = arith.constant dense<0.000000e+00> : vector<16x256xf32>
    %266 = tpu.matmul %264, %265, %cst_172 {dimension_numbers = #tpu.dot_dimension_numbers<[1], [0], [0], [1], [0, 0, 1, 1], [], []>} : vector<16x16xbf16>, vector<16x256xbf16>, vector<16x256xf32> -> vector<16x256xf32>
    %267 = arith.addf %262, %266 : vector<16x256xf32>
    %c255_i32_173 = arith.constant 255 : i32
    %268 = tpu.dynamic_rotate %227 by %c255_i32_173 dim 1 : vector<16x256xf32>, i32 -> vector<16x256xf32>
    %c5_174 = arith.constant 5 : index
    %c0_175 = arith.constant 0 : index
    %269 = vector.load %arg5[%c5_174, %c0_175] : memref<9x256xf32, #tpu.memory_space<vmem>>, vector<1x256xf32>
    %270 = vector.broadcast %269 : vector<1x256xf32> to vector<16x256xf32>
    %271 = arith.mulf %268, %270 : vector<16x256xf32>
    %c5_176 = arith.constant 5 : index
    %c0_177 = arith.constant 0 : index
    %c0_178 = arith.constant 0 : index
    %272 = vector.load %arg10[%c5_176, %c0_177, %c0_178] : memref<9x16x16xbf16, #tpu.memory_space<vmem>>, vector<1x16x16xbf16>
    %273 = vector.shape_cast %272 : vector<1x16x16xbf16> to vector<16x16xbf16>
    %274 = arith.truncf %271 : vector<16x256xf32> to vector<16x256xbf16>
    %cst_179 = arith.constant dense<0.000000e+00> : vector<16x256xf32>
    %275 = tpu.matmul %273, %274, %cst_179 {dimension_numbers = #tpu.dot_dimension_numbers<[1], [0], [0], [1], [0, 0, 1, 1], [], []>} : vector<16x16xbf16>, vector<16x256xbf16>, vector<16x256xf32> -> vector<16x256xf32>
    %276 = arith.addf %267, %275 : vector<16x256xf32>
    %c241_i32_180 = arith.constant 241 : i32
    %277 = tpu.dynamic_rotate %227 by %c241_i32_180 dim 1 : vector<16x256xf32>, i32 -> vector<16x256xf32>
    %c6_181 = arith.constant 6 : index
    %c0_182 = arith.constant 0 : index
    %278 = vector.load %arg5[%c6_181, %c0_182] : memref<9x256xf32, #tpu.memory_space<vmem>>, vector<1x256xf32>
    %279 = vector.broadcast %278 : vector<1x256xf32> to vector<16x256xf32>
    %280 = arith.mulf %277, %279 : vector<16x256xf32>
    %c6_183 = arith.constant 6 : index
    %c0_184 = arith.constant 0 : index
    %c0_185 = arith.constant 0 : index
    %281 = vector.load %arg10[%c6_183, %c0_184, %c0_185] : memref<9x16x16xbf16, #tpu.memory_space<vmem>>, vector<1x16x16xbf16>
    %282 = vector.shape_cast %281 : vector<1x16x16xbf16> to vector<16x16xbf16>
    %283 = arith.truncf %280 : vector<16x256xf32> to vector<16x256xbf16>
    %cst_186 = arith.constant dense<0.000000e+00> : vector<16x256xf32>
    %284 = tpu.matmul %282, %283, %cst_186 {dimension_numbers = #tpu.dot_dimension_numbers<[1], [0], [0], [1], [0, 0, 1, 1], [], []>} : vector<16x16xbf16>, vector<16x256xbf16>, vector<16x256xf32> -> vector<16x256xf32>
    %285 = arith.addf %276, %284 : vector<16x256xf32>
    %c240_i32_187 = arith.constant 240 : i32
    %286 = tpu.dynamic_rotate %227 by %c240_i32_187 dim 1 : vector<16x256xf32>, i32 -> vector<16x256xf32>
    %c7_188 = arith.constant 7 : index
    %c0_189 = arith.constant 0 : index
    %287 = vector.load %arg5[%c7_188, %c0_189] : memref<9x256xf32, #tpu.memory_space<vmem>>, vector<1x256xf32>
    %288 = vector.broadcast %287 : vector<1x256xf32> to vector<16x256xf32>
    %289 = arith.mulf %286, %288 : vector<16x256xf32>
    %c7_190 = arith.constant 7 : index
    %c0_191 = arith.constant 0 : index
    %c0_192 = arith.constant 0 : index
    %290 = vector.load %arg10[%c7_190, %c0_191, %c0_192] : memref<9x16x16xbf16, #tpu.memory_space<vmem>>, vector<1x16x16xbf16>
    %291 = vector.shape_cast %290 : vector<1x16x16xbf16> to vector<16x16xbf16>
    %292 = arith.truncf %289 : vector<16x256xf32> to vector<16x256xbf16>
    %cst_193 = arith.constant dense<0.000000e+00> : vector<16x256xf32>
    %293 = tpu.matmul %291, %292, %cst_193 {dimension_numbers = #tpu.dot_dimension_numbers<[1], [0], [0], [1], [0, 0, 1, 1], [], []>} : vector<16x16xbf16>, vector<16x256xbf16>, vector<16x256xf32> -> vector<16x256xf32>
    %294 = arith.addf %285, %293 : vector<16x256xf32>
    %c239_i32_194 = arith.constant 239 : i32
    %295 = tpu.dynamic_rotate %227 by %c239_i32_194 dim 1 : vector<16x256xf32>, i32 -> vector<16x256xf32>
    %c8_195 = arith.constant 8 : index
    %c0_196 = arith.constant 0 : index
    %296 = vector.load %arg5[%c8_195, %c0_196] : memref<9x256xf32, #tpu.memory_space<vmem>>, vector<1x256xf32>
    %297 = vector.broadcast %296 : vector<1x256xf32> to vector<16x256xf32>
    %298 = arith.mulf %295, %297 : vector<16x256xf32>
    %c8_197 = arith.constant 8 : index
    %c0_198 = arith.constant 0 : index
    %c0_199 = arith.constant 0 : index
    %299 = vector.load %arg10[%c8_197, %c0_198, %c0_199] : memref<9x16x16xbf16, #tpu.memory_space<vmem>>, vector<1x16x16xbf16>
    %300 = vector.shape_cast %299 : vector<1x16x16xbf16> to vector<16x16xbf16>
    %301 = arith.truncf %298 : vector<16x256xf32> to vector<16x256xbf16>
    %cst_200 = arith.constant dense<0.000000e+00> : vector<16x256xf32>
    %302 = tpu.matmul %300, %301, %cst_200 {dimension_numbers = #tpu.dot_dimension_numbers<[1], [0], [0], [1], [0, 0, 1, 1], [], []>} : vector<16x16xbf16>, vector<16x256xbf16>, vector<16x256xf32> -> vector<16x256xf32>
    %303 = arith.addf %294, %302 : vector<16x256xf32>
    %c0_201 = arith.constant 0 : index
    %c0_202 = arith.constant 0 : index
    %304 = vector.load %arg11[%c0_201, %c0_202] : memref<16x1xf32, #tpu.memory_space<vmem>>, vector<16x1xf32>
    %305 = vector.broadcast %304 : vector<16x1xf32> to vector<16x256xf32>
    %306 = arith.addf %303, %305 : vector<16x256xf32>
    %cst_203 = arith.constant 0.000000e+00 : f32
    %307 = vector.broadcast %cst_203 : f32 to vector<16x256xf32>
    %308 = arith.maximumf %306, %307 : vector<16x256xf32>
    %c0_204 = arith.constant 0 : index
    %c0_205 = arith.constant 0 : index
    %309 = vector.load %arg12[%c0_204, %c0_205] : memref<1x16xbf16, #tpu.memory_space<vmem>>, vector<1x16xbf16>
    %310 = arith.truncf %308 : vector<16x256xf32> to vector<16x256xbf16>
    %cst_206 = arith.constant dense<0.000000e+00> : vector<1x256xf32>
    %311 = tpu.matmul %309, %310, %cst_206 {dimension_numbers = #tpu.dot_dimension_numbers<[1], [0], [0], [1], [0, 0, 1, 1], [], []>} : vector<1x16xbf16>, vector<16x256xbf16>, vector<1x256xf32> -> vector<1x256xf32>
    %c0_207 = arith.constant 0 : index
    %312 = memref.load %arg13[%c0_207] : memref<1xf32, #tpu.memory_space<smem>>
    %313 = vector.broadcast %312 : f32 to vector<1x256xf32>
    %314 = arith.addf %311, %313 : vector<1x256xf32>
    %315 = arith.negf %314 : vector<1x256xf32>
    %316 = math.exp %315 : vector<1x256xf32>
    %cst_208 = arith.constant 1.000000e+00 : f32
    %317 = vector.broadcast %cst_208 : f32 to vector<1x256xf32>
    %318 = arith.addf %317, %316 : vector<1x256xf32>
    %319 = arith.divf %317, %318 : vector<1x256xf32>
    %320 = vector.broadcast %319 : vector<1x256xf32> to vector<8x256xf32>
    %321 = arith.mulf %47, %320 : vector<8x256xf32>
    %c0_i32 = arith.constant 0 : i32
    %322 = arith.cmpi eq, %arg1, %c0_i32 : i32
    %323 = arith.extui %322 : i1 to i32
    %c0_i32_209 = arith.constant 0 : i32
    %324 = arith.cmpi ne, %323, %c0_i32_209 : i32
    scf.if %324 {
      %c0_214 = arith.constant 0 : index
      %c0_215 = arith.constant 0 : index
      %331 = vector.load %arg23[%c0_214, %c0_215] : memref<8x256xf32, #tpu.memory_space<vmem>>, vector<8x256xf32>
      tpu.vector_store %arg23[%c0_214, %c0_215], %321 {strides = array<i32>} : memref<8x256xf32, #tpu.memory_space<vmem>>, vector<8x256xf32>,
      %c0_216 = arith.constant 0 : index
      %c0_217 = arith.constant 0 : index
      %332 = vector.load %arg24[%c0_216, %c0_217] : memref<1x256xf32, #tpu.memory_space<vmem>>, vector<1x256xf32>
      tpu.vector_store %arg24[%c0_216, %c0_217], %319 {strides = array<i32>} : memref<1x256xf32, #tpu.memory_space<vmem>>, vector<1x256xf32>,
    } else {
    }
    %c0_i32_210 = arith.constant 0 : i32
    %325 = arith.cmpi sgt, %arg1, %c0_i32_210 : i32
    %326 = arith.extui %325 : i1 to i32
    %c0_i32_211 = arith.constant 0 : i32
    %327 = arith.cmpi ne, %326, %c0_i32_211 : i32
    scf.if %327 {
      %c0_214 = arith.constant 0 : index
      %c0_215 = arith.constant 0 : index
      %331 = vector.load %arg23[%c0_214, %c0_215] : memref<8x256xf32, #tpu.memory_space<vmem>>, vector<8x256xf32>
      %332 = arith.addf %331, %321 : vector<8x256xf32>
      %c0_216 = arith.constant 0 : index
      %c0_217 = arith.constant 0 : index
      %333 = vector.load %arg23[%c0_216, %c0_217] : memref<8x256xf32, #tpu.memory_space<vmem>>, vector<8x256xf32>
      tpu.vector_store %arg23[%c0_216, %c0_217], %332 {strides = array<i32>} : memref<8x256xf32, #tpu.memory_space<vmem>>, vector<8x256xf32>,
      %c0_218 = arith.constant 0 : index
      %c0_219 = arith.constant 0 : index
      %334 = vector.load %arg24[%c0_218, %c0_219] : memref<1x256xf32, #tpu.memory_space<vmem>>, vector<1x256xf32>
      %335 = arith.addf %334, %319 : vector<1x256xf32>
      %c0_220 = arith.constant 0 : index
      %c0_221 = arith.constant 0 : index
      %336 = vector.load %arg24[%c0_220, %c0_221] : memref<1x256xf32, #tpu.memory_space<vmem>>, vector<1x256xf32>
      tpu.vector_store %arg24[%c0_220, %c0_221], %335 {strides = array<i32>} : memref<1x256xf32, #tpu.memory_space<vmem>>, vector<1x256xf32>,
    } else {
    }
    %c1_i32_212 = arith.constant 1 : i32
    %328 = arith.cmpi eq, %arg1, %c1_i32_212 : i32
    %329 = arith.extui %328 : i1 to i32
    %c0_i32_213 = arith.constant 0 : i32
    %330 = arith.cmpi ne, %329, %c0_i32_213 : i32
    scf.if %330 {
      %c0_214 = arith.constant 0 : index
      %c0_215 = arith.constant 0 : index
      %331 = vector.load %arg23[%c0_214, %c0_215] : memref<8x256xf32, #tpu.memory_space<vmem>>, vector<8x256xf32>
      %c0_216 = arith.constant 0 : index
      %c0_217 = arith.constant 0 : index
      %332 = vector.load %arg24[%c0_216, %c0_217] : memref<1x256xf32, #tpu.memory_space<vmem>>, vector<1x256xf32>
      %cst_218 = arith.constant 9.99999997E-7 : f32
      %333 = vector.broadcast %cst_218 : f32 to vector<1x256xf32>
      %334 = arith.addf %332, %333 : vector<1x256xf32>
      %335 = vector.broadcast %334 : vector<1x256xf32> to vector<8x256xf32>
      %336 = arith.divf %331, %335 : vector<8x256xf32>
      %c0_219 = arith.constant 0 : index
      %337 = memref.load %arg15[%c0_219] : memref<1xf32, #tpu.memory_space<smem>>
      %338 = vector.broadcast %337 : f32 to vector<8x256xf32>
      %339 = arith.addf %336, %338 : vector<8x256xf32>
      %cst_220 = arith.constant dense<0xFF800000> : vector<256xf32>
      %340 = vector.multi_reduction <maximumf>, %339, %cst_220 [0] : vector<8x256xf32> to vector<256xf32>
      %341 = vector.shape_cast %340 : vector<256xf32> to vector<1x256xf32>
      %342 = vector.broadcast %341 : vector<1x256xf32> to vector<8x256xf32>
      %343 = arith.subf %339, %342 : vector<8x256xf32>
      %344 = math.exp %343 : vector<8x256xf32>
      %cst_221 = arith.constant dense<0.000000e+00> : vector<256xf32>
      %345 = vector.multi_reduction <add>, %344, %cst_221 [0] : vector<8x256xf32> to vector<256xf32>
      %346 = vector.shape_cast %345 : vector<256xf32> to vector<1x256xf32>
      %347 = vector.broadcast %346 : vector<1x256xf32> to vector<8x256xf32>
      %348 = arith.divf %344, %347 : vector<8x256xf32>
      %c0_222 = arith.constant 0 : index
      %c0_223 = arith.constant 0 : index
      %c0_224 = arith.constant 0 : index
      %349 = vector.load %arg19[%c0_222, %c0_223, %c0_224] : memref<1x8x256xf32, #tpu.memory_space<vmem>>, vector<1x8x256xf32>
      %350 = vector.shape_cast %349 : vector<1x8x256xf32> to vector<8x256xf32>
      %351 = vector.shape_cast %348 : vector<8x256xf32> to vector<1x8x256xf32>
      tpu.vector_store %arg19[%c0_222, %c0_223, %c0_224], %351 {strides = array<i32>} : memref<1x8x256xf32, #tpu.memory_space<vmem>>, vector<1x8x256xf32>,
      %cst_225 = arith.constant dense<0xFF800000> : vector<256xf32>
      %352 = vector.multi_reduction <maximumf>, %348, %cst_225 [0] : vector<8x256xf32> to vector<256xf32>
      %353 = vector.shape_cast %352 : vector<256xf32> to vector<1x256xf32>
      %c0_226 = arith.constant 0 : index
      %c0_227 = arith.constant 0 : index
      %c0_228 = arith.constant 0 : index
      %354 = vector.load %arg21[%c0_226, %c0_227, %c0_228] : memref<1x1x256xf32, #tpu.memory_space<vmem>>, vector<1x1x256xf32>
      %355 = vector.shape_cast %354 : vector<1x1x256xf32> to vector<1x256xf32>
      %356 = vector.shape_cast %353 : vector<1x256xf32> to vector<1x1x256xf32>
      tpu.vector_store %arg21[%c0_226, %c0_227, %c0_228], %356 {strides = array<i32>} : memref<1x1x256xf32, #tpu.memory_space<vmem>>, vector<1x1x256xf32>,
      %c0_229 = arith.constant 0 : index
      %c0_230 = arith.constant 0 : index
      %c0_231 = arith.constant 0 : index
      %357 = vector.load %arg18[%c0_229, %c0_230, %c0_231] : memref<1x8x1xf32, #tpu.memory_space<vmem>>, vector<1x8x1xf32>
      %358 = vector.shape_cast %357 : vector<1x8x1xf32> to vector<8x1xf32>
      %359 = vector.broadcast %358 : vector<8x1xf32> to vector<8x256xf32>
      %360 = arith.mulf %348, %359 : vector<8x256xf32>
      %cst_232 = arith.constant dense<0.000000e+00> : vector<256xf32>
      %361 = vector.multi_reduction <add>, %360, %cst_232 [0] : vector<8x256xf32> to vector<256xf32>
      %362 = vector.shape_cast %361 : vector<256xf32> to vector<1x256xf32>
      %c0_233 = arith.constant 0 : index
      %c0_234 = arith.constant 0 : index
      %c0_235 = arith.constant 0 : index
      %363 = vector.load %arg20[%c0_233, %c0_234, %c0_235] : memref<1x1x256xf32, #tpu.memory_space<vmem>>, vector<1x1x256xf32>
      %364 = vector.shape_cast %363 : vector<1x1x256xf32> to vector<1x256xf32>
      %365 = vector.shape_cast %362 : vector<1x256xf32> to vector<1x1x256xf32>
      tpu.vector_store %arg20[%c0_233, %c0_234, %c0_235], %365 {strides = array<i32>} : memref<1x1x256xf32, #tpu.memory_space<vmem>>, vector<1x1x256xf32>,
      %c0_236 = arith.constant 0 : index
      %c0_237 = arith.constant 0 : index
      %366 = vector.load %arg16[%c0_236, %c0_237] : memref<8x1xf32, #tpu.memory_space<vmem>>, vector<8x1xf32>
      %367 = vector.broadcast %366 : vector<8x1xf32> to vector<8x256xf32>
      %368 = arith.mulf %348, %367 : vector<8x256xf32>
      %cst_238 = arith.constant dense<0.000000e+00> : vector<256xf32>
      %369 = vector.multi_reduction <add>, %368, %cst_238 [0] : vector<8x256xf32> to vector<256xf32>
      %370 = vector.shape_cast %369 : vector<256xf32> to vector<1x256xf32>
      %c0_239 = arith.constant 0 : index
      %371 = memref.load %arg17[%c0_239] : memref<1xf32, #tpu.memory_space<smem>>
      %372 = vector.broadcast %371 : f32 to vector<1x256xf32>
      %373 = arith.addf %370, %372 : vector<1x256xf32>
      %374 = arith.negf %373 : vector<1x256xf32>
      %375 = math.exp %374 : vector<1x256xf32>
      %cst_240 = arith.constant 1.000000e+00 : f32
      %376 = vector.broadcast %cst_240 : f32 to vector<1x256xf32>
      %377 = arith.addf %376, %375 : vector<1x256xf32>
      %378 = arith.divf %376, %377 : vector<1x256xf32>
      %c0_241 = arith.constant 0 : index
      %c0_242 = arith.constant 0 : index
      %c0_243 = arith.constant 0 : index
      %379 = vector.load %arg22[%c0_241, %c0_242, %c0_243] : memref<1x1x256xf32, #tpu.memory_space<vmem>>, vector<1x1x256xf32>
      %380 = vector.shape_cast %379 : vector<1x1x256xf32> to vector<1x256xf32>
      %381 = vector.shape_cast %378 : vector<1x256xf32> to vector<1x1x256xf32>
      tpu.vector_store %arg22[%c0_241, %c0_242, %c0_243], %381 {strides = array<i32>} : memref<1x1x256xf32, #tpu.memory_space<vmem>>, vector<1x1x256xf32>,
    } else {
    }
    return
  }
  func.func @transform_0(%arg0: i32, %arg1: i32) -> (i32, i32, i32, i32) {
    %c0_i32 = arith.constant 0 : i32
    %c0_i32_0 = arith.constant 0 : i32
    %c0_i32_1 = arith.constant 0 : i32
    return %arg1, %arg0, %c0_i32, %c0_i32_0 : i32, i32, i32, i32
  }
  func.func @transform_1(%arg0: i32, %arg1: i32) -> (i32, i32, i32, i32, i32) {
    %c0_i32 = arith.constant 0 : i32
    %c0_i32_0 = arith.constant 0 : i32
    %c0_i32_1 = arith.constant 0 : i32
    %c0_i32_2 = arith.constant 0 : i32
    return %arg1, %arg0, %c0_i32, %c0_i32_0, %c0_i32_1 : i32, i32, i32, i32, i32
  }
  func.func @transform_2(%arg0: i32, %arg1: i32) -> (i32, i32, i32, i32) {
    %c0_i32 = arith.constant 0 : i32
    %c0_i32_0 = arith.constant 0 : i32
    %c0_i32_1 = arith.constant 0 : i32
    return %arg1, %arg0, %c0_i32, %c0_i32_0 : i32, i32, i32, i32
  }
  func.func @transform_3(%arg0: i32, %arg1: i32) -> (i32, i32) {
    %c0_i32 = arith.constant 0 : i32
    %c0_i32_0 = arith.constant 0 : i32
    %c0_i32_1 = arith.constant 0 : i32
    return %c0_i32, %c0_i32_0 : i32, i32
  }
  func.func @transform_4(%arg0: i32, %arg1: i32) -> (i32, i32, i32) {
    %c0_i32 = arith.constant 0 : i32
    %c0_i32_0 = arith.constant 0 : i32
    %c0_i32_1 = arith.constant 0 : i32
    %c0_i32_2 = arith.constant 0 : i32
    return %c0_i32, %c0_i32_0, %c0_i32_1 : i32, i32, i32
  }
  func.func @transform_5(%arg0: i32, %arg1: i32) -> (i32, i32) {
    %c0_i32 = arith.constant 0 : i32
    %c0_i32_0 = arith.constant 0 : i32
    %c0_i32_1 = arith.constant 0 : i32
    return %c0_i32, %c0_i32_0 : i32, i32
  }
  func.func @transform_6(%arg0: i32, %arg1: i32) -> (i32, i32, i32) {
    %c0_i32 = arith.constant 0 : i32
    %c0_i32_0 = arith.constant 0 : i32
    %c0_i32_1 = arith.constant 0 : i32
    %c0_i32_2 = arith.constant 0 : i32
    return %c0_i32, %c0_i32_0, %c0_i32_1 : i32, i32, i32
  }
  func.func @transform_7(%arg0: i32, %arg1: i32) -> (i32, i32) {
    %c0_i32 = arith.constant 0 : i32
    %c0_i32_0 = arith.constant 0 : i32
    %c0_i32_1 = arith.constant 0 : i32
    return %c0_i32, %c0_i32_0 : i32, i32
  }
  func.func @transform_8(%arg0: i32, %arg1: i32) -> (i32, i32, i32) {
    %c0_i32 = arith.constant 0 : i32
    %c0_i32_0 = arith.constant 0 : i32
    %c0_i32_1 = arith.constant 0 : i32
    %c0_i32_2 = arith.constant 0 : i32
    return %c0_i32, %c0_i32_0, %c0_i32_1 : i32, i32, i32
  }
  func.func @transform_9(%arg0: i32, %arg1: i32) -> (i32, i32) {
    %c0_i32 = arith.constant 0 : i32
    %c0_i32_0 = arith.constant 0 : i32
    %c0_i32_1 = arith.constant 0 : i32
    return %c0_i32, %c0_i32_0 : i32, i32
  }
  func.func @transform_10(%arg0: i32, %arg1: i32) -> (i32, i32) {
    %c0_i32 = arith.constant 0 : i32
    %c0_i32_0 = arith.constant 0 : i32
    %c0_i32_1 = arith.constant 0 : i32
    return %c0_i32, %c0_i32_0 : i32, i32
  }
  func.func @transform_11(%arg0: i32, %arg1: i32) -> i32 {
    %c0_i32 = arith.constant 0 : i32
    %c0_i32_0 = arith.constant 0 : i32
    return %c0_i32 : i32
  }
  func.func @transform_12(%arg0: i32, %arg1: i32) -> (i32, i32) {
    %c0_i32 = arith.constant 0 : i32
    %c0_i32_0 = arith.constant 0 : i32
    %c0_i32_1 = arith.constant 0 : i32
    return %c0_i32, %c0_i32_0 : i32, i32
  }
  func.func @transform_13(%arg0: i32, %arg1: i32) -> i32 {
    %c0_i32 = arith.constant 0 : i32
    %c0_i32_0 = arith.constant 0 : i32
    return %c0_i32 : i32
  }
  func.func @transform_14(%arg0: i32, %arg1: i32) -> (i32, i32) {
    %c0_i32 = arith.constant 0 : i32
    %c0_i32_0 = arith.constant 0 : i32
    %c0_i32_1 = arith.constant 0 : i32
    return %c0_i32, %c0_i32_0 : i32, i32
  }
  func.func @transform_15(%arg0: i32, %arg1: i32) -> i32 {
    %c0_i32 = arith.constant 0 : i32
    %c0_i32_0 = arith.constant 0 : i32
    return %c0_i32 : i32
  }
  func.func @transform_16(%arg0: i32, %arg1: i32) -> (i32, i32, i32) {
    %c0_i32 = arith.constant 0 : i32
    %c0_i32_0 = arith.constant 0 : i32
    %c0_i32_1 = arith.constant 0 : i32
    return %arg0, %c0_i32, %c0_i32_0 : i32, i32, i32
  }
  func.func @transform_17(%arg0: i32, %arg1: i32) -> (i32, i32, i32) {
    %c0_i32 = arith.constant 0 : i32
    %c0_i32_0 = arith.constant 0 : i32
    %c0_i32_1 = arith.constant 0 : i32
    return %arg0, %c0_i32, %c0_i32_0 : i32, i32, i32
  }
  func.func @transform_18(%arg0: i32, %arg1: i32) -> (i32, i32, i32) {
    %c0_i32 = arith.constant 0 : i32
    %c0_i32_0 = arith.constant 0 : i32
    %c0_i32_1 = arith.constant 0 : i32
    return %arg0, %c0_i32, %c0_i32_0 : i32, i32, i32
  }
  func.func @transform_19(%arg0: i32, %arg1: i32) -> (i32, i32, i32) {
    %c0_i32 = arith.constant 0 : i32
    %c0_i32_0 = arith.constant 0 : i32
    %c0_i32_1 = arith.constant 0 : i32
    return %arg0, %c0_i32, %c0_i32_0 : i32, i32, i32
  }
  func.func @transform_20(%arg0: i32, %arg1: i32) -> (i32, i32, i32) {
    %c0_i32 = arith.constant 0 : i32
    %c0_i32_0 = arith.constant 0 : i32
    %c0_i32_1 = arith.constant 0 : i32
    return %arg0, %c0_i32, %c0_i32_0 : i32, i32, i32
  }
}

</mosaic_0001>

<llo_original>
// kernel: custom-call.11
$region0: #{custom-call.11}
  %s0 = inlined_call_operand.vmem [shape: f32[4,4,4], index: 0, kind: input, shape index: {}]
  %s1 = inlined_call_operand.vmem [shape: f32[4,4,4], index: 1, kind: output, shape index: {0}]
  %s2 = inlined_call_operand.hbm [shape: s32[4,4], index: 2, kind: output, shape index: {1}]
  %s3 = inlined_call_operand.vmem [shape: s32[4,4], index: 3, kind: output, shape index: {2}]
  %4 = xla_tuple %s1, %s2, %s3
  $region1: #{custom-call.11} parent=0
    #allocation0 [shape = 'u8[4096]{0}', space=vmem, size = 0x1000, scoped, tag = 'operand span for operand 0']
    #allocation1 [shape = 'u8[4096]{0}', space=vmem, size = 0x1000, scoped, tag = 'packed  for operand 0']
    #allocation2 [shape = 'u8[4096]{0}', space=vmem, size = 0x1000, scoped, tag = 'operand span for operand 1']
    #allocation3 [shape = 'u8[4096]{0}', space=vmem, size = 0x1000, scoped, tag = 'packed  for operand 1']
    #allocation4 [shape = 'u8[4096]{0}', space=vmem, size = 0x1000, scoped, tag = 'operand span for operand 2']
    #allocation5 [shape = 'u8[4096]{0}', space=vmem, size = 0x1000, scoped, tag = 'packed  for operand 2']
    #allocation6 [shape = 's32[2]{0}', space=sflag, size = 0x8, scoped, tag = 'scoped memory for custom-call.11']
    #allocation7 [shape = 'u8[4096]{0}', space=vmem, size = 0x1000, scoped, tag = 'operand span for operand 3']
    #allocation8 [shape = 'u8[4096]{0}', space=vmem, size = 0x1000, scoped, tag = 'packed  for operand 3']
    %5 = vsyncpa [#allocation6], 0
    %s6 = scalar_lea.sflag [#allocation6], 1
    %7 = vsyncpa %s6, 0
    loop: start=0, step=1, limit=6
    $region2: #{custom-call.11} parent=1 // loop_pre_header
      _
    $region3: #{custom-call.11} parent=1 // loop_header
      %s9 = sphi 0, %s13
      %p10 = scmp.ge.s32.totalorder %s9, 6
      %s21 = sphi 0, %s23
      %s24 = sphi 0, %s21
      %s25 = sphi 0, %s24
      %s41 = sphi 0, %s25
      %s49 = sphi 0, %s51
      %s52 = sphi 0, %s49
      %s53 = sphi 0, %s52
      %s69 = sphi 0, %s53
    $region4: #{custom-call.11} parent=1 // loop_header_branch
      %12 = sbr.rel (%p10) target = $region8
    $region5: #{custom-call.11} parent=1 // loop_body
      %s14 = ssub.s32 %s9, 1
      %s15 = ssub.s32 %s9, 2
      %s16 = sadd.s32 %s9, 1
      %s17 = sshrl.u32 %s9, 3
      %s18 = sshrl.u32 %s16, 3
      %s19 = ssub.s32 %s17, %s18
      %p20 = scmp.eq.s32.totalorder %s19, 0
      %s22 = sadd.s32 %s21, 1
      %s23 = scalar_select %p20, %s21, %s22
      %p26 = pneg %p20
      %p27 = scmp.eq.s32.totalorder %s9, 3
      %p28 = por %p26, %p27
      %p29 = scmp.ne.s32.totalorder %s21, %s24
      %p30 = scmp.eq.s32.totalorder %s9, 0
      %p31 = por %p29, %p30
      %p32 = scmp.ne.s32.totalorder %s21, %s24
      %p33 = scmp.eq.s32.totalorder %s14, 3
      %p34 = por %p32, %p33
      %p35 = scmp.ne.s32.totalorder %s24, %s25
      %p36 = scmp.eq.s32.totalorder %s14, 0
      %p37 = por %p35, %p36
      %p38 = scmp.ne.s32.totalorder %s24, %s25
      %p39 = scmp.eq.s32.totalorder %s15, 3
      %p40 = por %p38, %p39
      %p42 = scmp.ne.s32.totalorder %s25, %s41
      %p43 = scmp.eq.s32.totalorder %s15, 0
      %p44 = por %p42, %p43
      %s45 = sshrl.u32 %s9, 3
      %s46 = sshrl.u32 %s16, 3
      %s47 = ssub.s32 %s45, %s46
      %p48 = scmp.eq.s32.totalorder %s47, 0
      %s50 = sadd.s32 %s49, 1
      %s51 = scalar_select %p48, %s49, %s50
      %p54 = pneg %p48
      %p55 = scmp.eq.s32.totalorder %s9, 3
      %p56 = por %p54, %p55
      %p57 = scmp.ne.s32.totalorder %s49, %s52
      %p58 = scmp.eq.s32.totalorder %s9, 0
      %p59 = por %p57, %p58
      %p60 = scmp.ne.s32.totalorder %s49, %s52
      %p61 = scmp.eq.s32.totalorder %s14, 3
      %p62 = por %p60, %p61
      %p63 = scmp.ne.s32.totalorder %s52, %s53
      %p64 = scmp.eq.s32.totalorder %s14, 0
      %p65 = por %p63, %p64
      %p66 = scmp.ne.s32.totalorder %s52, %s53
      %p67 = scmp.eq.s32.totalorder %s15, 3
      %p68 = por %p66, %p67
      %p70 = scmp.ne.s32.totalorder %s53, %s69
      %p71 = scmp.eq.s32.totalorder %s15, 0
      %p72 = por %p70, %p71
      %p73 = scmp.le.s32.totalorder 1, %s9
      %p74 = scmp.lt.s32.totalorder %s9, 5
      %p75 = pnand %p73, %p74
      %p76 = pneg %p75
      // Predicated region
      $region9: #{custom-call.11} parent=5 // pred_check
        _
      $region10: #{custom-call.11} parent=5 // pred_check_branch
        %78 = sbr.rel (%p75) target = $region12
      $region11: #{custom-call.11} parent=5 // pred_region
        %s79 = ssub.s32 %s9, 1
      $region12: #{custom-call.11} parent=5 // pred_fallthru
        _
      %p80 = scmp.lt.s32.totalorder %s9, 4
      // Predicated region
      $region13: #{custom-call.11} parent=5 // pred_check
        %p81 = pneg %p80
      $region14: #{custom-call.11} parent=5 // pred_check_branch
        %83 = sbr.rel (%p81) target = $region16
      $region15: #{custom-call.11} parent=5 // pred_region
        %s84 = sand.u32 %s9, 1
        %s85 = sand.u32 %s9, 1
        %s86 = smul.addr %s85, 4
        %s87 = scalar_lea.vmem [#allocation1], %s86
        %s88 = smul.addr %s9, 4
        %s89 = scalar_lea.vmem %s0, %s88
        // Predicated region
        $region17: #{custom-call.11} parent=15 // pred_check
          _
        $region18: #{custom-call.11} parent=15 // pred_check_branch
          %91 = sbr.rel (0) target = $region20
        $region19: #{custom-call.11} parent=15 // pred_region
          // Predicated region
          $region21: #{custom-call.11} parent=19 // pred_check
            _
          $region22: #{custom-call.11} parent=19 // pred_check_branch
            %93 = sbr.rel target = $region24
          $region23: #{custom-call.11} parent=19 // pred_region
            // Predicated region
            $region36: #{custom-call.11} parent=23 // pred_check
              _
            $region37: #{custom-call.11} parent=23 // pred_check_branch
              %108 = sbr.rel (0) target = $region39
            $region38: #{custom-call.11} parent=23 // pred_region
              loop: start=0, step=1, limit=1
              $region40: #{custom-call.11} parent=38 // loop_pre_header
                _
              $region41: #{custom-call.11} parent=38 // loop_header
                %s111 = sphi 0, %s115
                %p112 = scmp.ge.s32.totalorder %s111, 1
                %s116 = sphi %s89, %s89
                %s117 = sphi %s87, %s87
              $region42: #{custom-call.11} parent=38 // loop_header_branch
                %114 = sbr.rel (%p112) target = $region46
              $region43: #{custom-call.11} parent=38 // loop_body
                %v118 = vld [vmem:[%s116] sm:$0xf]
                %119 = vst [vmem:[%s117] sm:$0xf] %v118
              $region44: #{custom-call.11} parent=38 // loop_footer
                %s115 = sadd.s32 1, %s111
              $region45: #{custom-call.11} parent=38 // loop_footer_branch
                %110 = sbr.rel target = $region41
              $region46: #{custom-call.11} parent=38 // loop_exit
                _
            $region39: #{custom-call.11} parent=23 // pred_fallthru
              _
          $region24: #{custom-call.11} parent=19 // pred_fallthru
            _
          // Predicated region
          $region25: #{custom-call.11} parent=19 // pred_check
            _
          $region26: #{custom-call.11} parent=19 // pred_check_branch
            %95 = sbr.rel (0) target = $region28
          $region27: #{custom-call.11} parent=19 // pred_region
            loop: start=0, step=1, limit=1
            $region29: #{custom-call.11} parent=27 // loop_pre_header
              _
            $region30: #{custom-call.11} parent=27 // loop_header
              %s98 = sphi 0, %s102
              %p99 = scmp.ge.s32.totalorder %s98, 1
              %s103 = sphi %s89, %s89
              %s104 = sphi %s87, %s87
            $region31: #{custom-call.11} parent=27 // loop_header_branch
              %101 = sbr.rel (%p99) target = $region35
            $region32: #{custom-call.11} parent=27 // loop_body
              %v105 = vld [vmem:[%s103] sm:$0xf]
              %106 = vst [vmem:[%s104] sm:$0xf] %v105
            $region33: #{custom-call.11} parent=27 // loop_footer
              %s102 = sadd.s32 1, %s98
            $region34: #{custom-call.11} parent=27 // loop_footer_branch
              %97 = sbr.rel target = $region30
            $region35: #{custom-call.11} parent=27 // loop_exit
              _
          $region28: #{custom-call.11} parent=19 // pred_fallthru
            _
        $region20: #{custom-call.11} parent=15 // pred_fallthru
          _
        %120 = vnop
      $region16: #{custom-call.11} parent=5 // pred_fallthru
        _
      %p121 = scmp.le.s32.totalorder 1, %s9
      %p122 = scmp.lt.s32.totalorder %s9, 5
      %p123 = pnand %p121, %p122
      %p124 = pneg %p123
      // Predicated region
      $region47: #{custom-call.11} parent=5 // pred_check
        _
      $region48: #{custom-call.11} parent=5 // pred_check_branch
        %126 = sbr.rel (%p123) target = $region50
      $region49: #{custom-call.11} parent=5 // pred_region
        #allocation9 [shape = 's32[4,128]{1,0}', space=vmem, size = 0x1000, scoped, tag = 'scratch for permutations']
        %s127 = ssub.s32 %s9, 1
        %s128 = sand.u32 %s14, 1
        %s129 = sand.u32 %s14, 1
        %s130 = smul.addr %s129, 4
        %s131 = scalar_lea.vmem [#allocation1], %s130
        %s132 = sand.u32 %s14, 1
        %s133 = sand.u32 %s14, 1
        %s134 = smul.addr %s133, 4
        %s135 = scalar_lea.vmem [#allocation1], %s134
        %s136 = sand.u32 %s14, 1
        %s137 = sand.u32 %s14, 1
        %s138 = smul.addr %s137, 4
        %s139 = scalar_lea.vmem [#allocation3], %s138
        %p140 = pneg %p37
        %p141 = pneg %p34
        %s142 = sand.u32 %s24, 1
        %s143 = scalar_lea.sflag [#allocation6], %s142
        %s144 = sand.u32 %s24, 1
        %s145 = smul.addr %s144, 4
        %s146 = scalar_lea.vmem [#allocation5], %s145
        %p147 = pneg %p65
        %p148 = pneg %p62
        %s149 = sand.u32 %s52, 1
        %s150 = sand.u32 %s52, 1
        %s151 = smul.addr %s150, 4
        %s152 = scalar_lea.vmem [#allocation8], %s151
        %s154 = sshllo.u32 0, 4
        %v155 = vld [vmem:[%s135] sm:%s154]
        %156 = vst [vmem:[#allocation0] sm:%s154] %v155
        %s157 = sshrl.u32 %s14, 3
        %s158 = sshrl.u32 %s14, 3
        %v159 = vld [vmem:[#allocation0] sm:$0xff]
        %160 = vst [vmem:[#allocation2] sm:$0xff] %v159
        %s161 = sand.u32 %s14, 7
        %s162 = scalar_lea.vmem [#allocation4], %s161
        %s163 = sand.u32 %s14, 7
        %s164 = scalar_lea.vmem [#allocation7], %s163
        %165 = vst [vmem:[%s162] sm:$0x1] 0
        %v166 = vlaneseq
        %v167 = vshrl.u32 %v166, 7
        %v168 = vmov %v167
        %170 = vst [vmem:[#allocation9] sm:$0xff] %v168
        loop: start=0, step=1, limit=4
        $region52: #{custom-call.11} parent=49 // loop_pre_header
          _
        $region53: #{custom-call.11} parent=49 // loop_header
          %s172 = sphi 0, %s176
          %p173 = scmp.ge.s32.totalorder %s172, 4
        $region54: #{custom-call.11} parent=49 // loop_header_branch
          %175 = sbr.rel (%p173) target = $region58
        $region55: #{custom-call.11} parent=49 // loop_body
          %v177 = vstv %s172
          %v178 = vlaneseq
          %v179 = vshrl.u32 %v178, 7
          %v180 = vmov %v179
          %v181 = vld [vmem:[#allocation2] sm:$0xff]
          %v182 = vand.u32 2147483647, %v181
          %v184 = vstv %s172
          %vm185 = vcmp.ge.s32.totalorder %v180, %v184
          %vm186 = vcmp.lt.s32.totalorder %v180, 4
          %vm187 = vmand %vm185, %vm186
          %vm188 = vcmp.lt.f32.partialorder -inf, %v182
          %vm189 = vmand %vm187, %vm188
          %v190 = vsel %vm189, %v180, %v177
          %v191 = vsel %vm189, %v182, -inf
          %v192 = vrot.slane %v191, 1
          %v193 = vrot.slane %v190, 1
          %vm194 = vcmp.ge.f32.partialorder %v192, %v191
          %v195 = vsel %vm194, %v192, %v191
          %v196 = vsel %vm194, %v193, %v190
          %v197 = vrot.slane %v192, 1
          %v198 = vrot.slane %v193, 1
          %vm199 = vcmp.ge.f32.partialorder %v197, %v195
          %v200 = vsel %vm199, %v197, %v195
          %v201 = vsel %vm199, %v198, %v196
          %v202 = vrot.slane %v197, 1
          %v203 = vrot.slane %v198, 1
          %vm204 = vcmp.ge.f32.partialorder %v202, %v200
          %v205 = vsel %vm204, %v202, %v200
          %v206 = vsel %vm204, %v203, %v201
          %v207 = vrot.slane %v202, 1
          %v208 = vrot.slane %v203, 1
          %vm209 = vcmp.ge.f32.partialorder %v207, %v205
          %v210 = vsel %vm209, %v207, %v205
          %v211 = vsel %vm209, %v208, %v206
          %v212 = vrot.slane %v207, 1
          %v213 = vrot.slane %v208, 1
          %vm214 = vcmp.ge.f32.partialorder %v212, %v210
          %v215 = vsel %vm214, %v212, %v210
          %v216 = vsel %vm214, %v213, %v211
          %v217 = vrot.slane %v212, 1
          %v218 = vrot.slane %v213, 1
          %vm219 = vcmp.ge.f32.partialorder %v217, %v215
          %v220 = vsel %vm219, %v217, %v215
          %v221 = vsel %vm219, %v218, %v216
          %v222 = vrot.slane %v217, 1
          %v223 = vrot.slane %v218, 1
          %vm224 = vcmp.ge.f32.partialorder %v222, %v220
          %v225 = vsel %vm224, %v222, %v220
          %v226 = vsel %vm224, %v223, %v221
          %s227 = ssub.s32 128, %s172
          %228 = vrot.lane.b32.xlu0 %v226, %s227
          %v229 = vpop.permute.xlu0 %228
          %s230 = vtos %v229
          %v231 = vstv %s172
          %v232 = vlaneseq
          %v233 = vand.u32 %v232, 127
          %vm234 = vcmp.eq.s32.totalorder %v233, %v231
          %v235 = vstv %s230
          %v236 = vld [vmem:[%s162] ss:$0 sm:$0xff]
          %v237 = vsel %vm234, %v235, %v236
          %238 = vst [vmem:[%s162] sm:$0x1] %v237
          %s239 = scalar_lea.vmem [#allocation2], %s172
          %s240 = scalar_lea.vmem [#allocation2], %s230
          %v241 = vld [vmem:[%s239] ss:$0 sm:$0xff]
          %v242 = vld [vmem:[%s240] ss:$0 sm:$0xff]
          %243 = vst [vmem:[%s240] sm:$0x1] %v241
          %244 = vst [vmem:[%s239] sm:$0x1] %v242
          %s245 = scalar_lea.vmem [#allocation9], %s172
          %s246 = scalar_lea.vmem [#allocation9], %s230
          %v247 = vld [vmem:[%s245] ss:$0 sm:$0xff]
          %v248 = vld [vmem:[%s246] ss:$0 sm:$0xff]
          %249 = vst [vmem:[%s246] sm:$0x1] %v247
          %250 = vst [vmem:[%s245] sm:$0x1] %v248
          %vm251 = vcmp.ne.f32.partialorder %v242, 0.0
          %vm252 = vmand %vm234, %vm251
          %v253 = vsel %vm252, %v242, 1.0
          %v254 = vlaneseq
          %v255 = vand.u32 %v254, 127
          %v256 = vstv %s172
          %vm257 = vcmp.gt.s32.totalorder %v255, %v256
          %v258 = vsel %vm257, %v242, 0.0
          %v259 = vlaneseq
          %v260 = vshrl.u32 %v259, 7
          %v261 = vmov %v260
          %v262 = vld [vmem:[#allocation2] sm:$0xff]
          %v264 = vstv %s172
          %vm265 = vcmp.gt.s32.totalorder %v261, %v264
          %v266 = vsel %vm265, %v253, 1.0
          %v267 = vrcp.pop %v266
          %v268 = vmul.f32 %v262, %v267
          %vm269 = vmand %vm265, %vm234
          %v270 = vsel %vm269, %v268, 0.0
          %271 = vadd.xlane.f32.xlu0 %v270
          %v272 = vpop.xlane.xlu0 %271
          %v273 = vmul.f32 %v272, %v258
          %v274 = vsub.f32 %v268, %v273
          %275 = vst [vmem:[#allocation2] sm:$0xff] %v274
        $region56: #{custom-call.11} parent=49 // loop_footer
          %s176 = sadd.s32 1, %s172
        $region57: #{custom-call.11} parent=49 // loop_footer_branch
          %171 = sbr.rel target = $region53
        $region58: #{custom-call.11} parent=49 // loop_exit
          _
        %v276 = vld [vmem:[#allocation9] sm:$0xff]
        %s277 = scalar_lea.vmem [#allocation9], 8
        %s278 = scalar_lea.vmem [#allocation9], 16
        %s279 = scalar_lea.vmem [#allocation9], 24
        %s280 = scalar_lea.vmem [#allocation9], 32
        %s281 = scalar_lea.vmem [#allocation9], 40
        %s282 = scalar_lea.vmem [#allocation9], 48
        %s283 = scalar_lea.vmem [#allocation9], 56
        %s284 = scalar_lea.vmem [#allocation9], 64
        %s285 = scalar_lea.vmem [#allocation9], 72
        %s286 = scalar_lea.vmem [#allocation9], 80
        %s287 = scalar_lea.vmem [#allocation9], 88
        %s288 = scalar_lea.vmem [#allocation9], 96
        %s289 = scalar_lea.vmem [#allocation9], 104
        %s290 = scalar_lea.vmem [#allocation9], 112
        %s291 = scalar_lea.vmem [#allocation9], 120
        %292 = vxpose.xlu0.b32.start [1/16] %v276, 128
        %293 = vxpose.xlu0.b32.cont [2/16] 0, 128
        %294 = vxpose.xlu0.b32.cont [3/16] 0, 128
        %295 = vxpose.xlu0.b32.cont [4/16] 0, 128
        %296 = vxpose.xlu0.b32.cont [5/16] 0, 128
        %297 = vxpose.xlu0.b32.cont [6/16] 0, 128
        %298 = vxpose.xlu0.b32.cont [7/16] 0, 128
        %299 = vxpose.xlu0.b32.cont [8/16] 0, 128
        %300 = vxpose.xlu0.b32.cont [9/16] 0, 128
        %301 = vxpose.xlu0.b32.cont [10/16] 0, 128
        %302 = vxpose.xlu0.b32.cont [11/16] 0, 128
        %303 = vxpose.xlu0.b32.cont [12/16] 0, 128
        %304 = vxpose.xlu0.b32.cont [13/16] 0, 128
        %305 = vxpose.xlu0.b32.cont [14/16] 0, 128
        %306 = vxpose.xlu0.b32.cont [15/16] 0, 128
        %307 = vxpose.xlu0.b32.end [16/16] 0, 128
        %v308 = vpop.trf.xlu0
        %v309 = vpop.trf.xlu0
        %v310 = vpop.trf.xlu0
        %v311 = vpop.trf.xlu0
        %v312 = vpop.trf.xlu0
        %v313 = vpop.trf.xlu0
        %v314 = vpop.trf.xlu0
        %v315 = vpop.trf.xlu0
        %v316 = vpop.trf.xlu0
        %v317 = vpop.trf.xlu0
        %v318 = vpop.trf.xlu0
        %v319 = vpop.trf.xlu0
        %v320 = vpop.trf.xlu0
        %v321 = vpop.trf.xlu0
        %v322 = vpop.trf.xlu0
        %v323 = vpop.trf.xlu0
        %324 = vst [vmem:[%s164] sm:$0x1] %v308
        %s326 = sshllo.u32 0, 4
        %v328 = vld [vmem:[#allocation2] sm:%s326]
        %s329 = sshllo.u32 0, 4
        %330 = vst [vmem:[%s139] sm:%s329] %v328
        %s332 = sshllo.u32 0, 4
        %v334 = vld [vmem:[#allocation4] sm:%s332]
        %s335 = sshllo.u32 0, 4
        %336 = vst [vmem:[%s146] sm:%s335] %v334
        %s338 = sshllo.u32 0, 4
        %v340 = vld [vmem:[#allocation7] sm:%s338]
        %s341 = sshllo.u32 0, 4
        %342 = vst [vmem:[%s152] sm:%s341] %v340
        %s343 = sand.u32 %s14, 1
        %s344 = sand.u32 %s14, 1
        %s345 = smul.addr %s344, 4
        %s346 = scalar_lea.vmem [#allocation3], %s345
        %s347 = sand.u32 %s24, 1
        %s348 = scalar_lea.sflag [#allocation6], %s347
        %s349 = sand.u32 %s24, 1
        %s350 = smul.addr %s349, 4
        %s351 = scalar_lea.vmem [#allocation5], %s350
        %s352 = sand.u32 %s52, 1
        %s353 = sand.u32 %s52, 1
        %s354 = smul.addr %s353, 4
        %s355 = scalar_lea.vmem [#allocation8], %s354
        %s356 = smul.addr %s14, 4
        %s357 = scalar_lea.vmem %s1, %s356
        // Predicated region
        $region59: #{custom-call.11} parent=49 // pred_check
          _
        $region60: #{custom-call.11} parent=49 // pred_check_branch
          %359 = sbr.rel (0) target = $region62
        $region61: #{custom-call.11} parent=49 // pred_region
          // Predicated region
          $region63: #{custom-call.11} parent=61 // pred_check
            _
          $region64: #{custom-call.11} parent=61 // pred_check_branch
            %361 = sbr.rel target = $region66
          $region65: #{custom-call.11} parent=61 // pred_region
            // Predicated region
            $region78: #{custom-call.11} parent=65 // pred_check
              _
            $region79: #{custom-call.11} parent=65 // pred_check_branch
              %376 = sbr.rel (0) target = $region81
            $region80: #{custom-call.11} parent=65 // pred_region
              loop: start=0, step=1, limit=1
              $region82: #{custom-call.11} parent=80 // loop_pre_header
                _
              $region83: #{custom-call.11} parent=80 // loop_header
                %s379 = sphi 0, %s383
                %p380 = scmp.ge.s32.totalorder %s379, 1
                %s384 = sphi %s346, %s346
                %s385 = sphi %s357, %s357
              $region84: #{custom-call.11} parent=80 // loop_header_branch
                %382 = sbr.rel (%p380) target = $region88
              $region85: #{custom-call.11} parent=80 // loop_body
                %v386 = vld [vmem:[%s384] sm:$0xf]
                %387 = vst [vmem:[%s385] sm:$0xf] %v386
              $region86: #{custom-call.11} parent=80 // loop_footer
                %s383 = sadd.s32 1, %s379
              $region87: #{custom-call.11} parent=80 // loop_footer_branch
                %378 = sbr.rel target = $region83
              $region88: #{custom-call.11} parent=80 // loop_exit
                _
            $region81: #{custom-call.11} parent=65 // pred_fallthru
              _
          $region66: #{custom-call.11} parent=61 // pred_fallthru
            _
          // Predicated region
          $region67: #{custom-call.11} parent=61 // pred_check
            _
          $region68: #{custom-call.11} parent=61 // pred_check_branch
            %363 = sbr.rel (0) target = $region70
          $region69: #{custom-call.11} parent=61 // pred_region
            loop: start=0, step=1, limit=1
            $region71: #{custom-call.11} parent=69 // loop_pre_header
              _
            $region72: #{custom-call.11} parent=69 // loop_header
              %s366 = sphi 0, %s370
              %p367 = scmp.ge.s32.totalorder %s366, 1
              %s371 = sphi %s346, %s346
              %s372 = sphi %s357, %s357
            $region73: #{custom-call.11} parent=69 // loop_header_branch
              %369 = sbr.rel (%p367) target = $region77
            $region74: #{custom-call.11} parent=69 // loop_body
              %v373 = vld [vmem:[%s371] sm:$0xf]
              %374 = vst [vmem:[%s372] sm:$0xf] %v373
            $region75: #{custom-call.11} parent=69 // loop_footer
              %s370 = sadd.s32 1, %s366
            $region76: #{custom-call.11} parent=69 // loop_footer_branch
              %365 = sbr.rel target = $region72
            $region77: #{custom-call.11} parent=69 // loop_exit
              _
          $region70: #{custom-call.11} parent=61 // pred_fallthru
            _
        $region62: #{custom-call.11} parent=49 // pred_fallthru
          _
        %388 = vnop
        // Predicated region
        $region89: #{custom-call.11} parent=49 // pred_check
          %p389 = pneg %p34
        $region90: #{custom-call.11} parent=49 // pred_check_branch
          %391 = sbr.rel (%p389) target = $region92
        $region91: #{custom-call.11} parent=49 // pred_region
          %s392 = sshrl.u32 %s14, 3
          %s394 = ssub.s32 64, 64
          %395 = vsyncadd %s348, %s394
          %s396 = smul.addr %s392, 64
          %s397 = scalar_lea.hbm %s2, %s396
          %s399 = sshll.u32 %s351, 4
          %s400 = int_to_ptr.vmem [resolvable:$true] %s399
          %402 = dma.vmem_to_hbm [thread:$0]  %s400, 64, %s397, %s348
        $region92: #{custom-call.11} parent=49 // pred_fallthru
          _
        // Predicated region
        $region93: #{custom-call.11} parent=49 // pred_check
          %p403 = pneg %p62
        $region94: #{custom-call.11} parent=49 // pred_check_branch
          %405 = sbr.rel (%p403) target = $region96
        $region95: #{custom-call.11} parent=49 // pred_region
          %s406 = sshrl.u32 %s14, 3
          %s407 = smul.addr %s406, 4
          %s408 = scalar_lea.vmem %s3, %s407
          // Predicated region
          $region97: #{custom-call.11} parent=95 // pred_check
            _
          $region98: #{custom-call.11} parent=95 // pred_check_branch
            %410 = sbr.rel (0) target = $region100
          $region99: #{custom-call.11} parent=95 // pred_region
            // Predicated region
            $region101: #{custom-call.11} parent=99 // pred_check
              _
            $region102: #{custom-call.11} parent=99 // pred_check_branch
              %412 = sbr.rel target = $region104
            $region103: #{custom-call.11} parent=99 // pred_region
              // Predicated region
              $region116: #{custom-call.11} parent=103 // pred_check
                _
              $region117: #{custom-call.11} parent=103 // pred_check_branch
                %427 = sbr.rel (0) target = $region119
              $region118: #{custom-call.11} parent=103 // pred_region
                loop: start=0, step=1, limit=1
                $region120: #{custom-call.11} parent=118 // loop_pre_header
                  _
                $region121: #{custom-call.11} parent=118 // loop_header
                  %s430 = sphi 0, %s434
                  %p431 = scmp.ge.s32.totalorder %s430, 1
                  %s435 = sphi %s355, %s355
                  %s436 = sphi %s408, %s408
                $region122: #{custom-call.11} parent=118 // loop_header_branch
                  %433 = sbr.rel (%p431) target = $region126
                $region123: #{custom-call.11} parent=118 // loop_body
                  %v437 = vld [vmem:[%s435] sm:$0xf]
                  %438 = vst [vmem:[%s436] sm:$0xf] %v437
                $region124: #{custom-call.11} parent=118 // loop_footer
                  %s434 = sadd.s32 1, %s430
                $region125: #{custom-call.11} parent=118 // loop_footer_branch
                  %429 = sbr.rel target = $region121
                $region126: #{custom-call.11} parent=118 // loop_exit
                  _
              $region119: #{custom-call.11} parent=103 // pred_fallthru
                _
            $region104: #{custom-call.11} parent=99 // pred_fallthru
              _
            // Predicated region
            $region105: #{custom-call.11} parent=99 // pred_check
              _
            $region106: #{custom-call.11} parent=99 // pred_check_branch
              %414 = sbr.rel (0) target = $region108
            $region107: #{custom-call.11} parent=99 // pred_region
              loop: start=0, step=1, limit=1
              $region109: #{custom-call.11} parent=107 // loop_pre_header
                _
              $region110: #{custom-call.11} parent=107 // loop_header
                %s417 = sphi 0, %s421
                %p418 = scmp.ge.s32.totalorder %s417, 1
                %s422 = sphi %s355, %s355
                %s423 = sphi %s408, %s408
              $region111: #{custom-call.11} parent=107 // loop_header_branch
                %420 = sbr.rel (%p418) target = $region115
              $region112: #{custom-call.11} parent=107 // loop_body
                %v424 = vld [vmem:[%s422] sm:$0xf]
                %425 = vst [vmem:[%s423] sm:$0xf] %v424
              $region113: #{custom-call.11} parent=107 // loop_footer
                %s421 = sadd.s32 1, %s417
              $region114: #{custom-call.11} parent=107 // loop_footer_branch
                %416 = sbr.rel target = $region110
              $region115: #{custom-call.11} parent=107 // loop_exit
                _
            $region108: #{custom-call.11} parent=99 // pred_fallthru
              _
          $region100: #{custom-call.11} parent=95 // pred_fallthru
            _
          %439 = vnop
        $region96: #{custom-call.11} parent=49 // pred_fallthru
          _
      $region50: #{custom-call.11} parent=5 // pred_fallthru
        _
      %p440 = scmp.le.s32.totalorder 2, %s9
      // Predicated region
      $region127: #{custom-call.11} parent=5 // pred_check
        %p441 = pneg %p440
      $region128: #{custom-call.11} parent=5 // pred_check_branch
        %443 = sbr.rel (%p441) target = $region130
      $region129: #{custom-call.11} parent=5 // pred_region
        %s444 = ssub.s32 %s9, 2
        %s445 = sand.u32 %s15, 1
        %s446 = sand.u32 %s15, 1
        %s447 = smul.addr %s446, 4
        %s448 = scalar_lea.vmem [#allocation3], %s447
        // Predicated region
        $region131: #{custom-call.11} parent=129 // pred_check
          %p449 = pneg %p40
        $region132: #{custom-call.11} parent=129 // pred_check_branch
          %451 = sbr.rel (%p449) target = $region134
        $region133: #{custom-call.11} parent=129 // pred_region
          %s452 = sand.u32 %s25, 1
          %s453 = scalar_lea.sflag [#allocation6], %s452
          %s454 = sand.u32 %s25, 1
          %s455 = smul.addr %s454, 4
          %s456 = scalar_lea.vmem [#allocation5], %s455
          %457 = dma.done %s453, 64
        $region134: #{custom-call.11} parent=129 // pred_fallthru
          _
        // Predicated region
        $region135: #{custom-call.11} parent=129 // pred_check
          %p458 = pneg %p68
        $region136: #{custom-call.11} parent=129 // pred_check_branch
          %460 = sbr.rel (%p458) target = $region138
        $region137: #{custom-call.11} parent=129 // pred_region
          %s461 = sand.u32 %s53, 1
          %s462 = sand.u32 %s53, 1
          %s463 = smul.addr %s462, 4
          %s464 = scalar_lea.vmem [#allocation8], %s463
        $region138: #{custom-call.11} parent=129 // pred_fallthru
          _
      $region130: #{custom-call.11} parent=5 // pred_fallthru
        _
    $region6: #{custom-call.11} parent=1 // loop_footer
      %s13 = sadd.s32 1, %s9
    $region7: #{custom-call.11} parent=1 // loop_footer_branch
      %8 = sbr.rel target = $region3
    $region8: #{custom-call.11} parent=1 // loop_exit
      _
    %465 = vsyncpa [#allocation6], 1
    %s466 = scalar_lea.sflag [#allocation6], 1
    %467 = vsyncpa %s466, 1

// kernel: custom-call.13
$region0: #{custom-call.13}
  %s0 = inlined_call_operand.vmem [shape: f32[4,1,4,4], index: 0, kind: input, shape index: {}]
  %s1 = inlined_call_operand.vmem [shape: f32[4,1,4,4], index: 1, kind: output, shape index: {}]
  $region1: #{custom-call.13} parent=0
    #allocation0 [shape = 'u8[4096]{0}', space=vmem, size = 0x1000, scoped, tag = 'operand span for operand 0']
    #allocation1 [shape = 'u8[4096]{0}', space=vmem, size = 0x1000, scoped, tag = 'packed  for operand 0']
    #allocation2 [shape = 'u8[4096]{0}', space=vmem, size = 0x1000, scoped, tag = 'operand span for operand 1']
    #allocation3 [shape = 'u8[4096]{0}', space=vmem, size = 0x1000, scoped, tag = 'packed  for operand 1']
    loop: start=0, step=1, limit=6
    $region2: #{custom-call.13} parent=1 // loop_pre_header
      _
    $region3: #{custom-call.13} parent=1 // loop_header
      %s3 = sphi 0, %s7
      %p4 = scmp.ge.s32.totalorder %s3, 6
      %s10 = sphi 0, %s36
      %s11 = sphi 0, %s32
      %s12 = sphi 0, %s28
      %s13 = sphi 0, %s24
      %s14 = sphi 0, %s10
      %s15 = sphi 0, %s11
      %s16 = sphi 0, %s12
      %s17 = sphi 0, %s13
      %s18 = sphi 0, %s14
      %s19 = sphi 0, %s15
      %s20 = sphi 0, %s16
      %s21 = sphi 0, %s17
    $region4: #{custom-call.13} parent=1 // loop_header_branch
      %6 = sbr.rel (%p4) target = $region8
    $region5: #{custom-call.13} parent=1 // loop_body
      %s8 = ssub.s32 %s3, 1
      %s9 = ssub.s32 %s3, 2
      %s22 = sadd.s32 1, %s13
      %p23 = scmp.ge.s32.totalorder %s22, 1
      %s24 = scalar_select %p23, 0, %s22
      %s25 = sadd.s32 1, %s12
      %s26 = scalar_select %p23, %s25, %s12
      %p27 = scmp.ge.s32.totalorder %s26, 1
      %s28 = scalar_select %p27, 0, %s26
      %s29 = sadd.s32 1, %s11
      %s30 = scalar_select %p27, %s29, %s11
      %p31 = scmp.ge.s32.totalorder %s30, 1
      %s32 = scalar_select %p31, 0, %s30
      %s33 = sadd.s32 1, %s10
      %s34 = scalar_select %p31, %s33, %s10
      %p35 = scmp.ge.s32.totalorder %s34, 4
      %s36 = scalar_select %p35, 0, %s34
      %p37 = scmp.le.s32.totalorder 1, %s3
      %p38 = scmp.lt.s32.totalorder %s3, 5
      %p39 = pnand %p37, %p38
      %p40 = pneg %p39
      // Predicated region
      $region9: #{custom-call.13} parent=5 // pred_check
        _
      $region10: #{custom-call.13} parent=5 // pred_check_branch
        %42 = sbr.rel (%p39) target = $region12
      $region11: #{custom-call.13} parent=5 // pred_region
        %s43 = ssub.s32 %s3, 1
      $region12: #{custom-call.13} parent=5 // pred_fallthru
        _
      %p44 = scmp.lt.s32.totalorder %s3, 4
      // Predicated region
      $region13: #{custom-call.13} parent=5 // pred_check
        %p45 = pneg %p44
      $region14: #{custom-call.13} parent=5 // pred_check_branch
        %47 = sbr.rel (%p45) target = $region16
      $region15: #{custom-call.13} parent=5 // pred_region
        %s48 = sand.u32 %s3, 1
        %s49 = sand.u32 %s3, 1
        %s50 = smul.addr %s49, 4
        %s51 = scalar_lea.vmem [#allocation1], %s50
        %s52 = sadd.s32 %s13, %s12
        %s53 = sadd.s32 %s52, %s11
        %s54 = sadd.s32 %s53, %s10
        %s55 = smul.addr %s54, 4
        %s56 = scalar_lea.vmem %s0, %s55
        // Predicated region
        $region17: #{custom-call.13} parent=15 // pred_check
          _
        $region18: #{custom-call.13} parent=15 // pred_check_branch
          %58 = sbr.rel (0) target = $region20
        $region19: #{custom-call.13} parent=15 // pred_region
          // Predicated region
          $region21: #{custom-call.13} parent=19 // pred_check
            _
          $region22: #{custom-call.13} parent=19 // pred_check_branch
            %60 = sbr.rel target = $region24
          $region23: #{custom-call.13} parent=19 // pred_region
            // Predicated region
            $region36: #{custom-call.13} parent=23 // pred_check
              _
            $region37: #{custom-call.13} parent=23 // pred_check_branch
              %75 = sbr.rel (0) target = $region39
            $region38: #{custom-call.13} parent=23 // pred_region
              loop: start=0, step=1, limit=1
              $region40: #{custom-call.13} parent=38 // loop_pre_header
                _
              $region41: #{custom-call.13} parent=38 // loop_header
                %s78 = sphi 0, %s82
                %p79 = scmp.ge.s32.totalorder %s78, 1
                %s83 = sphi %s56, %s56
                %s84 = sphi %s51, %s51
              $region42: #{custom-call.13} parent=38 // loop_header_branch
                %81 = sbr.rel (%p79) target = $region46
              $region43: #{custom-call.13} parent=38 // loop_body
                %v85 = vld [vmem:[%s83] sm:$0xf]
                %86 = vst [vmem:[%s84] sm:$0xf] %v85
              $region44: #{custom-call.13} parent=38 // loop_footer
                %s82 = sadd.s32 1, %s78
              $region45: #{custom-call.13} parent=38 // loop_footer_branch
                %77 = sbr.rel target = $region41
              $region46: #{custom-call.13} parent=38 // loop_exit
                _
            $region39: #{custom-call.13} parent=23 // pred_fallthru
              _
          $region24: #{custom-call.13} parent=19 // pred_fallthru
            _
          // Predicated region
          $region25: #{custom-call.13} parent=19 // pred_check
            _
          $region26: #{custom-call.13} parent=19 // pred_check_branch
            %62 = sbr.rel (0) target = $region28
          $region27: #{custom-call.13} parent=19 // pred_region
            loop: start=0, step=1, limit=1
            $region29: #{custom-call.13} parent=27 // loop_pre_header
              _
            $region30: #{custom-call.13} parent=27 // loop_header
              %s65 = sphi 0, %s69
              %p66 = scmp.ge.s32.totalorder %s65, 1
              %s70 = sphi %s56, %s56
              %s71 = sphi %s51, %s51
            $region31: #{custom-call.13} parent=27 // loop_header_branch
              %68 = sbr.rel (%p66) target = $region35
            $region32: #{custom-call.13} parent=27 // loop_body
              %v72 = vld [vmem:[%s70] sm:$0xf]
              %73 = vst [vmem:[%s71] sm:$0xf] %v72
            $region33: #{custom-call.13} parent=27 // loop_footer
              %s69 = sadd.s32 1, %s65
            $region34: #{custom-call.13} parent=27 // loop_footer_branch
              %64 = sbr.rel target = $region30
            $region35: #{custom-call.13} parent=27 // loop_exit
              _
          $region28: #{custom-call.13} parent=19 // pred_fallthru
            _
        $region20: #{custom-call.13} parent=15 // pred_fallthru
          _
        %87 = vnop
      $region16: #{custom-call.13} parent=5 // pred_fallthru
        _
      %p88 = scmp.le.s32.totalorder 1, %s3
      %p89 = scmp.lt.s32.totalorder %s3, 5
      %p90 = pnand %p88, %p89
      %p91 = pneg %p90
      // Predicated region
      $region47: #{custom-call.13} parent=5 // pred_check
        _
      $region48: #{custom-call.13} parent=5 // pred_check_branch
        %93 = sbr.rel (%p90) target = $region50
      $region49: #{custom-call.13} parent=5 // pred_region
        #allocation4 [shape = 'f32[4,4]{1,0}', space=vmem, size = 0x1000, scoped, tag = 'rescaled input a']
        %s94 = ssub.s32 %s3, 1
        %s95 = sand.u32 %s8, 1
        %s96 = sand.u32 %s8, 1
        %s97 = smul.addr %s96, 4
        %s98 = scalar_lea.vmem [#allocation1], %s97
        %s99 = sand.u32 %s8, 1
        %s100 = sand.u32 %s8, 1
        %s101 = smul.addr %s100, 4
        %s102 = scalar_lea.vmem [#allocation1], %s101
        %s103 = sand.u32 %s8, 1
        %s104 = sand.u32 %s8, 1
        %s105 = smul.addr %s104, 4
        %s106 = scalar_lea.vmem [#allocation3], %s105
        %s108 = sshllo.u32 0, 4
        %v109 = vld [vmem:[%s102] sm:%s108]
        %110 = vst [vmem:[#allocation0] sm:%s108] %v109
        %v111 = vlaneseq
        %v112 = vand.u32 %v111, 127
        %vm113 = vcmp.lt.s32.totalorder %v112, 4
        %v114 = vlaneseq
        %v115 = vshrl.u32 %v114, 7
        %vm117 = vcmp.eq.s32.totalorder %v115, %v112
        %v118 = vld [vmem:[#allocation0] sm:$0xff]
        %v119 = vsel %vm117, %v118, 0.0
        %120 = vadd.xlane.f32.xlu0 %v119
        %v121 = vpop.xlane.xlu0 %120
        %vm122 = vcmp.ge.s32.totalorder %v115, %v112
        %vm123 = vmand %vm122, %vm113
        %v124 = vsel %vm123, %v118, 0.0
        %v125 = vrcp.pop %v121
        %v126 = vmul.f32 %v124, %v125
        %127 = vst [vmem:[#allocation4] sm:$0xff] %v126
        %v128 = vlaneseq
        %v129 = vand.u32 %v128, 127
        %v130 = vlaneseq
        %v131 = vshrl.u32 %v130, 7
        %vm133 = vcmp.eq.s32.totalorder %v129, %v131
        %v134 = vlaneseq
        %v135 = vand.u32 %v134, 127
        %vm136 = vcmp.eq.s32.totalorder %v135, 0
        %v137 = vsel %vm136, 1.0, -1.0
        %v138 = vsel %vm133, %v137, 0.0
        %s139 = scalar_lea.vmem [#allocation4], 1
        %v140 = vld [vmem:[%s139] ss:$0 sm:$0xff]
        %v141 = vxor.u32 %v140, 2147483648
        %v142 = vlaneseq
        %v143 = vand.u32 %v142, 127
        %vm144 = vcmp.eq.s32.totalorder %v143, 1
        %v145 = vmul.f32 %v141, %v138
        %146 = vadd.xlane.f32.xlu0 %v145
        %v147 = vpop.xlane.xlu0 %146
        %v148 = vsel %vm144, %v147, %v138
        %s149 = scalar_lea.vmem [#allocation4], 2
        %v150 = vld [vmem:[%s149] ss:$0 sm:$0xff]
        %v151 = vxor.u32 %v150, 2147483648
        %v152 = vlaneseq
        %v153 = vand.u32 %v152, 127
        %vm154 = vcmp.eq.s32.totalorder %v153, 2
        %v155 = vmul.f32 %v151, %v148
        %156 = vadd.xlane.f32.xlu0 %v155
        %v157 = vpop.xlane.xlu0 %156
        %v158 = vsel %vm154, %v157, %v148
        %s159 = scalar_lea.vmem [#allocation4], 3
        %v160 = vld [vmem:[%s159] ss:$0 sm:$0xff]
        %v161 = vxor.u32 %v160, 2147483648
        %v162 = vlaneseq
        %v163 = vand.u32 %v162, 127
        %vm164 = vcmp.eq.s32.totalorder %v163, 3
        %v165 = vmul.f32 %v161, %v158
        %166 = vadd.xlane.f32.xlu0 %v165
        %v167 = vpop.xlane.xlu0 %166
        %v168 = vsel %vm164, %v167, %v158
        %v169 = vrcp.pop %v121
        %v170 = vmul.f32 %v168, %v169
        %vm171 = vweird.f32 %v121
        %v172 = vsel %vm171, %v168, %v170
        %173 = vst [vmem:[#allocation2] sm:$0xff] %v172
        %s175 = sshllo.u32 0, 4
        %v177 = vld [vmem:[#allocation2] sm:%s175]
        %s178 = sshllo.u32 0, 4
        %179 = vst [vmem:[%s106] sm:%s178] %v177
        %s180 = sand.u32 %s8, 1
        %s181 = sand.u32 %s8, 1
        %s182 = smul.addr %s181, 4
        %s183 = scalar_lea.vmem [#allocation3], %s182
        %s184 = sadd.s32 %s17, %s16
        %s185 = sadd.s32 %s184, %s15
        %s186 = sadd.s32 %s185, %s14
        %s187 = smul.addr %s186, 4
        %s188 = scalar_lea.vmem %s1, %s187
        // Predicated region
        $region51: #{custom-call.13} parent=49 // pred_check
          _
        $region52: #{custom-call.13} parent=49 // pred_check_branch
          %190 = sbr.rel (0) target = $region54
        $region53: #{custom-call.13} parent=49 // pred_region
          // Predicated region
          $region55: #{custom-call.13} parent=53 // pred_check
            _
          $region56: #{custom-call.13} parent=53 // pred_check_branch
            %192 = sbr.rel target = $region58
          $region57: #{custom-call.13} parent=53 // pred_region
            // Predicated region
            $region70: #{custom-call.13} parent=57 // pred_check
              _
            $region71: #{custom-call.13} parent=57 // pred_check_branch
              %207 = sbr.rel (0) target = $region73
            $region72: #{custom-call.13} parent=57 // pred_region
              loop: start=0, step=1, limit=1
              $region74: #{custom-call.13} parent=72 // loop_pre_header
                _
              $region75: #{custom-call.13} parent=72 // loop_header
                %s210 = sphi 0, %s214
                %p211 = scmp.ge.s32.totalorder %s210, 1
                %s215 = sphi %s183, %s183
                %s216 = sphi %s188, %s188
              $region76: #{custom-call.13} parent=72 // loop_header_branch
                %213 = sbr.rel (%p211) target = $region80
              $region77: #{custom-call.13} parent=72 // loop_body
                %v217 = vld [vmem:[%s215] sm:$0xf]
                %218 = vst [vmem:[%s216] sm:$0xf] %v217
              $region78: #{custom-call.13} parent=72 // loop_footer
                %s214 = sadd.s32 1, %s210
              $region79: #{custom-call.13} parent=72 // loop_footer_branch
                %209 = sbr.rel target = $region75
              $region80: #{custom-call.13} parent=72 // loop_exit
                _
            $region73: #{custom-call.13} parent=57 // pred_fallthru
              _
          $region58: #{custom-call.13} parent=53 // pred_fallthru
            _
          // Predicated region
          $region59: #{custom-call.13} parent=53 // pred_check
            _
          $region60: #{custom-call.13} parent=53 // pred_check_branch
            %194 = sbr.rel (0) target = $region62
          $region61: #{custom-call.13} parent=53 // pred_region
            loop: start=0, step=1, limit=1
            $region63: #{custom-call.13} parent=61 // loop_pre_header
              _
            $region64: #{custom-call.13} parent=61 // loop_header
              %s197 = sphi 0, %s201
              %p198 = scmp.ge.s32.totalorder %s197, 1
              %s202 = sphi %s183, %s183
              %s203 = sphi %s188, %s188
            $region65: #{custom-call.13} parent=61 // loop_header_branch
              %200 = sbr.rel (%p198) target = $region69
            $region66: #{custom-call.13} parent=61 // loop_body
              %v204 = vld [vmem:[%s202] sm:$0xf]
              %205 = vst [vmem:[%s203] sm:$0xf] %v204
            $region67: #{custom-call.13} parent=61 // loop_footer
              %s201 = sadd.s32 1, %s197
            $region68: #{custom-call.13} parent=61 // loop_footer_branch
              %196 = sbr.rel target = $region64
            $region69: #{custom-call.13} parent=61 // loop_exit
              _
          $region62: #{custom-call.13} parent=53 // pred_fallthru
            _
        $region54: #{custom-call.13} parent=49 // pred_fallthru
          _
        %219 = vnop
      $region50: #{custom-call.13} parent=5 // pred_fallthru
        _
      %p220 = scmp.le.s32.totalorder 2, %s3
      // Predicated region
      $region81: #{custom-call.13} parent=5 // pred_check
        %p221 = pneg %p220
      $region82: #{custom-call.13} parent=5 // pred_check_branch
        %223 = sbr.rel (%p221) target = $region84
      $region83: #{custom-call.13} parent=5 // pred_region
        %s224 = ssub.s32 %s3, 2
        %s225 = sand.u32 %s9, 1
        %s226 = sand.u32 %s9, 1
        %s227 = smul.addr %s226, 4
        %s228 = scalar_lea.vmem [#allocation3], %s227
      $region84: #{custom-call.13} parent=5 // pred_fallthru
        _
    $region6: #{custom-call.13} parent=1 // loop_footer
      %s7 = sadd.s32 1, %s3
    $region7: #{custom-call.13} parent=1 // loop_footer_branch
      %2 = sbr.rel target = $region3
    $region8: #{custom-call.13} parent=1 // loop_exit
      _

// kernel: custom-call.12
$region0: #{custom-call.12}
  %s0 = inlined_call_operand.vmem [shape: f32[4,1,4,4], index: 0, kind: input, shape index: {}]
  %s1 = inlined_call_operand.vmem [shape: f32[4,1,4,4], index: 1, kind: output, shape index: {}]
  $region1: #{custom-call.12} parent=0
    #allocation0 [shape = 'u8[4096]{0}', space=vmem, size = 0x1000, scoped, tag = 'operand span for operand 0']
    #allocation1 [shape = 'u8[4096]{0}', space=vmem, size = 0x1000, scoped, tag = 'packed  for operand 0']
    #allocation2 [shape = 'u8[4096]{0}', space=vmem, size = 0x1000, scoped, tag = 'operand span for operand 1']
    #allocation3 [shape = 'u8[4096]{0}', space=vmem, size = 0x1000, scoped, tag = 'packed  for operand 1']
    loop: start=0, step=1, limit=6
    $region2: #{custom-call.12} parent=1 // loop_pre_header
      _
    $region3: #{custom-call.12} parent=1 // loop_header
      %s3 = sphi 0, %s7
      %p4 = scmp.ge.s32.totalorder %s3, 6
      %s10 = sphi 0, %s36
      %s11 = sphi 0, %s32
      %s12 = sphi 0, %s28
      %s13 = sphi 0, %s24
      %s14 = sphi 0, %s10
      %s15 = sphi 0, %s11
      %s16 = sphi 0, %s12
      %s17 = sphi 0, %s13
      %s18 = sphi 0, %s14
      %s19 = sphi 0, %s15
      %s20 = sphi 0, %s16
      %s21 = sphi 0, %s17
    $region4: #{custom-call.12} parent=1 // loop_header_branch
      %6 = sbr.rel (%p4) target = $region8
    $region5: #{custom-call.12} parent=1 // loop_body
      %s8 = ssub.s32 %s3, 1
      %s9 = ssub.s32 %s3, 2
      %s22 = sadd.s32 1, %s13
      %p23 = scmp.ge.s32.totalorder %s22, 1
      %s24 = scalar_select %p23, 0, %s22
      %s25 = sadd.s32 1, %s12
      %s26 = scalar_select %p23, %s25, %s12
      %p27 = scmp.ge.s32.totalorder %s26, 1
      %s28 = scalar_select %p27, 0, %s26
      %s29 = sadd.s32 1, %s11
      %s30 = scalar_select %p27, %s29, %s11
      %p31 = scmp.ge.s32.totalorder %s30, 1
      %s32 = scalar_select %p31, 0, %s30
      %s33 = sadd.s32 1, %s10
      %s34 = scalar_select %p31, %s33, %s10
      %p35 = scmp.ge.s32.totalorder %s34, 4
      %s36 = scalar_select %p35, 0, %s34
      %p37 = scmp.le.s32.totalorder 1, %s3
      %p38 = scmp.lt.s32.totalorder %s3, 5
      %p39 = pnand %p37, %p38
      %p40 = pneg %p39
      // Predicated region
      $region9: #{custom-call.12} parent=5 // pred_check
        _
      $region10: #{custom-call.12} parent=5 // pred_check_branch
        %42 = sbr.rel (%p39) target = $region12
      $region11: #{custom-call.12} parent=5 // pred_region
        %s43 = ssub.s32 %s3, 1
      $region12: #{custom-call.12} parent=5 // pred_fallthru
        _
      %p44 = scmp.lt.s32.totalorder %s3, 4
      // Predicated region
      $region13: #{custom-call.12} parent=5 // pred_check
        %p45 = pneg %p44
      $region14: #{custom-call.12} parent=5 // pred_check_branch
        %47 = sbr.rel (%p45) target = $region16
      $region15: #{custom-call.12} parent=5 // pred_region
        %s48 = sand.u32 %s3, 1
        %s49 = sand.u32 %s3, 1
        %s50 = smul.addr %s49, 4
        %s51 = scalar_lea.vmem [#allocation1], %s50
        %s52 = sadd.s32 %s13, %s12
        %s53 = sadd.s32 %s52, %s11
        %s54 = sadd.s32 %s53, %s10
        %s55 = smul.addr %s54, 4
        %s56 = scalar_lea.vmem %s0, %s55
        // Predicated region
        $region17: #{custom-call.12} parent=15 // pred_check
          _
        $region18: #{custom-call.12} parent=15 // pred_check_branch
          %58 = sbr.rel (0) target = $region20
        $region19: #{custom-call.12} parent=15 // pred_region
          // Predicated region
          $region21: #{custom-call.12} parent=19 // pred_check
            _
          $region22: #{custom-call.12} parent=19 // pred_check_branch
            %60 = sbr.rel target = $region24
          $region23: #{custom-call.12} parent=19 // pred_region
            // Predicated region
            $region36: #{custom-call.12} parent=23 // pred_check
              _
            $region37: #{custom-call.12} parent=23 // pred_check_branch
              %75 = sbr.rel (0) target = $region39
            $region38: #{custom-call.12} parent=23 // pred_region
              loop: start=0, step=1, limit=1
              $region40: #{custom-call.12} parent=38 // loop_pre_header
                _
              $region41: #{custom-call.12} parent=38 // loop_header
                %s78 = sphi 0, %s82
                %p79 = scmp.ge.s32.totalorder %s78, 1
                %s83 = sphi %s56, %s56
                %s84 = sphi %s51, %s51
              $region42: #{custom-call.12} parent=38 // loop_header_branch
                %81 = sbr.rel (%p79) target = $region46
              $region43: #{custom-call.12} parent=38 // loop_body
                %v85 = vld [vmem:[%s83] sm:$0xf]
                %86 = vst [vmem:[%s84] sm:$0xf] %v85
              $region44: #{custom-call.12} parent=38 // loop_footer
                %s82 = sadd.s32 1, %s78
              $region45: #{custom-call.12} parent=38 // loop_footer_branch
                %77 = sbr.rel target = $region41
              $region46: #{custom-call.12} parent=38 // loop_exit
                _
            $region39: #{custom-call.12} parent=23 // pred_fallthru
              _
          $region24: #{custom-call.12} parent=19 // pred_fallthru
            _
          // Predicated region
          $region25: #{custom-call.12} parent=19 // pred_check
            _
          $region26: #{custom-call.12} parent=19 // pred_check_branch
            %62 = sbr.rel (0) target = $region28
          $region27: #{custom-call.12} parent=19 // pred_region
            loop: start=0, step=1, limit=1
            $region29: #{custom-call.12} parent=27 // loop_pre_header
              _
            $region30: #{custom-call.12} parent=27 // loop_header
              %s65 = sphi 0, %s69
              %p66 = scmp.ge.s32.totalorder %s65, 1
              %s70 = sphi %s56, %s56
              %s71 = sphi %s51, %s51
            $region31: #{custom-call.12} parent=27 // loop_header_branch
              %68 = sbr.rel (%p66) target = $region35
            $region32: #{custom-call.12} parent=27 // loop_body
              %v72 = vld [vmem:[%s70] sm:$0xf]
              %73 = vst [vmem:[%s71] sm:$0xf] %v72
            $region33: #{custom-call.12} parent=27 // loop_footer
              %s69 = sadd.s32 1, %s65
            $region34: #{custom-call.12} parent=27 // loop_footer_branch
              %64 = sbr.rel target = $region30
            $region35: #{custom-call.12} parent=27 // loop_exit
              _
          $region28: #{custom-call.12} parent=19 // pred_fallthru
            _
        $region20: #{custom-call.12} parent=15 // pred_fallthru
          _
        %87 = vnop
      $region16: #{custom-call.12} parent=5 // pred_fallthru
        _
      %p88 = scmp.le.s32.totalorder 1, %s3
      %p89 = scmp.lt.s32.totalorder %s3, 5
      %p90 = pnand %p88, %p89
      %p91 = pneg %p90
      // Predicated region
      $region47: #{custom-call.12} parent=5 // pred_check
        _
      $region48: #{custom-call.12} parent=5 // pred_check_branch
        %93 = sbr.rel (%p90) target = $region50
      $region49: #{custom-call.12} parent=5 // pred_region
        #allocation4 [shape = 'f32[4,4]{1,0}', space=vmem, size = 0x1000, scoped, tag = 'rescaled input a']
        %s94 = ssub.s32 %s3, 1
        %s95 = sand.u32 %s8, 1
        %s96 = sand.u32 %s8, 1
        %s97 = smul.addr %s96, 4
        %s98 = scalar_lea.vmem [#allocation1], %s97
        %s99 = sand.u32 %s8, 1
        %s100 = sand.u32 %s8, 1
        %s101 = smul.addr %s100, 4
        %s102 = scalar_lea.vmem [#allocation1], %s101
        %s103 = sand.u32 %s8, 1
        %s104 = sand.u32 %s8, 1
        %s105 = smul.addr %s104, 4
        %s106 = scalar_lea.vmem [#allocation3], %s105
        %s108 = sshllo.u32 0, 4
        %v109 = vld [vmem:[%s102] sm:%s108]
        %110 = vst [vmem:[#allocation0] sm:%s108] %v109
        %v111 = vlaneseq
        %v112 = vand.u32 %v111, 127
        %vm113 = vcmp.lt.s32.totalorder %v112, 4
        %v114 = vlaneseq
        %v115 = vshrl.u32 %v114, 7
        %vm117 = vcmp.eq.s32.totalorder %v115, %v112
        %v118 = vld [vmem:[#allocation0] sm:$0xff]
        %v119 = vsel %vm117, %v118, 0.0
        %120 = vadd.xlane.f32.xlu0 %v119
        %v121 = vpop.xlane.xlu0 %120
        %vm122 = vcmp.le.s32.totalorder %v115, %v112
        %vm123 = vmand %vm122, %vm113
        %v124 = vsel %vm123, %v118, 0.0
        %v125 = vrcp.pop %v121
        %v126 = vmul.f32 %v124, %v125
        %127 = vst [vmem:[#allocation4] sm:$0xff] %v126
        %v128 = vlaneseq
        %v129 = vand.u32 %v128, 127
        %v130 = vlaneseq
        %v131 = vshrl.u32 %v130, 7
        %vm133 = vcmp.eq.s32.totalorder %v129, %v131
        %v134 = vlaneseq
        %v135 = vand.u32 %v134, 127
        %vm136 = vcmp.eq.s32.totalorder %v135, 3
        %v137 = vsel %vm136, 1.0, -1.0
        %v138 = vsel %vm133, %v137, 0.0
        %s139 = scalar_lea.vmem [#allocation4], 2
        %v140 = vld [vmem:[%s139] ss:$0 sm:$0xff]
        %v141 = vxor.u32 %v140, 2147483648
        %v142 = vlaneseq
        %v143 = vand.u32 %v142, 127
        %vm144 = vcmp.eq.s32.totalorder %v143, 2
        %v145 = vmul.f32 %v141, %v138
        %146 = vadd.xlane.f32.xlu0 %v145
        %v147 = vpop.xlane.xlu0 %146
        %v148 = vsel %vm144, %v147, %v138
        %s149 = scalar_lea.vmem [#allocation4], 1
        %v150 = vld [vmem:[%s149] ss:$0 sm:$0xff]
        %v151 = vxor.u32 %v150, 2147483648
        %v152 = vlaneseq
        %v153 = vand.u32 %v152, 127
        %vm154 = vcmp.eq.s32.totalorder %v153, 1
        %v155 = vmul.f32 %v151, %v148
        %156 = vadd.xlane.f32.xlu0 %v155
        %v157 = vpop.xlane.xlu0 %156
        %v158 = vsel %vm154, %v157, %v148
        %v159 = vld [vmem:[#allocation4] ss:$0 sm:$0xff]
        %v160 = vxor.u32 %v159, 2147483648
        %v161 = vlaneseq
        %v162 = vand.u32 %v161, 127
        %vm163 = vcmp.eq.s32.totalorder %v162, 0
        %v164 = vmul.f32 %v160, %v158
        %165 = vadd.xlane.f32.xlu0 %v164
        %v166 = vpop.xlane.xlu0 %165
        %v167 = vsel %vm163, %v166, %v158
        %v168 = vrcp.pop %v121
        %v169 = vmul.f32 %v167, %v168
        %vm170 = vweird.f32 %v121
        %v171 = vsel %vm170, %v167, %v169
        %172 = vst [vmem:[#allocation2] sm:$0xff] %v171
        %s174 = sshllo.u32 0, 4
        %v176 = vld [vmem:[#allocation2] sm:%s174]
        %s177 = sshllo.u32 0, 4
        %178 = vst [vmem:[%s106] sm:%s177] %v176
        %s179 = sand.u32 %s8, 1
        %s180 = sand.u32 %s8, 1
        %s181 = smul.addr %s180, 4
        %s182 = scalar_lea.vmem [#allocation3], %s181
        %s183 = sadd.s32 %s17, %s16
        %s184 = sadd.s32 %s183, %s15
        %s185 = sadd.s32 %s184, %s14
        %s186 = smul.addr %s185, 4
        %s187 = scalar_lea.vmem %s1, %s186
        // Predicated region
        $region51: #{custom-call.12} parent=49 // pred_check
          _
        $region52: #{custom-call.12} parent=49 // pred_check_branch
          %189 = sbr.rel (0) target = $region54
        $region53: #{custom-call.12} parent=49 // pred_region
          // Predicated region
          $region55: #{custom-call.12} parent=53 // pred_check
            _
          $region56: #{custom-call.12} parent=53 // pred_check_branch
            %191 = sbr.rel target = $region58
          $region57: #{custom-call.12} parent=53 // pred_region
            // Predicated region
            $region70: #{custom-call.12} parent=57 // pred_check
              _
            $region71: #{custom-call.12} parent=57 // pred_check_branch
              %206 = sbr.rel (0) target = $region73
            $region72: #{custom-call.12} parent=57 // pred_region
              loop: start=0, step=1, limit=1
              $region74: #{custom-call.12} parent=72 // loop_pre_header
                _
              $region75: #{custom-call.12} parent=72 // loop_header
                %s209 = sphi 0, %s213
                %p210 = scmp.ge.s32.totalorder %s209, 1
                %s214 = sphi %s182, %s182
                %s215 = sphi %s187, %s187
              $region76: #{custom-call.12} parent=72 // loop_header_branch
                %212 = sbr.rel (%p210) target = $region80
              $region77: #{custom-call.12} parent=72 // loop_body
                %v216 = vld [vmem:[%s214] sm:$0xf]
                %217 = vst [vmem:[%s215] sm:$0xf] %v216
              $region78: #{custom-call.12} parent=72 // loop_footer
                %s213 = sadd.s32 1, %s209
              $region79: #{custom-call.12} parent=72 // loop_footer_branch
                %208 = sbr.rel target = $region75
              $region80: #{custom-call.12} parent=72 // loop_exit
                _
            $region73: #{custom-call.12} parent=57 // pred_fallthru
              _
          $region58: #{custom-call.12} parent=53 // pred_fallthru
            _
          // Predicated region
          $region59: #{custom-call.12} parent=53 // pred_check
            _
          $region60: #{custom-call.12} parent=53 // pred_check_branch
            %193 = sbr.rel (0) target = $region62
          $region61: #{custom-call.12} parent=53 // pred_region
            loop: start=0, step=1, limit=1
            $region63: #{custom-call.12} parent=61 // loop_pre_header
              _
            $region64: #{custom-call.12} parent=61 // loop_header
              %s196 = sphi 0, %s200
              %p197 = scmp.ge.s32.totalorder %s196, 1
              %s201 = sphi %s182, %s182
              %s202 = sphi %s187, %s187
            $region65: #{custom-call.12} parent=61 // loop_header_branch
              %199 = sbr.rel (%p197) target = $region69
            $region66: #{custom-call.12} parent=61 // loop_body
              %v203 = vld [vmem:[%s201] sm:$0xf]
              %204 = vst [vmem:[%s202] sm:$0xf] %v203
            $region67: #{custom-call.12} parent=61 // loop_footer
              %s200 = sadd.s32 1, %s196
            $region68: #{custom-call.12} parent=61 // loop_footer_branch
              %195 = sbr.rel target = $region64
            $region69: #{custom-call.12} parent=61 // loop_exit
              _
          $region62: #{custom-call.12} parent=53 // pred_fallthru
            _
        $region54: #{custom-call.12} parent=49 // pred_fallthru
          _
        %218 = vnop
      $region50: #{custom-call.12} parent=5 // pred_fallthru
        _
      %p219 = scmp.le.s32.totalorder 2, %s3
      // Predicated region
      $region81: #{custom-call.12} parent=5 // pred_check
        %p220 = pneg %p219
      $region82: #{custom-call.12} parent=5 // pred_check_branch
        %222 = sbr.rel (%p220) target = $region84
      $region83: #{custom-call.12} parent=5 // pred_region
        %s223 = ssub.s32 %s3, 2
        %s224 = sand.u32 %s9, 1
        %s225 = sand.u32 %s9, 1
        %s226 = smul.addr %s225, 4
        %s227 = scalar_lea.vmem [#allocation3], %s226
      $region84: #{custom-call.12} parent=5 // pred_fallthru
        _
    $region6: #{custom-call.12} parent=1 // loop_footer
      %s7 = sadd.s32 1, %s3
    $region7: #{custom-call.12} parent=1 // loop_footer_branch
      %2 = sbr.rel target = $region3
    $region8: #{custom-call.12} parent=1 // loop_exit
      _

// kernel: stage_net_forward.1
$region0: #{stage_net_forward.1}
  #allocation0 [shape = 'u32[]', space=smem, size = 0x4, offset = 0x4, fixed_abs, tag = 'smem constant byte address 0x4 - core index']
  #allocation1 [shape = 'u32[144,128]{1,0:T(1,128)}', space=vmem, size = 0x12000, scoped, tag = 'internal scratch']
  #allocation2 [shape = 'f32[8,256]{1,0:T(8,128)}', space=vmem, size = 0x2000, scoped, tag = 'scratch operand']
  #allocation3 [shape = 'f32[1,256]{1,0:T(1,128)}', space=vmem, size = 0x400, scoped, tag = 'scratch operand']
  #allocation4 [shape = 'f32[1]{0:T(128)S(6)}', space=smem, size = 0x200, scoped, tag = 'scoped memory for stage_net_forward.1']
  #allocation5 [shape = 'f32[1]{0:T(128)S(6)}', space=smem, size = 0x200, scoped, tag = 'scoped memory for stage_net_forward.1']
  #allocation6 [shape = 'f32[1]{0:T(128)S(6)}', space=smem, size = 0x200, scoped, tag = 'scoped memory for stage_net_forward.1']
  %s0 = inlined_call_operand.vmem [shape: bf16[2,2,4,256], index: 0, kind: input, shape index: {}]
  %s1 = inlined_call_operand.vmem [shape: bf16[2,2,4,8,256], index: 1, kind: input, shape index: {}]
  %s2 = inlined_call_operand.vmem [shape: bf16[2,2,1,256], index: 2, kind: input, shape index: {}]
  %s3 = inlined_call_operand.vmem [shape: f32[9,256], index: 3, kind: input, shape index: {}]
  %s4 = inlined_call_operand.vmem [shape: bf16[9,16,2], index: 4, kind: input, shape index: {}]
  %s5 = inlined_call_operand.vmem [shape: f32[16,1], index: 5, kind: input, shape index: {}]
  %s6 = inlined_call_operand.vmem [shape: bf16[9,16,16], index: 6, kind: input, shape index: {}]
  %s7 = inlined_call_operand.vmem [shape: f32[16,1], index: 7, kind: input, shape index: {}]
  %s8 = inlined_call_operand.vmem [shape: bf16[9,16,16], index: 8, kind: input, shape index: {}]
  %s9 = inlined_call_operand.vmem [shape: f32[16,1], index: 9, kind: input, shape index: {}]
  %s10 = inlined_call_operand.vmem [shape: bf16[1,16], index: 10, kind: input, shape index: {}]
  %s11 = inlined_call_operand.<no memory space> [shape: f32[1], index: 11, kind: input, shape index: {}]
  %s12 = inlined_call_operand.vmem [shape: f32[4,1], index: 12, kind: input, shape index: {}]
  %s13 = inlined_call_operand.<no memory space> [shape: f32[1], index: 13, kind: input, shape index: {}]
  %s14 = inlined_call_operand.vmem [shape: f32[8,1], index: 14, kind: input, shape index: {}]
  %s15 = inlined_call_operand.<no memory space> [shape: f32[1], index: 15, kind: input, shape index: {}]
  %s16 = inlined_call_operand.vmem [shape: f32[2,8,1], index: 16, kind: input, shape index: {}]
  %s17 = inlined_call_operand.vmem [shape: f32[2,8,256], index: 17, kind: output, shape index: {0}]
  %s18 = inlined_call_operand.vmem [shape: f32[2,1,256], index: 18, kind: output, shape index: {1}]
  %s19 = inlined_call_operand.vmem [shape: f32[2,1,256], index: 19, kind: output, shape index: {2}]
  %s20 = inlined_call_operand.vmem [shape: f32[2,1,256], index: 20, kind: output, shape index: {3}]
  %21 = xla_tuple %s17, %s18, %s19, %s20
  %s22 = sld [smem:[#allocation0]]
  $region137: #{stage_net_forward.1} parent=0
    _
  %s24 = ssub.s32 1, %s22
  %s25 = scalar_select 0, %s24, %s22
  %26 = sst [smem:[#allocation4]] %s11
  %27 = sst [smem:[#allocation5]] %s13
  %28 = sst [smem:[#allocation6]] %s15
  loop: start=0, step=1, limit=6
  $region2: #{stage_net_forward.1} parent=0 // loop_pre_header
    _
  $region3: #{stage_net_forward.1} parent=0 // loop_header
    %s30 = sphi 0, %s34
    %p31 = scmp.ge.s32.totalorder %s30, 6
    %s37 = sphi 0, %s49
    %s38 = sphi 0, %s45
    %s39 = sphi 0, %s37
    %s40 = sphi 0, %s38
    %s41 = sphi 0, %s39
    %s42 = sphi 0, %s40
    %s54 = sphi 0, %s56
    %s57 = sphi 0, %s54
    %s58 = sphi 0, %s57
    %s74 = sphi 0, %s58
    %s82 = sphi 0, %s84
    %s85 = sphi 0, %s82
    %s86 = sphi 0, %s85
    %s102 = sphi 0, %s86
    %s110 = sphi 0, %s112
    %s113 = sphi 0, %s110
    %s114 = sphi 0, %s113
    %s130 = sphi 0, %s114
    %s134 = sphi 0, %s134
    %s136 = sphi 0, %s134
    %s137 = sphi 0, %s136
    %s151 = sphi 0, %s137
    %s155 = sphi 0, %s155
    %s157 = sphi 0, %s155
    %s158 = sphi 0, %s157
    %s172 = sphi 0, %s158
    %s176 = sphi 0, %s176
    %s178 = sphi 0, %s176
    %s179 = sphi 0, %s178
    %s193 = sphi 0, %s179
    %s197 = sphi 0, %s197
    %s199 = sphi 0, %s197
    %s200 = sphi 0, %s199
    %s214 = sphi 0, %s200
    %s218 = sphi 0, %s218
    %s220 = sphi 0, %s218
    %s221 = sphi 0, %s220
    %s235 = sphi 0, %s221
    %s239 = sphi 0, %s239
    %s241 = sphi 0, %s239
    %s242 = sphi 0, %s241
    %s256 = sphi 0, %s242
    %s260 = sphi 0, %s260
    %s262 = sphi 0, %s260
    %s263 = sphi 0, %s262
    %s277 = sphi 0, %s263
    %s281 = sphi 0, %s281
    %s283 = sphi 0, %s281
    %s284 = sphi 0, %s283
    %s298 = sphi 0, %s284
    %s302 = sphi 0, %s302
    %s304 = sphi 0, %s302
    %s305 = sphi 0, %s304
    %s319 = sphi 0, %s305
    %s323 = sphi 0, %s323
    %s325 = sphi 0, %s323
    %s326 = sphi 0, %s325
    %s340 = sphi 0, %s326
    %s344 = sphi 0, %s344
    %s346 = sphi 0, %s344
    %s347 = sphi 0, %s346
    %s361 = sphi 0, %s347
    %s365 = sphi 0, %s365
    %s367 = sphi 0, %s365
    %s368 = sphi 0, %s367
    %s382 = sphi 0, %s368
    %s386 = sphi 0, %s386
    %s388 = sphi 0, %s386
    %s389 = sphi 0, %s388
    %s403 = sphi 0, %s389
    %s409 = sphi 0, %s411
    %s412 = sphi 0, %s409
    %s413 = sphi 0, %s412
    %s429 = sphi 0, %s413
    %s435 = sphi 0, %s437
    %s438 = sphi 0, %s435
    %s439 = sphi 0, %s438
    %s455 = sphi 0, %s439
    %s461 = sphi 0, %s463
    %s464 = sphi 0, %s461
    %s465 = sphi 0, %s464
    %s481 = sphi 0, %s465
    %s487 = sphi 0, %s489
    %s490 = sphi 0, %s487
    %s491 = sphi 0, %s490
    %s507 = sphi 0, %s491
    %s513 = sphi 0, %s515
    %s516 = sphi 0, %s513
    %s517 = sphi 0, %s516
    %s533 = sphi 0, %s517
  $region4: #{stage_net_forward.1} parent=0 // loop_header_branch
    %33 = sbr.rel (%p31) target = $region8
  $region5: #{stage_net_forward.1} parent=0 // loop_body
    %s35 = ssub.s32 %s30, 1
    %s36 = ssub.s32 %s30, 2
    %s43 = sadd.s32 1, %s38
    %p44 = scmp.ge.s32.totalorder %s43, 2
    %s45 = scalar_select %p44, 0, %s43
    %s46 = sadd.s32 1, %s37
    %s47 = scalar_select %p44, %s46, %s37
    %p48 = scmp.ge.s32.totalorder %s47, 2
    %s49 = scalar_select %p48, 0, %s47
    %s50 = ssub.s32 %s38, %s45
    %s51 = ssub.s32 %s37, %s49
    %s52 = sor.u32 %s50, %s51
    %p53 = scmp.eq.s32.totalorder %s52, 0
    %s55 = sadd.s32 %s54, 1
    %s56 = scalar_select %p53, %s54, %s55
    %p59 = pneg %p53
    %p60 = scmp.eq.s32.totalorder %s30, 3
    %p61 = por %p59, %p60
    %p62 = scmp.ne.s32.totalorder %s54, %s57
    %p63 = scmp.eq.s32.totalorder %s30, 0
    %p64 = por %p62, %p63
    %p65 = scmp.ne.s32.totalorder %s54, %s57
    %p66 = scmp.eq.s32.totalorder %s35, 3
    %p67 = por %p65, %p66
    %p68 = scmp.ne.s32.totalorder %s57, %s58
    %p69 = scmp.eq.s32.totalorder %s35, 0
    %p70 = por %p68, %p69
    %p71 = scmp.ne.s32.totalorder %s57, %s58
    %p72 = scmp.eq.s32.totalorder %s36, 3
    %p73 = por %p71, %p72
    %p75 = scmp.ne.s32.totalorder %s58, %s74
    %p76 = scmp.eq.s32.totalorder %s36, 0
    %p77 = por %p75, %p76
    %s78 = ssub.s32 %s38, %s45
    %s79 = ssub.s32 %s37, %s49
    %s80 = sor.u32 %s78, %s79
    %p81 = scmp.eq.s32.totalorder %s80, 0
    %s83 = sadd.s32 %s82, 1
    %s84 = scalar_select %p81, %s82, %s83
    %p87 = pneg %p81
    %p88 = scmp.eq.s32.totalorder %s30, 3
    %p89 = por %p87, %p88
    %p90 = scmp.ne.s32.totalorder %s82, %s85
    %p91 = scmp.eq.s32.totalorder %s30, 0
    %p92 = por %p90, %p91
    %p93 = scmp.ne.s32.totalorder %s82, %s85
    %p94 = scmp.eq.s32.totalorder %s35, 3
    %p95 = por %p93, %p94
    %p96 = scmp.ne.s32.totalorder %s85, %s86
    %p97 = scmp.eq.s32.totalorder %s35, 0
    %p98 = por %p96, %p97
    %p99 = scmp.ne.s32.totalorder %s85, %s86
    %p100 = scmp.eq.s32.totalorder %s36, 3
    %p101 = por %p99, %p100
    %p103 = scmp.ne.s32.totalorder %s86, %s102
    %p104 = scmp.eq.s32.totalorder %s36, 0
    %p105 = por %p103, %p104
    %s106 = ssub.s32 %s38, %s45
    %s107 = ssub.s32 %s37, %s49
    %s108 = sor.u32 %s106, %s107
    %p109 = scmp.eq.s32.totalorder %s108, 0
    %s111 = sadd.s32 %s110, 1
    %s112 = scalar_select %p109, %s110, %s111
    %p115 = pneg %p109
    %p116 = scmp.eq.s32.totalorder %s30, 3
    %p117 = por %p115, %p116
    %p118 = scmp.ne.s32.totalorder %s110, %s113
    %p119 = scmp.eq.s32.totalorder %s30, 0
    %p120 = por %p118, %p119
    %p121 = scmp.ne.s32.totalorder %s110, %s113
    %p122 = scmp.eq.s32.totalorder %s35, 3
    %p123 = por %p121, %p122
    %p124 = scmp.ne.s32.totalorder %s113, %s114
    %p125 = scmp.eq.s32.totalorder %s35, 0
    %p126 = por %p124, %p125
    %p127 = scmp.ne.s32.totalorder %s113, %s114
    %p128 = scmp.eq.s32.totalorder %s36, 3
    %p129 = por %p127, %p128
    %p131 = scmp.ne.s32.totalorder %s114, %s130
    %p132 = scmp.eq.s32.totalorder %s36, 0
    %p133 = por %p131, %p132
    %s135 = sadd.s32 %s134, 1
    %p138 = scmp.eq.s32.totalorder %s30, 3
    %p139 = scmp.ne.s32.totalorder %s134, %s136
    %p140 = scmp.eq.s32.totalorder %s30, 0
    %p141 = por %p139, %p140
    %p142 = scmp.ne.s32.totalorder %s134, %s136
    %p143 = scmp.eq.s32.totalorder %s35, 3
    %p144 = por %p142, %p143
    %p145 = scmp.ne.s32.totalorder %s136, %s137
    %p146 = scmp.eq.s32.totalorder %s35, 0
    %p147 = por %p145, %p146
    %p148 = scmp.ne.s32.totalorder %s136, %s137
    %p149 = scmp.eq.s32.totalorder %s36, 3
    %p150 = por %p148, %p149
    %p152 = scmp.ne.s32.totalorder %s137, %s151
    %p153 = scmp.eq.s32.totalorder %s36, 0
    %p154 = por %p152, %p153
    %s156 = sadd.s32 %s155, 1
    %p159 = scmp.eq.s32.totalorder %s30, 3
    %p160 = scmp.ne.s32.totalorder %s155, %s157
    %p161 = scmp.eq.s32.totalorder %s30, 0
    %p162 = por %p160, %p161
    %p163 = scmp.ne.s32.totalorder %s155, %s157
    %p164 = scmp.eq.s32.totalorder %s35, 3
    %p165 = por %p163, %p164
    %p166 = scmp.ne.s32.totalorder %s157, %s158
    %p167 = scmp.eq.s32.totalorder %s35, 0
    %p168 = por %p166, %p167
    %p169 = scmp.ne.s32.totalorder %s157, %s158
    %p170 = scmp.eq.s32.totalorder %s36, 3
    %p171 = por %p169, %p170
    %p173 = scmp.ne.s32.totalorder %s158, %s172
    %p174 = scmp.eq.s32.totalorder %s36, 0
    %p175 = por %p173, %p174
    %s177 = sadd.s32 %s176, 1
    %p180 = scmp.eq.s32.totalorder %s30, 3
    %p181 = scmp.ne.s32.totalorder %s176, %s178
    %p182 = scmp.eq.s32.totalorder %s30, 0
    %p183 = por %p181, %p182
    %p184 = scmp.ne.s32.totalorder %s176, %s178
    %p185 = scmp.eq.s32.totalorder %s35, 3
    %p186 = por %p184, %p185
    %p187 = scmp.ne.s32.totalorder %s178, %s179
    %p188 = scmp.eq.s32.totalorder %s35, 0
    %p189 = por %p187, %p188
    %p190 = scmp.ne.s32.totalorder %s178, %s179
    %p191 = scmp.eq.s32.totalorder %s36, 3
    %p192 = por %p190, %p191
    %p194 = scmp.ne.s32.totalorder %s179, %s193
    %p195 = scmp.eq.s32.totalorder %s36, 0
    %p196 = por %p194, %p195
    %s198 = sadd.s32 %s197, 1
    %p201 = scmp.eq.s32.totalorder %s30, 3
    %p202 = scmp.ne.s32.totalorder %s197, %s199
    %p203 = scmp.eq.s32.totalorder %s30, 0
    %p204 = por %p202, %p203
    %p205 = scmp.ne.s32.totalorder %s197, %s199
    %p206 = scmp.eq.s32.totalorder %s35, 3
    %p207 = por %p205, %p206
    %p208 = scmp.ne.s32.totalorder %s199, %s200
    %p209 = scmp.eq.s32.totalorder %s35, 0
    %p210 = por %p208, %p209
    %p211 = scmp.ne.s32.totalorder %s199, %s200
    %p212 = scmp.eq.s32.totalorder %s36, 3
    %p213 = por %p211, %p212
    %p215 = scmp.ne.s32.totalorder %s200, %s214
    %p216 = scmp.eq.s32.totalorder %s36, 0
    %p217 = por %p215, %p216
    %s219 = sadd.s32 %s218, 1
    %p222 = scmp.eq.s32.totalorder %s30, 3
    %p223 = scmp.ne.s32.totalorder %s218, %s220
    %p224 = scmp.eq.s32.totalorder %s30, 0
    %p225 = por %p223, %p224
    %p226 = scmp.ne.s32.totalorder %s218, %s220
    %p227 = scmp.eq.s32.totalorder %s35, 3
    %p228 = por %p226, %p227
    %p229 = scmp.ne.s32.totalorder %s220, %s221
    %p230 = scmp.eq.s32.totalorder %s35, 0
    %p231 = por %p229, %p230
    %p232 = scmp.ne.s32.totalorder %s220, %s221
    %p233 = scmp.eq.s32.totalorder %s36, 3
    %p234 = por %p232, %p233
    %p236 = scmp.ne.s32.totalorder %s221, %s235
    %p237 = scmp.eq.s32.totalorder %s36, 0
    %p238 = por %p236, %p237
    %s240 = sadd.s32 %s239, 1
    %p243 = scmp.eq.s32.totalorder %s30, 3
    %p244 = scmp.ne.s32.totalorder %s239, %s241
    %p245 = scmp.eq.s32.totalorder %s30, 0
    %p246 = por %p244, %p245
    %p247 = scmp.ne.s32.totalorder %s239, %s241
    %p248 = scmp.eq.s32.totalorder %s35, 3
    %p249 = por %p247, %p248
    %p250 = scmp.ne.s32.totalorder %s241, %s242
    %p251 = scmp.eq.s32.totalorder %s35, 0
    %p252 = por %p250, %p251
    %p253 = scmp.ne.s32.totalorder %s241, %s242
    %p254 = scmp.eq.s32.totalorder %s36, 3
    %p255 = por %p253, %p254
    %p257 = scmp.ne.s32.totalorder %s242, %s256
    %p258 = scmp.eq.s32.totalorder %s36, 0
    %p259 = por %p257, %p258
    %s261 = sadd.s32 %s260, 1
    %p264 = scmp.eq.s32.totalorder %s30, 3
    %p265 = scmp.ne.s32.totalorder %s260, %s262
    %p266 = scmp.eq.s32.totalorder %s30, 0
    %p267 = por %p265, %p266
    %p268 = scmp.ne.s32.totalorder %s260, %s262
    %p269 = scmp.eq.s32.totalorder %s35, 3
    %p270 = por %p268, %p269
    %p271 = scmp.ne.s32.totalorder %s262, %s263
    %p272 = scmp.eq.s32.totalorder %s35, 0
    %p273 = por %p271, %p272
    %p274 = scmp.ne.s32.totalorder %s262, %s263
    %p275 = scmp.eq.s32.totalorder %s36, 3
    %p276 = por %p274, %p275
    %p278 = scmp.ne.s32.totalorder %s263, %s277
    %p279 = scmp.eq.s32.totalorder %s36, 0
    %p280 = por %p278, %p279
    %s282 = sadd.s32 %s281, 1
    %p285 = scmp.eq.s32.totalorder %s30, 3
    %p286 = scmp.ne.s32.totalorder %s281, %s283
    %p287 = scmp.eq.s32.totalorder %s30, 0
    %p288 = por %p286, %p287
    %p289 = scmp.ne.s32.totalorder %s281, %s283
    %p290 = scmp.eq.s32.totalorder %s35, 3
    %p291 = por %p289, %p290
    %p292 = scmp.ne.s32.totalorder %s283, %s284
    %p293 = scmp.eq.s32.totalorder %s35, 0
    %p294 = por %p292, %p293
    %p295 = scmp.ne.s32.totalorder %s283, %s284
    %p296 = scmp.eq.s32.totalorder %s36, 3
    %p297 = por %p295, %p296
    %p299 = scmp.ne.s32.totalorder %s284, %s298
    %p300 = scmp.eq.s32.totalorder %s36, 0
    %p301 = por %p299, %p300
    %s303 = sadd.s32 %s302, 1
    %p306 = scmp.eq.s32.totalorder %s30, 3
    %p307 = scmp.ne.s32.totalorder %s302, %s304
    %p308 = scmp.eq.s32.totalorder %s30, 0
    %p309 = por %p307, %p308
    %p310 = scmp.ne.s32.totalorder %s302, %s304
    %p311 = scmp.eq.s32.totalorder %s35, 3
    %p312 = por %p310, %p311
    %p313 = scmp.ne.s32.totalorder %s304, %s305
    %p314 = scmp.eq.s32.totalorder %s35, 0
    %p315 = por %p313, %p314
    %p316 = scmp.ne.s32.totalorder %s304, %s305
    %p317 = scmp.eq.s32.totalorder %s36, 3
    %p318 = por %p316, %p317
    %p320 = scmp.ne.s32.totalorder %s305, %s319
    %p321 = scmp.eq.s32.totalorder %s36, 0
    %p322 = por %p320, %p321
    %s324 = sadd.s32 %s323, 1
    %p327 = scmp.eq.s32.totalorder %s30, 3
    %p328 = scmp.ne.s32.totalorder %s323, %s325
    %p329 = scmp.eq.s32.totalorder %s30, 0
    %p330 = por %p328, %p329
    %p331 = scmp.ne.s32.totalorder %s323, %s325
    %p332 = scmp.eq.s32.totalorder %s35, 3
    %p333 = por %p331, %p332
    %p334 = scmp.ne.s32.totalorder %s325, %s326
    %p335 = scmp.eq.s32.totalorder %s35, 0
    %p336 = por %p334, %p335
    %p337 = scmp.ne.s32.totalorder %s325, %s326
    %p338 = scmp.eq.s32.totalorder %s36, 3
    %p339 = por %p337, %p338
    %p341 = scmp.ne.s32.totalorder %s326, %s340
    %p342 = scmp.eq.s32.totalorder %s36, 0
    %p343 = por %p341, %p342
    %s345 = sadd.s32 %s344, 1
    %p348 = scmp.eq.s32.totalorder %s30, 3
    %p349 = scmp.ne.s32.totalorder %s344, %s346
    %p350 = scmp.eq.s32.totalorder %s30, 0
    %p351 = por %p349, %p350
    %p352 = scmp.ne.s32.totalorder %s344, %s346
    %p353 = scmp.eq.s32.totalorder %s35, 3
    %p354 = por %p352, %p353
    %p355 = scmp.ne.s32.totalorder %s346, %s347
    %p356 = scmp.eq.s32.totalorder %s35, 0
    %p357 = por %p355, %p356
    %p358 = scmp.ne.s32.totalorder %s346, %s347
    %p359 = scmp.eq.s32.totalorder %s36, 3
    %p360 = por %p358, %p359
    %p362 = scmp.ne.s32.totalorder %s347, %s361
    %p363 = scmp.eq.s32.totalorder %s36, 0
    %p364 = por %p362, %p363
    %s366 = sadd.s32 %s365, 1
    %p369 = scmp.eq.s32.totalorder %s30, 3
    %p370 = scmp.ne.s32.totalorder %s365, %s367
    %p371 = scmp.eq.s32.totalorder %s30, 0
    %p372 = por %p370, %p371
    %p373 = scmp.ne.s32.totalorder %s365, %s367
    %p374 = scmp.eq.s32.totalorder %s35, 3
    %p375 = por %p373, %p374
    %p376 = scmp.ne.s32.totalorder %s367, %s368
    %p377 = scmp.eq.s32.totalorder %s35, 0
    %p378 = por %p376, %p377
    %p379 = scmp.ne.s32.totalorder %s367, %s368
    %p380 = scmp.eq.s32.totalorder %s36, 3
    %p381 = por %p379, %p380
    %p383 = scmp.ne.s32.totalorder %s368, %s382
    %p384 = scmp.eq.s32.totalorder %s36, 0
    %p385 = por %p383, %p384
    %s387 = sadd.s32 %s386, 1
    %p390 = scmp.eq.s32.totalorder %s30, 3
    %p391 = scmp.ne.s32.totalorder %s386, %s388
    %p392 = scmp.eq.s32.totalorder %s30, 0
    %p393 = por %p391, %p392
    %p394 = scmp.ne.s32.totalorder %s386, %s388
    %p395 = scmp.eq.s32.totalorder %s35, 3
    %p396 = por %p394, %p395
    %p397 = scmp.ne.s32.totalorder %s388, %s389
    %p398 = scmp.eq.s32.totalorder %s35, 0
    %p399 = por %p397, %p398
    %p400 = scmp.ne.s32.totalorder %s388, %s389
    %p401 = scmp.eq.s32.totalorder %s36, 3
    %p402 = por %p400, %p401
    %p404 = scmp.ne.s32.totalorder %s389, %s403
    %p405 = scmp.eq.s32.totalorder %s36, 0
    %p406 = por %p404, %p405
    %s407 = ssub.s32 %s37, %s49
    %p408 = scmp.eq.s32.totalorder %s407, 0
    %s410 = sadd.s32 %s409, 1
    %s411 = scalar_select %p408, %s409, %s410
    %p414 = pneg %p408
    %p415 = scmp.eq.s32.totalorder %s30, 3
    %p416 = por %p414, %p415
    %p417 = scmp.ne.s32.totalorder %s409, %s412
    %p418 = scmp.eq.s32.totalorder %s30, 0
    %p419 = por %p417, %p418
    %p420 = scmp.ne.s32.totalorder %s409, %s412
    %p421 = scmp.eq.s32.totalorder %s35, 3
    %p422 = por %p420, %p421
    %p423 = scmp.ne.s32.totalorder %s412, %s413
    %p424 = scmp.eq.s32.totalorder %s35, 0
    %p425 = por %p423, %p424
    %p426 = scmp.ne.s32.totalorder %s412, %s413
    %p427 = scmp.eq.s32.totalorder %s36, 3
    %p428 = por %p426, %p427
    %p430 = scmp.ne.s32.totalorder %s413, %s429
    %p431 = scmp.eq.s32.totalorder %s36, 0
    %p432 = por %p430, %p431
    %s433 = ssub.s32 %s37, %s49
    %p434 = scmp.eq.s32.totalorder %s433, 0
    %s436 = sadd.s32 %s435, 1
    %s437 = scalar_select %p434, %s435, %s436
    %p440 = pneg %p434
    %p441 = scmp.eq.s32.totalorder %s30, 3
    %p442 = por %p440, %p441
    %p443 = scmp.ne.s32.totalorder %s435, %s438
    %p444 = scmp.eq.s32.totalorder %s30, 0
    %p445 = por %p443, %p444
    %p446 = scmp.ne.s32.totalorder %s435, %s438
    %p447 = scmp.eq.s32.totalorder %s35, 3
    %p448 = por %p446, %p447
    %p449 = scmp.ne.s32.totalorder %s438, %s439
    %p450 = scmp.eq.s32.totalorder %s35, 0
    %p451 = por %p449, %p450
    %p452 = scmp.ne.s32.totalorder %s438, %s439
    %p453 = scmp.eq.s32.totalorder %s36, 3
    %p454 = por %p452, %p453
    %p456 = scmp.ne.s32.totalorder %s439, %s455
    %p457 = scmp.eq.s32.totalorder %s36, 0
    %p458 = por %p456, %p457
    %s459 = ssub.s32 %s37, %s49
    %p460 = scmp.eq.s32.totalorder %s459, 0
    %s462 = sadd.s32 %s461, 1
    %s463 = scalar_select %p460, %s461, %s462
    %p466 = pneg %p460
    %p467 = scmp.eq.s32.totalorder %s30, 3
    %p468 = por %p466, %p467
    %p469 = scmp.ne.s32.totalorder %s461, %s464
    %p470 = scmp.eq.s32.totalorder %s30, 0
    %p471 = por %p469, %p470
    %p472 = scmp.ne.s32.totalorder %s461, %s464
    %p473 = scmp.eq.s32.totalorder %s35, 3
    %p474 = por %p472, %p473
    %p475 = scmp.ne.s32.totalorder %s464, %s465
    %p476 = scmp.eq.s32.totalorder %s35, 0
    %p477 = por %p475, %p476
    %p478 = scmp.ne.s32.totalorder %s464, %s465
    %p479 = scmp.eq.s32.totalorder %s36, 3
    %p480 = por %p478, %p479
    %p482 = scmp.ne.s32.totalorder %s465, %s481
    %p483 = scmp.eq.s32.totalorder %s36, 0
    %p484 = por %p482, %p483
    %s485 = ssub.s32 %s37, %s49
    %p486 = scmp.eq.s32.totalorder %s485, 0
    %s488 = sadd.s32 %s487, 1
    %s489 = scalar_select %p486, %s487, %s488
    %p492 = pneg %p486
    %p493 = scmp.eq.s32.totalorder %s30, 3
    %p494 = por %p492, %p493
    %p495 = scmp.ne.s32.totalorder %s487, %s490
    %p496 = scmp.eq.s32.totalorder %s30, 0
    %p497 = por %p495, %p496
    %p498 = scmp.ne.s32.totalorder %s487, %s490
    %p499 = scmp.eq.s32.totalorder %s35, 3
    %p500 = por %p498, %p499
    %p501 = scmp.ne.s32.totalorder %s490, %s491
    %p502 = scmp.eq.s32.totalorder %s35, 0
    %p503 = por %p501, %p502
    %p504 = scmp.ne.s32.totalorder %s490, %s491
    %p505 = scmp.eq.s32.totalorder %s36, 3
    %p506 = por %p504, %p505
    %p508 = scmp.ne.s32.totalorder %s491, %s507
    %p509 = scmp.eq.s32.totalorder %s36, 0
    %p510 = por %p508, %p509
    %s511 = ssub.s32 %s37, %s49
    %p512 = scmp.eq.s32.totalorder %s511, 0
    %s514 = sadd.s32 %s513, 1
    %s515 = scalar_select %p512, %s513, %s514
    %p518 = pneg %p512
    %p519 = scmp.eq.s32.totalorder %s30, 3
    %p520 = por %p518, %p519
    %p521 = scmp.ne.s32.totalorder %s513, %s516
    %p522 = scmp.eq.s32.totalorder %s30, 0
    %p523 = por %p521, %p522
    %p524 = scmp.ne.s32.totalorder %s513, %s516
    %p525 = scmp.eq.s32.totalorder %s35, 3
    %p526 = por %p524, %p525
    %p527 = scmp.ne.s32.totalorder %s516, %s517
    %p528 = scmp.eq.s32.totalorder %s35, 0
    %p529 = por %p527, %p528
    %p530 = scmp.ne.s32.totalorder %s516, %s517
    %p531 = scmp.eq.s32.totalorder %s36, 3
    %p532 = por %p530, %p531
    %p534 = scmp.ne.s32.totalorder %s517, %s533
    %p535 = scmp.eq.s32.totalorder %s36, 0
    %p536 = por %p534, %p535
    %p537 = scmp.le.s32.totalorder 1, %s30
    %p538 = scmp.lt.s32.totalorder %s30, 5
    %p539 = pnand %p537, %p538
    %p540 = pneg %p539
    // Predicated region
    $region9: #{stage_net_forward.1} parent=5 // pred_check
      _
    $region10: #{stage_net_forward.1} parent=5 // pred_check_branch
      %542 = sbr.rel (%p539) target = $region12
    $region11: #{stage_net_forward.1} parent=5 // pred_region
      %s543 = ssub.s32 %s30, 1
      // Predicated region
      $region13: #{stage_net_forward.1} parent=11 // pred_check
        %p544 = pneg %p147
      $region14: #{stage_net_forward.1} parent=11 // pred_check_branch
        %546 = sbr.rel (%p544) target = $region16
      $region15: #{stage_net_forward.1} parent=11 // pred_region
        _
      $region16: #{stage_net_forward.1} parent=11 // pred_fallthru
        _
      // Predicated region
      $region17: #{stage_net_forward.1} parent=11 // pred_check
        %p547 = pneg %p168
      $region18: #{stage_net_forward.1} parent=11 // pred_check_branch
        %549 = sbr.rel (%p547) target = $region20
      $region19: #{stage_net_forward.1} parent=11 // pred_region
        _
      $region20: #{stage_net_forward.1} parent=11 // pred_fallthru
        _
      // Predicated region
      $region21: #{stage_net_forward.1} parent=11 // pred_check
        %p550 = pneg %p189
      $region22: #{stage_net_forward.1} parent=11 // pred_check_branch
        %552 = sbr.rel (%p550) target = $region24
      $region23: #{stage_net_forward.1} parent=11 // pred_region
        _
      $region24: #{stage_net_forward.1} parent=11 // pred_fallthru
        _
      // Predicated region
      $region25: #{stage_net_forward.1} parent=11 // pred_check
        %p553 = pneg %p210
      $region26: #{stage_net_forward.1} parent=11 // pred_check_branch
        %555 = sbr.rel (%p553) target = $region28
      $region27: #{stage_net_forward.1} parent=11 // pred_region
        _
      $region28: #{stage_net_forward.1} parent=11 // pred_fallthru
        _
      // Predicated region
      $region29: #{stage_net_forward.1} parent=11 // pred_check
        %p556 = pneg %p231
      $region30: #{stage_net_forward.1} parent=11 // pred_check_branch
        %558 = sbr.rel (%p556) target = $region32
      $region31: #{stage_net_forward.1} parent=11 // pred_region
        _
      $region32: #{stage_net_forward.1} parent=11 // pred_fallthru
        _
      // Predicated region
      $region33: #{stage_net_forward.1} parent=11 // pred_check
        %p559 = pneg %p252
      $region34: #{stage_net_forward.1} parent=11 // pred_check_branch
        %561 = sbr.rel (%p559) target = $region36
      $region35: #{stage_net_forward.1} parent=11 // pred_region
        _
      $region36: #{stage_net_forward.1} parent=11 // pred_fallthru
        _
      // Predicated region
      $region37: #{stage_net_forward.1} parent=11 // pred_check
        %p562 = pneg %p273
      $region38: #{stage_net_forward.1} parent=11 // pred_check_branch
        %564 = sbr.rel (%p562) target = $region40
      $region39: #{stage_net_forward.1} parent=11 // pred_region
        _
      $region40: #{stage_net_forward.1} parent=11 // pred_fallthru
        _
      // Predicated region
      $region41: #{stage_net_forward.1} parent=11 // pred_check
        %p565 = pneg %p294
      $region42: #{stage_net_forward.1} parent=11 // pred_check_branch
        %567 = sbr.rel (%p565) target = $region44
      $region43: #{stage_net_forward.1} parent=11 // pred_region
        _
      $region44: #{stage_net_forward.1} parent=11 // pred_fallthru
        _
      // Predicated region
      $region45: #{stage_net_forward.1} parent=11 // pred_check
        %p568 = pneg %p315
      $region46: #{stage_net_forward.1} parent=11 // pred_check_branch
        %570 = sbr.rel (%p568) target = $region48
      $region47: #{stage_net_forward.1} parent=11 // pred_region
        _
      $region48: #{stage_net_forward.1} parent=11 // pred_fallthru
        _
      // Predicated region
      $region49: #{stage_net_forward.1} parent=11 // pred_check
        %p571 = pneg %p336
      $region50: #{stage_net_forward.1} parent=11 // pred_check_branch
        %573 = sbr.rel (%p571) target = $region52
      $region51: #{stage_net_forward.1} parent=11 // pred_region
        _
      $region52: #{stage_net_forward.1} parent=11 // pred_fallthru
        _
      // Predicated region
      $region53: #{stage_net_forward.1} parent=11 // pred_check
        %p574 = pneg %p357
      $region54: #{stage_net_forward.1} parent=11 // pred_check_branch
        %576 = sbr.rel (%p574) target = $region56
      $region55: #{stage_net_forward.1} parent=11 // pred_region
        _
      $region56: #{stage_net_forward.1} parent=11 // pred_fallthru
        _
      // Predicated region
      $region57: #{stage_net_forward.1} parent=11 // pred_check
        %p577 = pneg %p378
      $region58: #{stage_net_forward.1} parent=11 // pred_check_branch
        %579 = sbr.rel (%p577) target = $region60
      $region59: #{stage_net_forward.1} parent=11 // pred_region
        _
      $region60: #{stage_net_forward.1} parent=11 // pred_fallthru
        _
      // Predicated region
      $region61: #{stage_net_forward.1} parent=11 // pred_check
        %p580 = pneg %p399
      $region62: #{stage_net_forward.1} parent=11 // pred_check_branch
        %582 = sbr.rel (%p580) target = $region64
      $region63: #{stage_net_forward.1} parent=11 // pred_region
        _
      $region64: #{stage_net_forward.1} parent=11 // pred_fallthru
        _
    $region12: #{stage_net_forward.1} parent=5 // pred_fallthru
      _
    %p583 = scmp.lt.s32.totalorder %s30, 4
    // Predicated region
    $region65: #{stage_net_forward.1} parent=5 // pred_check
      %p584 = pneg %p583
    $region66: #{stage_net_forward.1} parent=5 // pred_check_branch
      %586 = sbr.rel (%p584) target = $region68
    $region67: #{stage_net_forward.1} parent=5 // pred_region
      // Predicated region
      $region69: #{stage_net_forward.1} parent=67 // pred_check
        %p587 = pneg %p64
      $region70: #{stage_net_forward.1} parent=67 // pred_check_branch
        %589 = sbr.rel (%p587) target = $region72
      $region71: #{stage_net_forward.1} parent=67 // pred_region
        %p590 = scmp.lt.s32.totalorder %s38, 1
        %s591 = scalar_select %p590, %s38, 1
        %p592 = scmp.lt.s32.totalorder %s37, 1
        %s593 = scalar_select %p592, %s37, 1
        %s594 = smul.addr %s593, 2
        %s595 = smul.addr %s591, 4
        %s596 = sadd.s32 %s594, %s595
        %s597 = smul.addr %s596, 2
        %s598 = scalar_lea.vmem %s0, %s597
      $region72: #{stage_net_forward.1} parent=67 // pred_fallthru
        _
      // Predicated region
      $region73: #{stage_net_forward.1} parent=67 // pred_check
        %p599 = pneg %p92
      $region74: #{stage_net_forward.1} parent=67 // pred_check_branch
        %601 = sbr.rel (%p599) target = $region76
      $region75: #{stage_net_forward.1} parent=67 // pred_region
        %p602 = scmp.lt.s32.totalorder %s38, 1
        %s603 = scalar_select %p602, %s38, 1
        %p604 = scmp.lt.s32.totalorder %s37, 1
        %s605 = scalar_select %p604, %s37, 1
        %s606 = smul.addr %s605, 8
        %s607 = smul.addr %s603, 16
        %s608 = sadd.s32 %s606, %s607
        %s609 = smul.addr %s608, 4
        %s610 = scalar_lea.vmem %s1, %s609
      $region76: #{stage_net_forward.1} parent=67 // pred_fallthru
        _
      // Predicated region
      $region77: #{stage_net_forward.1} parent=67 // pred_check
        %p611 = pneg %p120
      $region78: #{stage_net_forward.1} parent=67 // pred_check_branch
        %613 = sbr.rel (%p611) target = $region80
      $region79: #{stage_net_forward.1} parent=67 // pred_region
        %p614 = scmp.lt.s32.totalorder %s38, 1
        %s615 = scalar_select %p614, %s38, 1
        %p616 = scmp.lt.s32.totalorder %s37, 1
        %s617 = scalar_select %p616, %s37, 1
        %s618 = smul.addr %s617, 2
        %s619 = smul.addr %s615, 4
        %s620 = sadd.s32 %s618, %s619
        %s621 = scalar_lea.vmem %s2, %s620
      $region80: #{stage_net_forward.1} parent=67 // pred_fallthru
        _
      // Predicated region
      $region81: #{stage_net_forward.1} parent=67 // pred_check
        %p622 = pneg %p419
      $region82: #{stage_net_forward.1} parent=67 // pred_check_branch
        %624 = sbr.rel (%p622) target = $region84
      $region83: #{stage_net_forward.1} parent=67 // pred_region
        %p625 = scmp.lt.s32.totalorder %s37, 1
        %s626 = scalar_select %p625, %s37, 1
        %s627 = smul.addr %s626, 8
        %s628 = scalar_lea.vmem %s16, %s627
      $region84: #{stage_net_forward.1} parent=67 // pred_fallthru
        _
    $region68: #{stage_net_forward.1} parent=5 // pred_fallthru
      _
    %p629 = scmp.le.s32.totalorder 1, %s30
    %p630 = scmp.lt.s32.totalorder %s30, 5
    %p631 = pnand %p629, %p630
    %p632 = pneg %p631
    // Predicated region
    $region85: #{stage_net_forward.1} parent=5 // pred_check
      _
    $region86: #{stage_net_forward.1} parent=5 // pred_check_branch
      %634 = sbr.rel (%p631) target = $region88
    $region87: #{stage_net_forward.1} parent=5 // pred_region
      %s635 = ssub.s32 %s30, 1
      %p636 = scmp.lt.s32.totalorder %s40, 1
      %s637 = scalar_select %p636, %s40, 1
      %p638 = scmp.lt.s32.totalorder %s39, 1
      %s639 = scalar_select %p638, %s39, 1
      %s640 = smul.addr %s639, 2
      %s641 = smul.addr %s637, 4
      %s642 = sadd.s32 %s640, %s641
      %s643 = smul.addr %s642, 2
      %s644 = scalar_lea.vmem %s0, %s643
      %p645 = pneg %p70
      %p646 = pneg %p67
      %p647 = scmp.lt.s32.totalorder %s40, 1
      %s648 = scalar_select %p647, %s40, 1
      %p649 = scmp.lt.s32.totalorder %s39, 1
      %s650 = scalar_select %p649, %s39, 1
      %s651 = smul.addr %s650, 8
      %s652 = smul.addr %s648, 16
      %s653 = sadd.s32 %s651, %s652
      %s654 = smul.addr %s653, 4
      %s655 = scalar_lea.vmem %s1, %s654
      %p656 = pneg %p98
      %p657 = pneg %p95
      %p658 = scmp.lt.s32.totalorder %s40, 1
      %s659 = scalar_select %p658, %s40, 1
      %p660 = scmp.lt.s32.totalorder %s39, 1
      %s661 = scalar_select %p660, %s39, 1
      %s662 = smul.addr %s661, 2
      %s663 = smul.addr %s659, 4
      %s664 = sadd.s32 %s662, %s663
      %s665 = scalar_lea.vmem %s2, %s664
      %p666 = pneg %p126
      %p667 = pneg %p123
      %p668 = pneg %p147
      %p669 = pneg %p144
      %p670 = pneg %p168
      %p671 = pneg %p165
      %p672 = pneg %p189
      %p673 = pneg %p186
      %p674 = pneg %p210
      %p675 = pneg %p207
      %p676 = pneg %p231
      %p677 = pneg %p228
      %p678 = pneg %p252
      %p679 = pneg %p249
      %p680 = pneg %p273
      %p681 = pneg %p270
      %p682 = pneg %p294
      %p683 = pneg %p291
      %p684 = pneg %p315
      %p685 = pneg %p312
      %p686 = pneg %p336
      %p687 = pneg %p333
      %p688 = pneg %p357
      %p689 = pneg %p354
      %p690 = pneg %p378
      %p691 = pneg %p375
      %p692 = pneg %p399
      %p693 = pneg %p396
      %p694 = scmp.lt.s32.totalorder %s39, 1
      %s695 = scalar_select %p694, %s39, 1
      %s696 = smul.addr %s695, 8
      %s697 = scalar_lea.vmem %s16, %s696
      %p698 = pneg %p425
      %p699 = pneg %p422
      %p700 = pneg %p451
      %p701 = pneg %p448
      %p702 = scmp.lt.s32.totalorder %s39, 1
      %s703 = scalar_select %p702, %s39, 1
      %s704 = smul.addr %s703, 2
      %s705 = smul.addr %s704, 8
      %s706 = scalar_lea.vmem %s17, %s705
      %p707 = pneg %p477
      %p708 = pneg %p474
      %p709 = scmp.lt.s32.totalorder %s39, 1
      %s710 = scalar_select %p709, %s39, 1
      %s711 = smul.addr %s710, 2
      %s712 = scalar_lea.vmem %s18, %s711
      %p713 = pneg %p503
      %p714 = pneg %p500
      %p715 = scmp.lt.s32.totalorder %s39, 1
      %s716 = scalar_select %p715, %s39, 1
      %s717 = smul.addr %s716, 2
      %s718 = scalar_lea.vmem %s19, %s717
      %p719 = pneg %p529
      %p720 = pneg %p526
      %p721 = scmp.lt.s32.totalorder %s39, 1
      %s722 = scalar_select %p721, %s39, 1
      %s723 = smul.addr %s722, 2
      %s724 = scalar_lea.vmem %s20, %s723
      %p725 = scmp.lt.s32.totalorder %s40, 1
      %s726 = scalar_select %p725, %s40, 1
      %p727 = scmp.lt.s32.totalorder %s39, 1
      %s728 = scalar_select %p727, %s39, 1
      %s729 = smul.addr %s728, 2
      %s730 = smul.addr %s726, 4
      %s731 = sadd.s32 %s729, %s730
      %s732 = smul.addr %s731, 2
      %s733 = scalar_lea.vmem %s0, %s732
      %p734 = scmp.lt.s32.totalorder %s40, 1
      %s735 = scalar_select %p734, %s40, 1
      %p736 = scmp.lt.s32.totalorder %s39, 1
      %s737 = scalar_select %p736, %s39, 1
      %s738 = smul.addr %s737, 8
      %s739 = smul.addr %s735, 16
      %s740 = sadd.s32 %s738, %s739
      %s741 = smul.addr %s740, 4
      %s742 = scalar_lea.vmem %s1, %s741
      %p743 = scmp.lt.s32.totalorder %s40, 1
      %s744 = scalar_select %p743, %s40, 1
      %p745 = scmp.lt.s32.totalorder %s39, 1
      %s746 = scalar_select %p745, %s39, 1
      %s747 = smul.addr %s746, 2
      %s748 = smul.addr %s744, 4
      %s749 = sadd.s32 %s747, %s748
      %s750 = scalar_lea.vmem %s2, %s749
      %p751 = scmp.lt.s32.totalorder %s39, 1
      %s752 = scalar_select %p751, %s39, 1
      %s753 = smul.addr %s752, 8
      %s754 = scalar_lea.vmem %s16, %s753
      %p755 = scmp.lt.s32.totalorder %s39, 1
      %s756 = scalar_select %p755, %s39, 1
      %s757 = smul.addr %s756, 2
      %s758 = smul.addr %s757, 8
      %s759 = scalar_lea.vmem %s17, %s758
      %p760 = scmp.lt.s32.totalorder %s39, 1
      %s761 = scalar_select %p760, %s39, 1
      %s762 = smul.addr %s761, 2
      %s763 = scalar_lea.vmem %s18, %s762
      %p764 = scmp.lt.s32.totalorder %s39, 1
      %s765 = scalar_select %p764, %s39, 1
      %s766 = smul.addr %s765, 2
      %s767 = scalar_lea.vmem %s19, %s766
      %p768 = scmp.lt.s32.totalorder %s39, 1
      %s769 = scalar_select %p768, %s39, 1
      %s770 = smul.addr %s769, 2
      %s771 = scalar_lea.vmem %s20, %s770
      %v773 = vld [vmem:[%s733] sm:$0xf]
      %v774 = vunpack.c.l.bf16 %v773
      %v775 = vld [vmem:[%s12] sm:$0xf]
      %777 = vset.pattern.permute.xlu0 0
      %778 = vperm.xlu0 %777, %v775
      %v779 = vpop.permute.xlu0 %778
      %v781 = vunpack.c.l.s4 839922192
      %v782 = vunpack.c.0.s8 %v781
      %v783 = vlaneseq
      %v784 = vshrl.u32 %v783, 7
      %v785 = vsub.s32 %v782, %v784
      %v786 = vrot.slane %v779, %v785
      %v788 = vmul.f32 %v774, %v786
      %v789 = vld [vmem:[%s742] sm:$0xff]
      %v790 = vunpack.c.l.bf16 %v789
      %v791 = vunpack.c.h.bf16 %v789
      %v793 = vlaneseq
      %v794 = vshrl.u32 %v793, 7
      %v795 = vsub.s32 0, %v794
      %v796 = vrot.slane %v774, %v795
      %v797 = vlaneseq
      %v798 = vshrl.u32 %v797, 7
      %v799 = vsub.s32 4, %v798
      %v800 = vrot.slane %v774, %v799
      %v803 = vlaneseq
      %v804 = vshrl.u32 %v803, 7
      %v805 = vsub.s32 0, %v804
      %v806 = vrot.slane %v796, %v805
      %v807 = vlaneseq
      %v808 = vshrl.u32 %v807, 7
      %v809 = vsub.s32 0, %v808
      %v810 = vrot.slane %v800, %v809
      %v811 = vmul.f32 %v790, %v806
      %v812 = vmul.f32 %v791, %v810
      %v814 = vlaneseq
      %v815 = vshrl.u32 %v814, 7
      %v816 = vsub.s32 0, %v815
      %v817 = vrot.slane %v788, %v816
      %v818 = vlaneseq
      %v819 = vshrl.u32 %v818, 7
      %v820 = vsub.s32 4, %v819
      %v821 = vrot.slane %v788, %v820
      %v824 = vlaneseq
      %v825 = vshrl.u32 %v824, 7
      %v826 = vsub.s32 0, %v825
      %v827 = vrot.slane %v817, %v826
      %v828 = vlaneseq
      %v829 = vshrl.u32 %v828, 7
      %v830 = vsub.s32 0, %v829
      %v831 = vrot.slane %v821, %v830
      %v832 = vmul.f32 %v790, %v827
      %v833 = vmul.f32 %v791, %v831
      %s834 = scalar_lea.vmem %s742, 8
      %v835 = vld [vmem:[%s834] sm:$0xff]
      %v836 = vunpack.c.l.bf16 %v835
      %v837 = vunpack.c.h.bf16 %v835
      %v838 = vlaneseq
      %v839 = vshrl.u32 %v838, 7
      %v840 = vsub.s32 1, %v839
      %v841 = vrot.slane %v774, %v840
      %v842 = vlaneseq
      %v843 = vshrl.u32 %v842, 7
      %v844 = vsub.s32 5, %v843
      %v845 = vrot.slane %v774, %v844
      %v848 = vlaneseq
      %v849 = vshrl.u32 %v848, 7
      %v850 = vsub.s32 1, %v849
      %v851 = vrot.slane %v841, %v850
      %v852 = vlaneseq
      %v853 = vshrl.u32 %v852, 7
      %v854 = vsub.s32 1, %v853
      %v855 = vrot.slane %v845, %v854
      %v856 = vmul.f32 %v836, %v851
      %v857 = vmul.f32 %v837, %v855
      %v858 = vadd.f32 %v811, %v856
      %v859 = vadd.f32 %v812, %v857
      %v860 = vlaneseq
      %v861 = vshrl.u32 %v860, 7
      %v862 = vsub.s32 1, %v861
      %v863 = vrot.slane %v788, %v862
      %v864 = vlaneseq
      %v865 = vshrl.u32 %v864, 7
      %v866 = vsub.s32 5, %v865
      %v867 = vrot.slane %v788, %v866
      %v870 = vlaneseq
      %v871 = vshrl.u32 %v870, 7
      %v872 = vsub.s32 1, %v871
      %v873 = vrot.slane %v863, %v872
      %v874 = vlaneseq
      %v875 = vshrl.u32 %v874, 7
      %v876 = vsub.s32 1, %v875
      %v877 = vrot.slane %v867, %v876
      %v878 = vmul.f32 %v836, %v873
      %v879 = vmul.f32 %v837, %v877
      %v880 = vadd.f32 %v832, %v878
      %v881 = vadd.f32 %v833, %v879
      %s882 = scalar_lea.vmem %s742, 16
      %v883 = vld [vmem:[%s882] sm:$0xff]
      %v884 = vunpack.c.l.bf16 %v883
      %v885 = vunpack.c.h.bf16 %v883
      %v886 = vlaneseq
      %v887 = vshrl.u32 %v886, 7
      %v888 = vsub.s32 2, %v887
      %v889 = vrot.slane %v774, %v888
      %v890 = vlaneseq
      %v891 = vshrl.u32 %v890, 7
      %v892 = vsub.s32 6, %v891
      %v893 = vrot.slane %v774, %v892
      %v896 = vlaneseq
      %v897 = vshrl.u32 %v896, 7
      %v898 = vsub.s32 2, %v897
      %v899 = vrot.slane %v889, %v898
      %v900 = vlaneseq
      %v901 = vshrl.u32 %v900, 7
      %v902 = vsub.s32 2, %v901
      %v903 = vrot.slane %v893, %v902
      %v904 = vmul.f32 %v884, %v899
      %v905 = vmul.f32 %v885, %v903
      %v906 = vadd.f32 %v858, %v904
      %v907 = vadd.f32 %v859, %v905
      %v908 = vlaneseq
      %v909 = vshrl.u32 %v908, 7
      %v910 = vsub.s32 2, %v909
      %v911 = vrot.slane %v788, %v910
      %v912 = vlaneseq
      %v913 = vshrl.u32 %v912, 7
      %v914 = vsub.s32 6, %v913
      %v915 = vrot.slane %v788, %v914
      %v918 = vlaneseq
      %v919 = vshrl.u32 %v918, 7
      %v920 = vsub.s32 2, %v919
      %v921 = vrot.slane %v911, %v920
      %v922 = vlaneseq
      %v923 = vshrl.u32 %v922, 7
      %v924 = vsub.s32 2, %v923
      %v925 = vrot.slane %v915, %v924
      %v926 = vmul.f32 %v884, %v921
      %v927 = vmul.f32 %v885, %v925
      %v928 = vadd.f32 %v880, %v926
      %v929 = vadd.f32 %v881, %v927
      %s930 = scalar_lea.vmem %s742, 24
      %v931 = vld [vmem:[%s930] sm:$0xff]
      %v932 = vunpack.c.l.bf16 %v931
      %v933 = vunpack.c.h.bf16 %v931
      %v934 = vlaneseq
      %v935 = vshrl.u32 %v934, 7
      %v936 = vsub.s32 3, %v935
      %v937 = vrot.slane %v774, %v936
      %v938 = vlaneseq
      %v939 = vshrl.u32 %v938, 7
      %v940 = vsub.s32 7, %v939
      %v941 = vrot.slane %v774, %v940
      %v944 = vlaneseq
      %v945 = vshrl.u32 %v944, 7
      %v946 = vsub.s32 3, %v945
      %v947 = vrot.slane %v937, %v946
      %v948 = vlaneseq
      %v949 = vshrl.u32 %v948, 7
      %v950 = vsub.s32 3, %v949
      %v951 = vrot.slane %v941, %v950
      %v952 = vmul.f32 %v932, %v947
      %v953 = vmul.f32 %v933, %v951
      %v954 = vadd.f32 %v906, %v952
      %v955 = vadd.f32 %v907, %v953
      %v956 = vlaneseq
      %v957 = vshrl.u32 %v956, 7
      %v958 = vsub.s32 3, %v957
      %v959 = vrot.slane %v788, %v958
      %v960 = vlaneseq
      %v961 = vshrl.u32 %v960, 7
      %v962 = vsub.s32 7, %v961
      %v963 = vrot.slane %v788, %v962
      %v966 = vlaneseq
      %v967 = vshrl.u32 %v966, 7
      %v968 = vsub.s32 3, %v967
      %v969 = vrot.slane %v959, %v968
      %v970 = vlaneseq
      %v971 = vshrl.u32 %v970, 7
      %v972 = vsub.s32 3, %v971
      %v973 = vrot.slane %v963, %v972
      %v974 = vmul.f32 %v932, %v969
      %v975 = vmul.f32 %v933, %v973
      %v976 = vadd.f32 %v928, %v974
      %v977 = vadd.f32 %v929, %v975
      %v978 = vrot.slane %v954, 4
      %v979 = vmax.f32 %v954, %v978
      %v980 = vrot.slane %v979, 2
      %v981 = vmax.f32 %v979, %v980
      %v982 = vrot.slane %v981, 1
      %v983 = vmax.f32 %v981, %v982
      %v984 = vrot.slane %v955, 4
      %v985 = vmax.f32 %v955, %v984
      %v986 = vrot.slane %v985, 2
      %v987 = vmax.f32 %v985, %v986
      %v988 = vrot.slane %v987, 1
      %v989 = vmax.f32 %v987, %v988
      %v990 = vsub.f32 %v954, %v983
      %v991 = vsub.f32 %v955, %v989
      %v992 = vmul.f32 %v990, 1.442695
      %v993 = vpow.pop %v992
      %v994 = vmul.f32 %v991, 1.442695
      %v995 = vpow.pop %v994
      %v996 = vrot.slane %v993, 4
      %v997 = vadd.f32 %v993, %v996
      %v998 = vrot.slane %v997, 2
      %v999 = vadd.f32 %v997, %v998
      %v1000 = vrot.slane %v999, 1
      %v1001 = vadd.f32 %v999, %v1000
      %v1002 = vrot.slane %v995, 4
      %v1003 = vadd.f32 %v995, %v1002
      %v1004 = vrot.slane %v1003, 2
      %v1005 = vadd.f32 %v1003, %v1004
      %v1006 = vrot.slane %v1005, 1
      %v1007 = vadd.f32 %v1005, %v1006
      %v1008 = vrcp.pop %v1001
      %v1009 = vmul.f32 %v993, %v1008
      %v1010 = vrcp.pop %v1007
      %v1011 = vmul.f32 %v995, %v1010
      %v1012 = vlog2.pop %v1001
      %v1013 = vmul.f32 %v1012, 0.6931472
      %v1014 = vlog2.pop %v1007
      %v1015 = vmul.f32 %v1014, 0.6931472
      %v1016 = vmul.f32 %v1009, %v990
      %v1017 = vmul.f32 %v1011, %v991
      %v1018 = vrot.slane %v1016, 4
      %v1019 = vadd.f32 %v1016, %v1018
      %v1020 = vrot.slane %v1019, 2
      %v1021 = vadd.f32 %v1019, %v1020
      %v1022 = vrot.slane %v1021, 1
      %v1023 = vadd.f32 %v1021, %v1022
      %v1024 = vrot.slane %v1017, 4
      %v1025 = vadd.f32 %v1017, %v1024
      %v1026 = vrot.slane %v1025, 2
      %v1027 = vadd.f32 %v1025, %v1026
      %v1028 = vrot.slane %v1027, 1
      %v1029 = vadd.f32 %v1027, %v1028
      %v1030 = vsub.f32 %v1013, %v1023
      %v1031 = vsub.f32 %v1015, %v1029
      %v1032 = vld [vmem:[%s750] sm:$0x3]
      %v1033 = vunpack.c.l.bf16 %v1032
      %v1035 = vlaneseq
      %v1036 = vshrl.u32 %v1035, 7
      %v1037 = vsub.s32 0, %v1036
      %v1038 = vrot.slane %v1033, %v1037
      %v1039 = vlaneseq
      %v1040 = vshrl.u32 %v1039, 7
      %v1041 = vsub.s32 2, %v1040
      %v1042 = vrot.slane %v1033, %v1041
      %vm1045 = vcmask 1040384
      %v1046 = vsel %vm1045, %v1030, %v1038
      %v1047 = vsel %vm1045, %v1031, %v1042
      %1048 = vrot.lane.b32.xlu0 %v1046, 17
      %v1049 = vpop.permute.xlu0 %1048
      %1050 = vrot.lane.b32.xlu0 %v1047, 17
      %v1051 = vpop.permute.xlu0 %1050
      %v1052 = vlaneseq
      %v1053 = vand.u32 %v1052, 127
      %vm1054 = vcmp.lt.s32.totalorder %v1053, 17
      %v1055 = vsel %vm1054, %v1049, %v1051
      %v1056 = vsel %vm1054, %v1051, %v1049
      %v1057 = vld [vmem:[%s3] ss:$8 sm:$0x3]
      %v1059 = vlaneseq
      %v1060 = vshrl.u32 %v1059, 7
      %v1061 = vsub.s32 0, %v1060
      %v1062 = vrot.slane %v1057, %v1061
      %v1063 = vlaneseq
      %v1064 = vshrl.u32 %v1063, 7
      %v1065 = vsub.s32 1, %v1064
      %v1066 = vrot.slane %v1057, %v1065
      %v1069 = vmul.f32 %v1056, %v1062
      %v1070 = vmul.f32 %v1055, %v1066
      %v1071 = vld [vmem:[%s4] sm:$0xf]
      %v1072 = vld [vmem:[%s4 + $0x4] sm:$0xf]
      %v1073 = vpack.c.bf16 %v1069, %v1069
      %v1074 = vpack.c.bf16 %v1070, %v1070
      %1075 = vrot.lane.b32.xlu0 %v1046, 16
      %v1076 = vpop.permute.xlu0 %1075
      %1077 = vrot.lane.b32.xlu0 %v1047, 16
      %v1078 = vpop.permute.xlu0 %1077
      %vm1079 = vcmp.lt.s32.totalorder %v1053, 16
      %v1080 = vsel %vm1079, %v1076, %v1078
      %v1081 = vsel %vm1079, %v1078, %v1076
      %s1082 = scalar_lea.vmem %s3, 1
      %v1083 = vld [vmem:[%s1082] ss:$8 sm:$0x3]
      %v1085 = vlaneseq
      %v1086 = vshrl.u32 %v1085, 7
      %v1087 = vsub.s32 0, %v1086
      %v1088 = vrot.slane %v1083, %v1087
      %v1089 = vlaneseq
      %v1090 = vshrl.u32 %v1089, 7
      %v1091 = vsub.s32 1, %v1090
      %v1092 = vrot.slane %v1083, %v1091
      %v1095 = vmul.f32 %v1081, %v1088
      %v1096 = vmul.f32 %v1080, %v1092
      %s1097 = scalar_lea.vmem %s4, 8
      %v1098 = vld [vmem:[%s1097] sm:$0xf]
      %v1099 = vld [vmem:[%s1097 + $0x4] sm:$0xf]
      %v1100 = vpack.c.bf16 %v1095, %v1095
      %v1101 = vpack.c.bf16 %v1096, %v1096
      %v1104 = vunpack.c.l.b16 %v1098
      %v1105 = vunpack.c.l.b16 %v1099
      %v1106 = vpack.c.b16 %v1105, %v1104
      %vm1107 = vcmask 15360
      %v1109 = vsel %vm1107, %v1106, 0
      %v1112 = vsel %vm1045, %v1100, 0
      %v1115 = vsel %vm1045, %v1101, 0
      %1117 = vmatprep.subr.bf16.mxu0 %v1115
      %1118 = vmatpush1.bf16.msra.mxu0 %v1112
      %1119 = vmatprep.subr.bf16.mxu0 0
      %1120 = vmatpush1.bf16.msra.mxu0 0
      %1121 = vmatprep.subr.bf16.mxu0 0
      %1122 = vmatpush1.bf16.msra.mxu0 0
      %1123 = vmatprep.subr.bf16.mxu0 0
      %1124 = vmatpush1.bf16.msra.mxu0 0
      %1125 = vmatprep.subr.bf16.mxu0 0
      %1126 = vmatpush1.bf16.msra.mxu0 0
      %1127 = vmatprep.subr.bf16.mxu0 0
      %1128 = vmatpush1.bf16.msra.mxu0 0
      %1129 = vmatprep.subr.bf16.mxu0 0
      %1130 = vmatpush1.bf16.msra.mxu0 0
      %1131 = vmatprep.subr.bf16.mxu0 0
      %1132 = vmatpush1.bf16.msra.mxu0 0
      %1133 = vmatprep.subr.bf16.mxu0 0
      %1134 = vmatpush1.bf16.msra.mxu0 0
      %1135 = vmatprep.subr.bf16.mxu0 0
      %1136 = vmatpush1.bf16.msra.mxu0 0
      %1137 = vmatprep.subr.bf16.mxu0 0
      %1138 = vmatpush1.bf16.msra.mxu0 0
      %1139 = vmatprep.subr.bf16.mxu0 0
      %1140 = vmatpush1.bf16.msra.mxu0 0
      %1141 = vmatprep.subr.bf16.mxu0 0
      %1142 = vmatpush1.bf16.msra.mxu0 0
      %1143 = vmatprep.subr.bf16.mxu0 0
      %1144 = vmatpush1.bf16.msra.mxu0 0
      %1145 = vmatprep.subr.bf16.mxu0 0
      %1146 = vmatpush1.bf16.msra.mxu0 0
      %1147 = vmatprep.subr.bf16.mxu0 0
      %1148 = vmatpush1.bf16.msra.mxu0 0
      %1149 = vmatprep.mubr.bf16.mxu0 0
      %1150 = vmatmul.mubr.bf16.gmra.mrb[0].mxu0 %v1109
      %v1151 = vpop.f32.mrb[0].mxu0
      %v1152 = vadd.f32 0.0, %v1151
      %v1153 = vpop.f32.mrb[0].mxu0
      %v1154 = vadd.f32 0.0, %v1153
      %v1155 = vpop.f32.mrb[0].mxu0
      %v1156 = vadd.f32 0.0, %v1155
      %v1157 = vpop.f32.mrb[0].mxu0
      %v1158 = vadd.f32 0.0, %v1157
      %1159 = vdwg.mxu0
      %v1162 = vunpack.c.l.b16 %v1071
      %v1163 = vunpack.c.l.b16 %v1072
      %v1164 = vpack.c.b16 %v1163, %v1162
      %v1166 = vsel %vm1107, %v1164, 0
      %v1169 = vsel %vm1045, %v1073, 0
      %v1172 = vsel %vm1045, %v1074, 0
      %1174 = vmatprep.subr.bf16.mxu0 %v1172
      %1175 = vmatpush1.bf16.msra.mxu0 %v1169
      %1176 = vmatprep.subr.bf16.mxu0 0
      %1177 = vmatpush1.bf16.msra.mxu0 0
      %1178 = vmatprep.subr.bf16.mxu0 0
      %1179 = vmatpush1.bf16.msra.mxu0 0
      %1180 = vmatprep.subr.bf16.mxu0 0
      %1181 = vmatpush1.bf16.msra.mxu0 0
      %1182 = vmatprep.subr.bf16.mxu0 0
      %1183 = vmatpush1.bf16.msra.mxu0 0
      %1184 = vmatprep.subr.bf16.mxu0 0
      %1185 = vmatpush1.bf16.msra.mxu0 0
      %1186 = vmatprep.subr.bf16.mxu0 0
      %1187 = vmatpush1.bf16.msra.mxu0 0
      %1188 = vmatprep.subr.bf16.mxu0 0
      %1189 = vmatpush1.bf16.msra.mxu0 0
      %1190 = vmatprep.subr.bf16.mxu0 0
      %1191 = vmatpush1.bf16.msra.mxu0 0
      %1192 = vmatprep.subr.bf16.mxu0 0
      %1193 = vmatpush1.bf16.msra.mxu0 0
      %1194 = vmatprep.subr.bf16.mxu0 0
      %1195 = vmatpush1.bf16.msra.mxu0 0
      %1196 = vmatprep.subr.bf16.mxu0 0
      %1197 = vmatpush1.bf16.msra.mxu0 0
      %1198 = vmatprep.subr.bf16.mxu0 0
      %1199 = vmatpush1.bf16.msra.mxu0 0
      %1200 = vmatprep.subr.bf16.mxu0 0
      %1201 = vmatpush1.bf16.msra.mxu0 0
      %1202 = vmatprep.subr.bf16.mxu0 0
      %1203 = vmatpush1.bf16.msra.mxu0 0
      %1204 = vmatprep.subr.bf16.mxu0 0
      %1205 = vmatpush1.bf16.msra.mxu0 0
      %1206 = vmatprep.mubr.bf16.mxu0 0
      %1207 = vmatmul.mubr.bf16.gmra.mrb[0].mxu0 %v1166
      %v1208 = vpop.f32.mrb[0].mxu0
      %v1209 = vadd.f32 %v1152, %v1208
      %v1210 = vpop.f32.mrb[0].mxu0
      %v1211 = vadd.f32 %v1154, %v1210
      %v1212 = vpop.f32.mrb[0].mxu0
      %v1213 = vadd.f32 %v1156, %v1212
      %v1214 = vpop.f32.mrb[0].mxu0
      %v1215 = vadd.f32 %v1158, %v1214
      %1216 = vdwg.mxu0
      %1217 = vrot.lane.b32.xlu0 %v1046, 15
      %v1218 = vpop.permute.xlu0 %1217
      %1219 = vrot.lane.b32.xlu0 %v1047, 15
      %v1220 = vpop.permute.xlu0 %1219
      %vm1221 = vcmp.lt.s32.totalorder %v1053, 15
      %v1222 = vsel %vm1221, %v1218, %v1220
      %v1223 = vsel %vm1221, %v1220, %v1218
      %s1224 = scalar_lea.vmem %s3, 2
      %v1225 = vld [vmem:[%s1224] ss:$8 sm:$0x3]
      %v1227 = vlaneseq
      %v1228 = vshrl.u32 %v1227, 7
      %v1229 = vsub.s32 0, %v1228
      %v1230 = vrot.slane %v1225, %v1229
      %v1231 = vlaneseq
      %v1232 = vshrl.u32 %v1231, 7
      %v1233 = vsub.s32 1, %v1232
      %v1234 = vrot.slane %v1225, %v1233
      %v1237 = vmul.f32 %v1223, %v1230
      %v1238 = vmul.f32 %v1222, %v1234
      %s1239 = scalar_lea.vmem %s4, 16
      %v1240 = vld [vmem:[%s1239] sm:$0xf]
      %v1241 = vld [vmem:[%s1239 + $0x4] sm:$0xf]
      %v1242 = vpack.c.bf16 %v1237, %v1237
      %v1243 = vpack.c.bf16 %v1238, %v1238
      %v1246 = vunpack.c.l.b16 %v1240
      %v1247 = vunpack.c.l.b16 %v1241
      %v1248 = vpack.c.b16 %v1247, %v1246
      %v1250 = vsel %vm1107, %v1248, 0
      %v1253 = vsel %vm1045, %v1242, 0
      %v1256 = vsel %vm1045, %v1243, 0
      %1258 = vmatprep.subr.bf16.mxu0 %v1256
      %1259 = vmatpush1.bf16.msra.mxu0 %v1253
      %1260 = vmatprep.subr.bf16.mxu0 0
      %1261 = vmatpush1.bf16.msra.mxu0 0
      %1262 = vmatprep.subr.bf16.mxu0 0
      %1263 = vmatpush1.bf16.msra.mxu0 0
      %1264 = vmatprep.subr.bf16.mxu0 0
      %1265 = vmatpush1.bf16.msra.mxu0 0
      %1266 = vmatprep.subr.bf16.mxu0 0
      %1267 = vmatpush1.bf16.msra.mxu0 0
      %1268 = vmatprep.subr.bf16.mxu0 0
      %1269 = vmatpush1.bf16.msra.mxu0 0
      %1270 = vmatprep.subr.bf16.mxu0 0
      %1271 = vmatpush1.bf16.msra.mxu0 0
      %1272 = vmatprep.subr.bf16.mxu0 0
      %1273 = vmatpush1.bf16.msra.mxu0 0
      %1274 = vmatprep.subr.bf16.mxu0 0
      %1275 = vmatpush1.bf16.msra.mxu0 0
      %1276 = vmatprep.subr.bf16.mxu0 0
      %1277 = vmatpush1.bf16.msra.mxu0 0
      %1278 = vmatprep.subr.bf16.mxu0 0
      %1279 = vmatpush1.bf16.msra.mxu0 0
      %1280 = vmatprep.subr.bf16.mxu0 0
      %1281 = vmatpush1.bf16.msra.mxu0 0
      %1282 = vmatprep.subr.bf16.mxu0 0
      %1283 = vmatpush1.bf16.msra.mxu0 0
      %1284 = vmatprep.subr.bf16.mxu0 0
      %1285 = vmatpush1.bf16.msra.mxu0 0
      %1286 = vmatprep.subr.bf16.mxu0 0
      %1287 = vmatpush1.bf16.msra.mxu0 0
      %1288 = vmatprep.subr.bf16.mxu0 0
      %1289 = vmatpush1.bf16.msra.mxu0 0
      %1290 = vmatprep.mubr.bf16.mxu0 0
      %1291 = vmatmul.mubr.bf16.gmra.mrb[0].mxu0 %v1250
      %v1292 = vpop.f32.mrb[0].mxu0
      %v1293 = vadd.f32 0.0, %v1292
      %v1294 = vpop.f32.mrb[0].mxu0
      %v1295 = vadd.f32 0.0, %v1294
      %v1296 = vpop.f32.mrb[0].mxu0
      %v1297 = vadd.f32 0.0, %v1296
      %v1298 = vpop.f32.mrb[0].mxu0
      %v1299 = vadd.f32 0.0, %v1298
      %1300 = vdwg.mxu0
      %v1301 = vadd.f32 %v1209, %v1293
      %v1302 = vadd.f32 %v1211, %v1295
      %v1303 = vadd.f32 %v1213, %v1297
      %v1304 = vadd.f32 %v1215, %v1299
      %1305 = vrot.lane.b32.xlu0 %v1046, 1
      %v1306 = vpop.permute.xlu0 %1305
      %1307 = vrot.lane.b32.xlu0 %v1047, 1
      %v1308 = vpop.permute.xlu0 %1307
      %vm1309 = vcmp.lt.s32.totalorder %v1053, 1
      %v1310 = vsel %vm1309, %v1306, %v1308
      %v1311 = vsel %vm1309, %v1308, %v1306
      %s1312 = scalar_lea.vmem %s3, 3
      %v1313 = vld [vmem:[%s1312] ss:$8 sm:$0x3]
      %v1315 = vlaneseq
      %v1316 = vshrl.u32 %v1315, 7
      %v1317 = vsub.s32 0, %v1316
      %v1318 = vrot.slane %v1313, %v1317
      %v1319 = vlaneseq
      %v1320 = vshrl.u32 %v1319, 7
      %v1321 = vsub.s32 1, %v1320
      %v1322 = vrot.slane %v1313, %v1321
      %v1325 = vmul.f32 %v1311, %v1318
      %v1326 = vmul.f32 %v1310, %v1322
      %s1327 = scalar_lea.vmem %s4, 24
      %v1328 = vld [vmem:[%s1327] sm:$0xf]
      %v1329 = vld [vmem:[%s1327 + $0x4] sm:$0xf]
      %v1330 = vpack.c.bf16 %v1325, %v1325
      %v1331 = vpack.c.bf16 %v1326, %v1326
      %v1334 = vunpack.c.l.b16 %v1328
      %v1335 = vunpack.c.l.b16 %v1329
      %v1336 = vpack.c.b16 %v1335, %v1334
      %v1338 = vsel %vm1107, %v1336, 0
      %v1341 = vsel %vm1045, %v1330, 0
      %v1344 = vsel %vm1045, %v1331, 0
      %1346 = vmatprep.subr.bf16.mxu0 %v1344
      %1347 = vmatpush1.bf16.msra.mxu0 %v1341
      %1348 = vmatprep.subr.bf16.mxu0 0
      %1349 = vmatpush1.bf16.msra.mxu0 0
      %1350 = vmatprep.subr.bf16.mxu0 0
      %1351 = vmatpush1.bf16.msra.mxu0 0
      %1352 = vmatprep.subr.bf16.mxu0 0
      %1353 = vmatpush1.bf16.msra.mxu0 0
      %1354 = vmatprep.subr.bf16.mxu0 0
      %1355 = vmatpush1.bf16.msra.mxu0 0
      %1356 = vmatprep.subr.bf16.mxu0 0
      %1357 = vmatpush1.bf16.msra.mxu0 0
      %1358 = vmatprep.subr.bf16.mxu0 0
      %1359 = vmatpush1.bf16.msra.mxu0 0
      %1360 = vmatprep.subr.bf16.mxu0 0
      %1361 = vmatpush1.bf16.msra.mxu0 0
      %1362 = vmatprep.subr.bf16.mxu0 0
      %1363 = vmatpush1.bf16.msra.mxu0 0
      %1364 = vmatprep.subr.bf16.mxu0 0
      %1365 = vmatpush1.bf16.msra.mxu0 0
      %1366 = vmatprep.subr.bf16.mxu0 0
      %1367 = vmatpush1.bf16.msra.mxu0 0
      %1368 = vmatprep.subr.bf16.mxu0 0
      %1369 = vmatpush1.bf16.msra.mxu0 0
      %1370 = vmatprep.subr.bf16.mxu0 0
      %1371 = vmatpush1.bf16.msra.mxu0 0
      %1372 = vmatprep.subr.bf16.mxu0 0
      %1373 = vmatpush1.bf16.msra.mxu0 0
      %1374 = vmatprep.subr.bf16.mxu0 0
      %1375 = vmatpush1.bf16.msra.mxu0 0
      %1376 = vmatprep.subr.bf16.mxu0 0
      %1377 = vmatpush1.bf16.msra.mxu0 0
      %1378 = vmatprep.mubr.bf16.mxu0 0
      %1379 = vmatmul.mubr.bf16.gmra.mrb[0].mxu0 %v1338
      %v1380 = vpop.f32.mrb[0].mxu0
      %v1381 = vadd.f32 0.0, %v1380
      %v1382 = vpop.f32.mrb[0].mxu0
      %v1383 = vadd.f32 0.0, %v1382
      %v1384 = vpop.f32.mrb[0].mxu0
      %v1385 = vadd.f32 0.0, %v1384
      %v1386 = vpop.f32.mrb[0].mxu0
      %v1387 = vadd.f32 0.0, %v1386
      %1388 = vdwg.mxu0
      %v1389 = vadd.f32 %v1301, %v1381
      %v1390 = vadd.f32 %v1302, %v1383
      %v1391 = vadd.f32 %v1303, %v1385
      %v1392 = vadd.f32 %v1304, %v1387
      %s1393 = scalar_lea.vmem %s4, 32
      %v1394 = vld [vmem:[%s1393] sm:$0xf]
      %v1395 = vld [vmem:[%s1393 + $0x4] sm:$0xf]
      %v1396 = vpack.c.bf16 %v1046, %v1046
      %v1397 = vpack.c.bf16 %v1047, %v1047
      %v1400 = vunpack.c.l.b16 %v1394
      %v1401 = vunpack.c.l.b16 %v1395
      %v1402 = vpack.c.b16 %v1401, %v1400
      %v1404 = vsel %vm1107, %v1402, 0
      %v1407 = vsel %vm1045, %v1396, 0
      %v1410 = vsel %vm1045, %v1397, 0
      %1412 = vmatprep.subr.bf16.mxu0 %v1410
      %1413 = vmatpush1.bf16.msra.mxu0 %v1407
      %1414 = vmatprep.subr.bf16.mxu0 0
      %1415 = vmatpush1.bf16.msra.mxu0 0
      %1416 = vmatprep.subr.bf16.mxu0 0
      %1417 = vmatpush1.bf16.msra.mxu0 0
      %1418 = vmatprep.subr.bf16.mxu0 0
      %1419 = vmatpush1.bf16.msra.mxu0 0
      %1420 = vmatprep.subr.bf16.mxu0 0
      %1421 = vmatpush1.bf16.msra.mxu0 0
      %1422 = vmatprep.subr.bf16.mxu0 0
      %1423 = vmatpush1.bf16.msra.mxu0 0
      %1424 = vmatprep.subr.bf16.mxu0 0
      %1425 = vmatpush1.bf16.msra.mxu0 0
      %1426 = vmatprep.subr.bf16.mxu0 0
      %1427 = vmatpush1.bf16.msra.mxu0 0
      %1428 = vmatprep.subr.bf16.mxu0 0
      %1429 = vmatpush1.bf16.msra.mxu0 0
      %1430 = vmatprep.subr.bf16.mxu0 0
      %1431 = vmatpush1.bf16.msra.mxu0 0
      %1432 = vmatprep.subr.bf16.mxu0 0
      %1433 = vmatpush1.bf16.msra.mxu0 0
      %1434 = vmatprep.subr.bf16.mxu0 0
      %1435 = vmatpush1.bf16.msra.mxu0 0
      %1436 = vmatprep.subr.bf16.mxu0 0
      %1437 = vmatpush1.bf16.msra.mxu0 0
      %1438 = vmatprep.subr.bf16.mxu0 0
      %1439 = vmatpush1.bf16.msra.mxu0 0
      %1440 = vmatprep.subr.bf16.mxu0 0
      %1441 = vmatpush1.bf16.msra.mxu0 0
      %1442 = vmatprep.subr.bf16.mxu0 0
      %1443 = vmatpush1.bf16.msra.mxu0 0
      %1444 = vmatprep.mubr.bf16.mxu0 0
      %1445 = vmatmul.mubr.bf16.gmra.mrb[0].mxu0 %v1404
      %v1446 = vpop.f32.mrb[0].mxu0
      %v1447 = vadd.f32 0.0, %v1446
      %v1448 = vpop.f32.mrb[0].mxu0
      %v1449 = vadd.f32 0.0, %v1448
      %v1450 = vpop.f32.mrb[0].mxu0
      %v1451 = vadd.f32 0.0, %v1450
      %v1452 = vpop.f32.mrb[0].mxu0
      %v1453 = vadd.f32 0.0, %v1452
      %1454 = vdwg.mxu0
      %v1455 = vadd.f32 %v1389, %v1447
      %v1456 = vadd.f32 %v1390, %v1449
      %v1457 = vadd.f32 %v1391, %v1451
      %v1458 = vadd.f32 %v1392, %v1453
      %1459 = vrot.lane.b32.xlu0 %v1046, 127
      %v1460 = vpop.permute.xlu0 %1459
      %1461 = vrot.lane.b32.xlu0 %v1047, 127
      %v1462 = vpop.permute.xlu0 %1461
      %vm1463 = vcmp.lt.s32.totalorder %v1053, 127
      %v1464 = vsel %vm1463, %v1460, %v1462
      %v1465 = vsel %vm1463, %v1462, %v1460
      %s1466 = scalar_lea.vmem %s3, 5
      %v1467 = vld [vmem:[%s1466] ss:$8 sm:$0x3]
      %v1469 = vlaneseq
      %v1470 = vshrl.u32 %v1469, 7
      %v1471 = vsub.s32 0, %v1470
      %v1472 = vrot.slane %v1467, %v1471
      %v1473 = vlaneseq
      %v1474 = vshrl.u32 %v1473, 7
      %v1475 = vsub.s32 1, %v1474
      %v1476 = vrot.slane %v1467, %v1475
      %v1479 = vmul.f32 %v1464, %v1472
      %v1480 = vmul.f32 %v1465, %v1476
      %s1481 = scalar_lea.vmem %s4, 40
      %v1482 = vld [vmem:[%s1481] sm:$0xf]
      %v1483 = vld [vmem:[%s1481 + $0x4] sm:$0xf]
      %v1484 = vpack.c.bf16 %v1479, %v1479
      %v1485 = vpack.c.bf16 %v1480, %v1480
      %v1488 = vunpack.c.l.b16 %v1482
      %v1489 = vunpack.c.l.b16 %v1483
      %v1490 = vpack.c.b16 %v1489, %v1488
      %v1492 = vsel %vm1107, %v1490, 0
      %v1495 = vsel %vm1045, %v1484, 0
      %v1498 = vsel %vm1045, %v1485, 0
      %1500 = vmatprep.subr.bf16.mxu0 %v1498
      %1501 = vmatpush1.bf16.msra.mxu0 %v1495
      %1502 = vmatprep.subr.bf16.mxu0 0
      %1503 = vmatpush1.bf16.msra.mxu0 0
      %1504 = vmatprep.subr.bf16.mxu0 0
      %1505 = vmatpush1.bf16.msra.mxu0 0
      %1506 = vmatprep.subr.bf16.mxu0 0
      %1507 = vmatpush1.bf16.msra.mxu0 0
      %1508 = vmatprep.subr.bf16.mxu0 0
      %1509 = vmatpush1.bf16.msra.mxu0 0
      %1510 = vmatprep.subr.bf16.mxu0 0
      %1511 = vmatpush1.bf16.msra.mxu0 0
      %1512 = vmatprep.subr.bf16.mxu0 0
      %1513 = vmatpush1.bf16.msra.mxu0 0
      %1514 = vmatprep.subr.bf16.mxu0 0
      %1515 = vmatpush1.bf16.msra.mxu0 0
      %1516 = vmatprep.subr.bf16.mxu0 0
      %1517 = vmatpush1.bf16.msra.mxu0 0
      %1518 = vmatprep.subr.bf16.mxu0 0
      %1519 = vmatpush1.bf16.msra.mxu0 0
      %1520 = vmatprep.subr.bf16.mxu0 0
      %1521 = vmatpush1.bf16.msra.mxu0 0
      %1522 = vmatprep.subr.bf16.mxu0 0
      %1523 = vmatpush1.bf16.msra.mxu0 0
      %1524 = vmatprep.subr.bf16.mxu0 0
      %1525 = vmatpush1.bf16.msra.mxu0 0
      %1526 = vmatprep.subr.bf16.mxu0 0
      %1527 = vmatpush1.bf16.msra.mxu0 0
      %1528 = vmatprep.subr.bf16.mxu0 0
      %1529 = vmatpush1.bf16.msra.mxu0 0
      %1530 = vmatprep.subr.bf16.mxu0 0
      %1531 = vmatpush1.bf16.msra.mxu0 0
      %1532 = vmatprep.mubr.bf16.mxu0 0
      %1533 = vmatmul.mubr.bf16.gmra.mrb[0].mxu0 %v1492
      %v1534 = vpop.f32.mrb[0].mxu0
      %v1535 = vadd.f32 0.0, %v1534
      %v1536 = vpop.f32.mrb[0].mxu0
      %v1537 = vadd.f32 0.0, %v1536
      %v1538 = vpop.f32.mrb[0].mxu0
      %v1539 = vadd.f32 0.0, %v1538
      %v1540 = vpop.f32.mrb[0].mxu0
      %v1541 = vadd.f32 0.0, %v1540
      %1542 = vdwg.mxu0
      %v1543 = vadd.f32 %v1455, %v1535
      %v1544 = vadd.f32 %v1456, %v1537
      %v1545 = vadd.f32 %v1457, %v1539
      %v1546 = vadd.f32 %v1458, %v1541
      %1547 = vrot.lane.b32.xlu0 %v1046, 113
      %v1548 = vpop.permute.xlu0 %1547
      %1549 = vrot.lane.b32.xlu0 %v1047, 113
      %v1550 = vpop.permute.xlu0 %1549
      %vm1551 = vcmp.lt.s32.totalorder %v1053, 113
      %v1552 = vsel %vm1551, %v1548, %v1550
      %v1553 = vsel %vm1551, %v1550, %v1548
      %s1554 = scalar_lea.vmem %s3, 6
      %v1555 = vld [vmem:[%s1554] ss:$8 sm:$0x3]
      %v1557 = vlaneseq
      %v1558 = vshrl.u32 %v1557, 7
      %v1559 = vsub.s32 0, %v1558
      %v1560 = vrot.slane %v1555, %v1559
      %v1561 = vlaneseq
      %v1562 = vshrl.u32 %v1561, 7
      %v1563 = vsub.s32 1, %v1562
      %v1564 = vrot.slane %v1555, %v1563
      %v1567 = vmul.f32 %v1552, %v1560
      %v1568 = vmul.f32 %v1553, %v1564
      %s1569 = scalar_lea.vmem %s4, 48
      %v1570 = vld [vmem:[%s1569] sm:$0xf]
      %v1571 = vld [vmem:[%s1569 + $0x4] sm:$0xf]
      %v1572 = vpack.c.bf16 %v1567, %v1567
      %v1573 = vpack.c.bf16 %v1568, %v1568
      %v1576 = vunpack.c.l.b16 %v1570
      %v1577 = vunpack.c.l.b16 %v1571
      %v1578 = vpack.c.b16 %v1577, %v1576
      %v1580 = vsel %vm1107, %v1578, 0
      %v1583 = vsel %vm1045, %v1572, 0
      %v1586 = vsel %vm1045, %v1573, 0
      %1588 = vmatprep.subr.bf16.mxu0 %v1586
      %1589 = vmatpush1.bf16.msra.mxu0 %v1583
      %1590 = vmatprep.subr.bf16.mxu0 0
      %1591 = vmatpush1.bf16.msra.mxu0 0
      %1592 = vmatprep.subr.bf16.mxu0 0
      %1593 = vmatpush1.bf16.msra.mxu0 0
      %1594 = vmatprep.subr.bf16.mxu0 0
      %1595 = vmatpush1.bf16.msra.mxu0 0
      %1596 = vmatprep.subr.bf16.mxu0 0
      %1597 = vmatpush1.bf16.msra.mxu0 0
      %1598 = vmatprep.subr.bf16.mxu0 0
      %1599 = vmatpush1.bf16.msra.mxu0 0
      %1600 = vmatprep.subr.bf16.mxu0 0
      %1601 = vmatpush1.bf16.msra.mxu0 0
      %1602 = vmatprep.subr.bf16.mxu0 0
      %1603 = vmatpush1.bf16.msra.mxu0 0
      %1604 = vmatprep.subr.bf16.mxu0 0
      %1605 = vmatpush1.bf16.msra.mxu0 0
      %1606 = vmatprep.subr.bf16.mxu0 0
      %1607 = vmatpush1.bf16.msra.mxu0 0
      %1608 = vmatprep.subr.bf16.mxu0 0
      %1609 = vmatpush1.bf16.msra.mxu0 0
      %1610 = vmatprep.subr.bf16.mxu0 0
      %1611 = vmatpush1.bf16.msra.mxu0 0
      %1612 = vmatprep.subr.bf16.mxu0 0
      %1613 = vmatpush1.bf16.msra.mxu0 0
      %1614 = vmatprep.subr.bf16.mxu0 0
      %1615 = vmatpush1.bf16.msra.mxu0 0
      %1616 = vmatprep.subr.bf16.mxu0 0
      %1617 = vmatpush1.bf16.msra.mxu0 0
      %1618 = vmatprep.subr.bf16.mxu0 0
      %1619 = vmatpush1.bf16.msra.mxu0 0
      %1620 = vmatprep.mubr.bf16.mxu0 0
      %1621 = vmatmul.mubr.bf16.gmra.mrb[0].mxu0 %v1580
      %v1622 = vpop.f32.mrb[0].mxu0
      %v1623 = vadd.f32 0.0, %v1622
      %v1624 = vpop.f32.mrb[0].mxu0
      %v1625 = vadd.f32 0.0, %v1624
      %v1626 = vpop.f32.mrb[0].mxu0
      %v1627 = vadd.f32 0.0, %v1626
      %v1628 = vpop.f32.mrb[0].mxu0
      %v1629 = vadd.f32 0.0, %v1628
      %1630 = vdwg.mxu0
      %v1631 = vadd.f32 %v1543, %v1623
      %v1632 = vadd.f32 %v1544, %v1625
      %v1633 = vadd.f32 %v1545, %v1627
      %v1634 = vadd.f32 %v1546, %v1629
      %1635 = vrot.lane.b32.xlu0 %v1046, 112
      %v1636 = vpop.permute.xlu0 %1635
      %1637 = vrot.lane.b32.xlu0 %v1047, 112
      %v1638 = vpop.permute.xlu0 %1637
      %vm1639 = vcmp.lt.s32.totalorder %v1053, 112
      %v1640 = vsel %vm1639, %v1636, %v1638
      %v1641 = vsel %vm1639, %v1638, %v1636
      %s1642 = scalar_lea.vmem %s3, 7
      %v1643 = vld [vmem:[%s1642] ss:$8 sm:$0x3]
      %v1645 = vlaneseq
      %v1646 = vshrl.u32 %v1645, 7
      %v1647 = vsub.s32 0, %v1646
      %v1648 = vrot.slane %v1643, %v1647
      %v1649 = vlaneseq
      %v1650 = vshrl.u32 %v1649, 7
      %v1651 = vsub.s32 1, %v1650
      %v1652 = vrot.slane %v1643, %v1651
      %v1655 = vmul.f32 %v1640, %v1648
      %v1656 = vmul.f32 %v1641, %v1652
      %s1657 = scalar_lea.vmem %s4, 56
      %v1658 = vld [vmem:[%s1657] sm:$0xf]
      %v1659 = vld [vmem:[%s1657 + $0x4] sm:$0xf]
      %v1660 = vpack.c.bf16 %v1655, %v1655
      %v1661 = vpack.c.bf16 %v1656, %v1656
      %v1664 = vunpack.c.l.b16 %v1658
      %v1665 = vunpack.c.l.b16 %v1659
      %v1666 = vpack.c.b16 %v1665, %v1664
      %v1668 = vsel %vm1107, %v1666, 0
      %v1671 = vsel %vm1045, %v1660, 0
      %v1674 = vsel %vm1045, %v1661, 0
      %1676 = vmatprep.subr.bf16.mxu0 %v1674
      %1677 = vmatpush1.bf16.msra.mxu0 %v1671
      %1678 = vmatprep.subr.bf16.mxu0 0
      %1679 = vmatpush1.bf16.msra.mxu0 0
      %1680 = vmatprep.subr.bf16.mxu0 0
      %1681 = vmatpush1.bf16.msra.mxu0 0
      %1682 = vmatprep.subr.bf16.mxu0 0
      %1683 = vmatpush1.bf16.msra.mxu0 0
      %1684 = vmatprep.subr.bf16.mxu0 0
      %1685 = vmatpush1.bf16.msra.mxu0 0
      %1686 = vmatprep.subr.bf16.mxu0 0
      %1687 = vmatpush1.bf16.msra.mxu0 0
      %1688 = vmatprep.subr.bf16.mxu0 0
      %1689 = vmatpush1.bf16.msra.mxu0 0
      %1690 = vmatprep.subr.bf16.mxu0 0
      %1691 = vmatpush1.bf16.msra.mxu0 0
      %1692 = vmatprep.subr.bf16.mxu0 0
      %1693 = vmatpush1.bf16.msra.mxu0 0
      %1694 = vmatprep.subr.bf16.mxu0 0
      %1695 = vmatpush1.bf16.msra.mxu0 0
      %1696 = vmatprep.subr.bf16.mxu0 0
      %1697 = vmatpush1.bf16.msra.mxu0 0
      %1698 = vmatprep.subr.bf16.mxu0 0
      %1699 = vmatpush1.bf16.msra.mxu0 0
      %1700 = vmatprep.subr.bf16.mxu0 0
      %1701 = vmatpush1.bf16.msra.mxu0 0
      %1702 = vmatprep.subr.bf16.mxu0 0
      %1703 = vmatpush1.bf16.msra.mxu0 0
      %1704 = vmatprep.subr.bf16.mxu0 0
      %1705 = vmatpush1.bf16.msra.mxu0 0
      %1706 = vmatprep.subr.bf16.mxu0 0
      %1707 = vmatpush1.bf16.msra.mxu0 0
      %1708 = vmatprep.mubr.bf16.mxu0 0
      %1709 = vmatmul.mubr.bf16.gmra.mrb[0].mxu0 %v1668
      %v1710 = vpop.f32.mrb[0].mxu0
      %v1711 = vadd.f32 0.0, %v1710
      %v1712 = vpop.f32.mrb[0].mxu0
      %v1713 = vadd.f32 0.0, %v1712
      %v1714 = vpop.f32.mrb[0].mxu0
      %v1715 = vadd.f32 0.0, %v1714
      %v1716 = vpop.f32.mrb[0].mxu0
      %v1717 = vadd.f32 0.0, %v1716
      %1718 = vdwg.mxu0
      %v1719 = vadd.f32 %v1631, %v1711
      %v1720 = vadd.f32 %v1632, %v1713
      %v1721 = vadd.f32 %v1633, %v1715
      %v1722 = vadd.f32 %v1634, %v1717
      %1723 = vrot.lane.b32.xlu0 %v1046, 111
      %v1724 = vpop.permute.xlu0 %1723
      %1725 = vrot.lane.b32.xlu0 %v1047, 111
      %v1726 = vpop.permute.xlu0 %1725
      %vm1727 = vcmp.lt.s32.totalorder %v1053, 111
      %v1728 = vsel %vm1727, %v1724, %v1726
      %v1729 = vsel %vm1727, %v1726, %v1724
      %s1730 = scalar_lea.vmem %s3, 16
      %v1731 = vld [vmem:[%s1730] ss:$8 sm:$0x3]
      %v1733 = vlaneseq
      %v1734 = vshrl.u32 %v1733, 7
      %v1735 = vsub.s32 0, %v1734
      %v1736 = vrot.slane %v1731, %v1735
      %v1737 = vlaneseq
      %v1738 = vshrl.u32 %v1737, 7
      %v1739 = vsub.s32 1, %v1738
      %v1740 = vrot.slane %v1731, %v1739
      %v1743 = vmul.f32 %v1728, %v1736
      %v1744 = vmul.f32 %v1729, %v1740
      %s1745 = scalar_lea.vmem %s4, 64
      %v1746 = vld [vmem:[%s1745] sm:$0xf]
      %v1747 = vld [vmem:[%s1745 + $0x4] sm:$0xf]
      %v1748 = vpack.c.bf16 %v1743, %v1743
      %v1749 = vpack.c.bf16 %v1744, %v1744
      %v1752 = vunpack.c.l.b16 %v1746
      %v1753 = vunpack.c.l.b16 %v1747
      %v1754 = vpack.c.b16 %v1753, %v1752
      %v1756 = vsel %vm1107, %v1754, 0
      %v1759 = vsel %vm1045, %v1748, 0
      %v1762 = vsel %vm1045, %v1749, 0
      %1764 = vmatprep.subr.bf16.mxu0 %v1762
      %1765 = vmatpush1.bf16.msra.mxu0 %v1759
      %1766 = vmatprep.subr.bf16.mxu0 0
      %1767 = vmatpush1.bf16.msra.mxu0 0
      %1768 = vmatprep.subr.bf16.mxu0 0
      %1769 = vmatpush1.bf16.msra.mxu0 0
      %1770 = vmatprep.subr.bf16.mxu0 0
      %1771 = vmatpush1.bf16.msra.mxu0 0
      %1772 = vmatprep.subr.bf16.mxu0 0
      %1773 = vmatpush1.bf16.msra.mxu0 0
      %1774 = vmatprep.subr.bf16.mxu0 0
      %1775 = vmatpush1.bf16.msra.mxu0 0
      %1776 = vmatprep.subr.bf16.mxu0 0
      %1777 = vmatpush1.bf16.msra.mxu0 0
      %1778 = vmatprep.subr.bf16.mxu0 0
      %1779 = vmatpush1.bf16.msra.mxu0 0
      %1780 = vmatprep.subr.bf16.mxu0 0
      %1781 = vmatpush1.bf16.msra.mxu0 0
      %1782 = vmatprep.subr.bf16.mxu0 0
      %1783 = vmatpush1.bf16.msra.mxu0 0
      %1784 = vmatprep.subr.bf16.mxu0 0
      %1785 = vmatpush1.bf16.msra.mxu0 0
      %1786 = vmatprep.subr.bf16.mxu0 0
      %1787 = vmatpush1.bf16.msra.mxu0 0
      %1788 = vmatprep.subr.bf16.mxu0 0
      %1789 = vmatpush1.bf16.msra.mxu0 0
      %1790 = vmatprep.subr.bf16.mxu0 0
      %1791 = vmatpush1.bf16.msra.mxu0 0
      %1792 = vmatprep.subr.bf16.mxu0 0
      %1793 = vmatpush1.bf16.msra.mxu0 0
      %1794 = vmatprep.subr.bf16.mxu0 0
      %1795 = vmatpush1.bf16.msra.mxu0 0
      %1796 = vmatprep.mubr.bf16.mxu0 0
      %1797 = vmatmul.mubr.bf16.gmra.mrb[0].mxu0 %v1756
      %v1798 = vpop.f32.mrb[0].mxu0
      %v1799 = vadd.f32 0.0, %v1798
      %v1800 = vpop.f32.mrb[0].mxu0
      %v1801 = vadd.f32 0.0, %v1800
      %v1802 = vpop.f32.mrb[0].mxu0
      %v1803 = vadd.f32 0.0, %v1802
      %v1804 = vpop.f32.mrb[0].mxu0
      %v1805 = vadd.f32 0.0, %v1804
      %1806 = vdwg.mxu0
      %v1807 = vadd.f32 %v1719, %v1799
      %v1808 = vadd.f32 %v1720, %v1801
      %v1809 = vadd.f32 %v1721, %v1803
      %v1810 = vadd.f32 %v1722, %v1805
      %v1811 = vld [vmem:[%s5] sm:$0xff]
      %v1812 = vld [vmem:[%s5 + $0x8] sm:$0xff]
      %1814 = vset.pattern.permute.xlu0 0
      %1815 = vperm.xlu0 %1814, %v1811
      %v1816 = vpop.permute.xlu0 %1815
      %1819 = vset.pattern.permute.xlu0 0
      %1820 = vperm.xlu0 %1819, %v1812
      %v1821 = vpop.permute.xlu0 %1820
      %v1823 = vadd.f32 %v1807, %v1816
      %v1824 = vadd.f32 %v1808, %v1816
      %v1825 = vadd.f32 %v1809, %v1821
      %v1826 = vadd.f32 %v1810, %v1821
      %v1827 = vmax.f32 %v1823, 0.0
      %v1828 = vmax.f32 %v1824, 0.0
      %v1829 = vmax.f32 %v1825, 0.0
      %v1830 = vmax.f32 %v1826, 0.0
      %1831 = vrot.lane.b32.xlu0 %v1827, 17
      %v1832 = vpop.permute.xlu0 %1831
      %1833 = vrot.lane.b32.xlu0 %v1829, 17
      %v1834 = vpop.permute.xlu0 %1833
      %1835 = vrot.lane.b32.xlu0 %v1828, 17
      %v1836 = vpop.permute.xlu0 %1835
      %1837 = vrot.lane.b32.xlu0 %v1830, 17
      %v1838 = vpop.permute.xlu0 %1837
      %v1839 = vsel %vm1054, %v1832, %v1836
      %v1840 = vsel %vm1054, %v1834, %v1838
      %v1841 = vsel %vm1054, %v1836, %v1832
      %v1842 = vsel %vm1054, %v1838, %v1834
      %v1843 = vmul.f32 %v1841, %v1062
      %v1844 = vmul.f32 %v1839, %v1066
      %v1845 = vmul.f32 %v1842, %v1062
      %v1846 = vmul.f32 %v1840, %v1066
      %v1847 = vld [vmem:[%s6] sm:$0xf]
      %v1848 = vld [vmem:[%s6 + $0x4] sm:$0xf]
      %v1849 = vpack.c.bf16 %v1845, %v1843
      %v1850 = vpack.c.bf16 %v1846, %v1844
      %1851 = vrot.lane.b32.xlu0 %v1827, 16
      %v1852 = vpop.permute.xlu0 %1851
      %1853 = vrot.lane.b32.xlu0 %v1829, 16
      %v1854 = vpop.permute.xlu0 %1853
      %1855 = vrot.lane.b32.xlu0 %v1828, 16
      %v1856 = vpop.permute.xlu0 %1855
      %1857 = vrot.lane.b32.xlu0 %v1830, 16
      %v1858 = vpop.permute.xlu0 %1857
      %v1859 = vsel %vm1079, %v1852, %v1856
      %v1860 = vsel %vm1079, %v1854, %v1858
      %v1861 = vsel %vm1079, %v1856, %v1852
      %v1862 = vsel %vm1079, %v1858, %v1854
      %v1863 = vmul.f32 %v1861, %v1088
      %v1864 = vmul.f32 %v1859, %v1092
      %v1865 = vmul.f32 %v1862, %v1088
      %v1866 = vmul.f32 %v1860, %v1092
      %s1867 = scalar_lea.vmem %s6, 8
      %v1868 = vld [vmem:[%s1867] sm:$0xf]
      %v1869 = vld [vmem:[%s1867 + $0x4] sm:$0xf]
      %v1870 = vpack.c.bf16 %v1865, %v1863
      %v1871 = vpack.c.bf16 %v1866, %v1864
      %v1874 = vunpack.c.l.b16 %v1868
      %v1875 = vunpack.c.l.b16 %v1869
      %v1876 = vpack.c.b16 %v1875, %v1874
      %vm1877 = vcmask 130048
      %v1879 = vsel %vm1877, %v1876, 0
      %1881 = vmatprep.subr.bf16.mxu0 %v1871
      %1882 = vmatpush1.bf16.msra.mxu0 %v1870
      %1883 = vmatprep.subr.bf16.mxu0 0
      %1884 = vmatpush1.bf16.msra.mxu0 0
      %1885 = vmatprep.subr.bf16.mxu0 0
      %1886 = vmatpush1.bf16.msra.mxu0 0
      %1887 = vmatprep.subr.bf16.mxu0 0
      %1888 = vmatpush1.bf16.msra.mxu0 0
      %1889 = vmatprep.subr.bf16.mxu0 0
      %1890 = vmatpush1.bf16.msra.mxu0 0
      %1891 = vmatprep.subr.bf16.mxu0 0
      %1892 = vmatpush1.bf16.msra.mxu0 0
      %1893 = vmatprep.subr.bf16.mxu0 0
      %1894 = vmatpush1.bf16.msra.mxu0 0
      %1895 = vmatprep.subr.bf16.mxu0 0
      %1896 = vmatpush1.bf16.msra.mxu0 0
      %1897 = vmatprep.subr.bf16.mxu0 0
      %1898 = vmatpush1.bf16.msra.mxu0 0
      %1899 = vmatprep.subr.bf16.mxu0 0
      %1900 = vmatpush1.bf16.msra.mxu0 0
      %1901 = vmatprep.subr.bf16.mxu0 0
      %1902 = vmatpush1.bf16.msra.mxu0 0
      %1903 = vmatprep.subr.bf16.mxu0 0
      %1904 = vmatpush1.bf16.msra.mxu0 0
      %1905 = vmatprep.subr.bf16.mxu0 0
      %1906 = vmatpush1.bf16.msra.mxu0 0
      %1907 = vmatprep.subr.bf16.mxu0 0
      %1908 = vmatpush1.bf16.msra.mxu0 0
      %1909 = vmatprep.subr.bf16.mxu0 0
      %1910 = vmatpush1.bf16.msra.mxu0 0
      %1911 = vmatprep.subr.bf16.mxu0 0
      %1912 = vmatpush1.bf16.msra.mxu0 0
      %1913 = vmatprep.mubr.bf16.mxu0 0
      %1914 = vmatmul.mubr.bf16.gmra.mrb[0].mxu0 %v1879
      %v1915 = vpop.f32.mrb[0].mxu0
      %v1916 = vadd.f32 0.0, %v1915
      %v1917 = vpop.f32.mrb[0].mxu0
      %v1918 = vadd.f32 0.0, %v1917
      %v1919 = vpop.f32.mrb[0].mxu0
      %v1920 = vadd.f32 0.0, %v1919
      %v1921 = vpop.f32.mrb[0].mxu0
      %v1922 = vadd.f32 0.0, %v1921
      %1923 = vdwg.mxu0
      %v1926 = vunpack.c.l.b16 %v1847
      %v1927 = vunpack.c.l.b16 %v1848
      %v1928 = vpack.c.b16 %v1927, %v1926
      %v1930 = vsel %vm1877, %v1928, 0
      %1932 = vmatprep.subr.bf16.mxu0 %v1850
      %1933 = vmatpush1.bf16.msra.mxu0 %v1849
      %1934 = vmatprep.subr.bf16.mxu0 0
      %1935 = vmatpush1.bf16.msra.mxu0 0
      %1936 = vmatprep.subr.bf16.mxu0 0
      %1937 = vmatpush1.bf16.msra.mxu0 0
      %1938 = vmatprep.subr.bf16.mxu0 0
      %1939 = vmatpush1.bf16.msra.mxu0 0
      %1940 = vmatprep.subr.bf16.mxu0 0
      %1941 = vmatpush1.bf16.msra.mxu0 0
      %1942 = vmatprep.subr.bf16.mxu0 0
      %1943 = vmatpush1.bf16.msra.mxu0 0
      %1944 = vmatprep.subr.bf16.mxu0 0
      %1945 = vmatpush1.bf16.msra.mxu0 0
      %1946 = vmatprep.subr.bf16.mxu0 0
      %1947 = vmatpush1.bf16.msra.mxu0 0
      %1948 = vmatprep.subr.bf16.mxu0 0
      %1949 = vmatpush1.bf16.msra.mxu0 0
      %1950 = vmatprep.subr.bf16.mxu0 0
      %1951 = vmatpush1.bf16.msra.mxu0 0
      %1952 = vmatprep.subr.bf16.mxu0 0
      %1953 = vmatpush1.bf16.msra.mxu0 0
      %1954 = vmatprep.subr.bf16.mxu0 0
      %1955 = vmatpush1.bf16.msra.mxu0 0
      %1956 = vmatprep.subr.bf16.mxu0 0
      %1957 = vmatpush1.bf16.msra.mxu0 0
      %1958 = vmatprep.subr.bf16.mxu0 0
      %1959 = vmatpush1.bf16.msra.mxu0 0
      %1960 = vmatprep.subr.bf16.mxu0 0
      %1961 = vmatpush1.bf16.msra.mxu0 0
      %1962 = vmatprep.subr.bf16.mxu0 0
      %1963 = vmatpush1.bf16.msra.mxu0 0
      %1964 = vmatprep.mubr.bf16.mxu0 0
      %1965 = vmatmul.mubr.bf16.gmra.mrb[0].mxu0 %v1930
      %v1966 = vpop.f32.mrb[0].mxu0
      %v1967 = vadd.f32 %v1916, %v1966
      %v1968 = vpop.f32.mrb[0].mxu0
      %v1969 = vadd.f32 %v1918, %v1968
      %v1970 = vpop.f32.mrb[0].mxu0
      %v1971 = vadd.f32 %v1920, %v1970
      %v1972 = vpop.f32.mrb[0].mxu0
      %v1973 = vadd.f32 %v1922, %v1972
      %1974 = vdwg.mxu0
      %1975 = vrot.lane.b32.xlu0 %v1827, 15
      %v1976 = vpop.permute.xlu0 %1975
      %1977 = vrot.lane.b32.xlu0 %v1829, 15
      %v1978 = vpop.permute.xlu0 %1977
      %1979 = vrot.lane.b32.xlu0 %v1828, 15
      %v1980 = vpop.permute.xlu0 %1979
      %1981 = vrot.lane.b32.xlu0 %v1830, 15
      %v1982 = vpop.permute.xlu0 %1981
      %v1983 = vsel %vm1221, %v1976, %v1980
      %v1984 = vsel %vm1221, %v1978, %v1982
      %v1985 = vsel %vm1221, %v1980, %v1976
      %v1986 = vsel %vm1221, %v1982, %v1978
      %v1987 = vmul.f32 %v1985, %v1230
      %v1988 = vmul.f32 %v1983, %v1234
      %v1989 = vmul.f32 %v1986, %v1230
      %v1990 = vmul.f32 %v1984, %v1234
      %s1991 = scalar_lea.vmem %s6, 16
      %v1992 = vld [vmem:[%s1991] sm:$0xf]
      %v1993 = vld [vmem:[%s1991 + $0x4] sm:$0xf]
      %v1994 = vpack.c.bf16 %v1989, %v1987
      %v1995 = vpack.c.bf16 %v1990, %v1988
      %v1998 = vunpack.c.l.b16 %v1992
      %v1999 = vunpack.c.l.b16 %v1993
      %v2000 = vpack.c.b16 %v1999, %v1998
      %v2002 = vsel %vm1877, %v2000, 0
      %2004 = vmatprep.subr.bf16.mxu0 %v1995
      %2005 = vmatpush1.bf16.msra.mxu0 %v1994
      %2006 = vmatprep.subr.bf16.mxu0 0
      %2007 = vmatpush1.bf16.msra.mxu0 0
      %2008 = vmatprep.subr.bf16.mxu0 0
      %2009 = vmatpush1.bf16.msra.mxu0 0
      %2010 = vmatprep.subr.bf16.mxu0 0
      %2011 = vmatpush1.bf16.msra.mxu0 0
      %2012 = vmatprep.subr.bf16.mxu0 0
      %2013 = vmatpush1.bf16.msra.mxu0 0
      %2014 = vmatprep.subr.bf16.mxu0 0
      %2015 = vmatpush1.bf16.msra.mxu0 0
      %2016 = vmatprep.subr.bf16.mxu0 0
      %2017 = vmatpush1.bf16.msra.mxu0 0
      %2018 = vmatprep.subr.bf16.mxu0 0
      %2019 = vmatpush1.bf16.msra.mxu0 0
      %2020 = vmatprep.subr.bf16.mxu0 0
      %2021 = vmatpush1.bf16.msra.mxu0 0
      %2022 = vmatprep.subr.bf16.mxu0 0
      %2023 = vmatpush1.bf16.msra.mxu0 0
      %2024 = vmatprep.subr.bf16.mxu0 0
      %2025 = vmatpush1.bf16.msra.mxu0 0
      %2026 = vmatprep.subr.bf16.mxu0 0
      %2027 = vmatpush1.bf16.msra.mxu0 0
      %2028 = vmatprep.subr.bf16.mxu0 0
      %2029 = vmatpush1.bf16.msra.mxu0 0
      %2030 = vmatprep.subr.bf16.mxu0 0
      %2031 = vmatpush1.bf16.msra.mxu0 0
      %2032 = vmatprep.subr.bf16.mxu0 0
      %2033 = vmatpush1.bf16.msra.mxu0 0
      %2034 = vmatprep.subr.bf16.mxu0 0
      %2035 = vmatpush1.bf16.msra.mxu0 0
      %2036 = vmatprep.mubr.bf16.mxu0 0
      %2037 = vmatmul.mubr.bf16.gmra.mrb[0].mxu0 %v2002
      %v2038 = vpop.f32.mrb[0].mxu0
      %v2039 = vadd.f32 0.0, %v2038
      %v2040 = vpop.f32.mrb[0].mxu0
      %v2041 = vadd.f32 0.0, %v2040
      %v2042 = vpop.f32.mrb[0].mxu0
      %v2043 = vadd.f32 0.0, %v2042
      %v2044 = vpop.f32.mrb[0].mxu0
      %v2045 = vadd.f32 0.0, %v2044
      %2046 = vdwg.mxu0
      %v2047 = vadd.f32 %v1967, %v2039
      %v2048 = vadd.f32 %v1969, %v2041
      %v2049 = vadd.f32 %v1971, %v2043
      %v2050 = vadd.f32 %v1973, %v2045
      %2051 = vrot.lane.b32.xlu0 %v1827, 1
      %v2052 = vpop.permute.xlu0 %2051
      %2053 = vrot.lane.b32.xlu0 %v1829, 1
      %v2054 = vpop.permute.xlu0 %2053
      %2055 = vrot.lane.b32.xlu0 %v1828, 1
      %v2056 = vpop.permute.xlu0 %2055
      %2057 = vrot.lane.b32.xlu0 %v1830, 1
      %v2058 = vpop.permute.xlu0 %2057
      %v2059 = vsel %vm1309, %v2052, %v2056
      %v2060 = vsel %vm1309, %v2054, %v2058
      %v2061 = vsel %vm1309, %v2056, %v2052
      %v2062 = vsel %vm1309, %v2058, %v2054
      %v2063 = vmul.f32 %v2061, %v1318
      %v2064 = vmul.f32 %v2059, %v1322
      %v2065 = vmul.f32 %v2062, %v1318
      %v2066 = vmul.f32 %v2060, %v1322
      %s2067 = scalar_lea.vmem %s6, 24
      %v2068 = vld [vmem:[%s2067] sm:$0xf]
      %v2069 = vld [vmem:[%s2067 + $0x4] sm:$0xf]
      %v2070 = vpack.c.bf16 %v2065, %v2063
      %v2071 = vpack.c.bf16 %v2066, %v2064
      %v2074 = vunpack.c.l.b16 %v2068
      %v2075 = vunpack.c.l.b16 %v2069
      %v2076 = vpack.c.b16 %v2075, %v2074
      %v2078 = vsel %vm1877, %v2076, 0
      %2080 = vmatprep.subr.bf16.mxu0 %v2071
      %2081 = vmatpush1.bf16.msra.mxu0 %v2070
      %2082 = vmatprep.subr.bf16.mxu0 0
      %2083 = vmatpush1.bf16.msra.mxu0 0
      %2084 = vmatprep.subr.bf16.mxu0 0
      %2085 = vmatpush1.bf16.msra.mxu0 0
      %2086 = vmatprep.subr.bf16.mxu0 0
      %2087 = vmatpush1.bf16.msra.mxu0 0
      %2088 = vmatprep.subr.bf16.mxu0 0
      %2089 = vmatpush1.bf16.msra.mxu0 0
      %2090 = vmatprep.subr.bf16.mxu0 0
      %2091 = vmatpush1.bf16.msra.mxu0 0
      %2092 = vmatprep.subr.bf16.mxu0 0
      %2093 = vmatpush1.bf16.msra.mxu0 0
      %2094 = vmatprep.subr.bf16.mxu0 0
      %2095 = vmatpush1.bf16.msra.mxu0 0
      %2096 = vmatprep.subr.bf16.mxu0 0
      %2097 = vmatpush1.bf16.msra.mxu0 0
      %2098 = vmatprep.subr.bf16.mxu0 0
      %2099 = vmatpush1.bf16.msra.mxu0 0
      %2100 = vmatprep.subr.bf16.mxu0 0
      %2101 = vmatpush1.bf16.msra.mxu0 0
      %2102 = vmatprep.subr.bf16.mxu0 0
      %2103 = vmatpush1.bf16.msra.mxu0 0
      %2104 = vmatprep.subr.bf16.mxu0 0
      %2105 = vmatpush1.bf16.msra.mxu0 0
      %2106 = vmatprep.subr.bf16.mxu0 0
      %2107 = vmatpush1.bf16.msra.mxu0 0
      %2108 = vmatprep.subr.bf16.mxu0 0
      %2109 = vmatpush1.bf16.msra.mxu0 0
      %2110 = vmatprep.subr.bf16.mxu0 0
      %2111 = vmatpush1.bf16.msra.mxu0 0
      %2112 = vmatprep.mubr.bf16.mxu0 0
      %2113 = vmatmul.mubr.bf16.gmra.mrb[0].mxu0 %v2078
      %v2114 = vpop.f32.mrb[0].mxu0
      %v2115 = vadd.f32 0.0, %v2114
      %v2116 = vpop.f32.mrb[0].mxu0
      %v2117 = vadd.f32 0.0, %v2116
      %v2118 = vpop.f32.mrb[0].mxu0
      %v2119 = vadd.f32 0.0, %v2118
      %v2120 = vpop.f32.mrb[0].mxu0
      %v2121 = vadd.f32 0.0, %v2120
      %2122 = vdwg.mxu0
      %v2123 = vadd.f32 %v2047, %v2115
      %v2124 = vadd.f32 %v2048, %v2117
      %v2125 = vadd.f32 %v2049, %v2119
      %v2126 = vadd.f32 %v2050, %v2121
      %s2127 = scalar_lea.vmem %s6, 32
      %v2128 = vld [vmem:[%s2127] sm:$0xf]
      %v2129 = vld [vmem:[%s2127 + $0x4] sm:$0xf]
      %v2130 = vpack.c.bf16 %v1829, %v1827
      %v2131 = vpack.c.bf16 %v1830, %v1828
      %v2134 = vunpack.c.l.b16 %v2128
      %v2135 = vunpack.c.l.b16 %v2129
      %v2136 = vpack.c.b16 %v2135, %v2134
      %v2138 = vsel %vm1877, %v2136, 0
      %2140 = vmatprep.subr.bf16.mxu0 %v2131
      %2141 = vmatpush1.bf16.msra.mxu0 %v2130
      %2142 = vmatprep.subr.bf16.mxu0 0
      %2143 = vmatpush1.bf16.msra.mxu0 0
      %2144 = vmatprep.subr.bf16.mxu0 0
      %2145 = vmatpush1.bf16.msra.mxu0 0
      %2146 = vmatprep.subr.bf16.mxu0 0
      %2147 = vmatpush1.bf16.msra.mxu0 0
      %2148 = vmatprep.subr.bf16.mxu0 0
      %2149 = vmatpush1.bf16.msra.mxu0 0
      %2150 = vmatprep.subr.bf16.mxu0 0
      %2151 = vmatpush1.bf16.msra.mxu0 0
      %2152 = vmatprep.subr.bf16.mxu0 0
      %2153 = vmatpush1.bf16.msra.mxu0 0
      %2154 = vmatprep.subr.bf16.mxu0 0
      %2155 = vmatpush1.bf16.msra.mxu0 0
      %2156 = vmatprep.subr.bf16.mxu0 0
      %2157 = vmatpush1.bf16.msra.mxu0 0
      %2158 = vmatprep.subr.bf16.mxu0 0
      %2159 = vmatpush1.bf16.msra.mxu0 0
      %2160 = vmatprep.subr.bf16.mxu0 0
      %2161 = vmatpush1.bf16.msra.mxu0 0
      %2162 = vmatprep.subr.bf16.mxu0 0
      %2163 = vmatpush1.bf16.msra.mxu0 0
      %2164 = vmatprep.subr.bf16.mxu0 0
      %2165 = vmatpush1.bf16.msra.mxu0 0
      %2166 = vmatprep.subr.bf16.mxu0 0
      %2167 = vmatpush1.bf16.msra.mxu0 0
      %2168 = vmatprep.subr.bf16.mxu0 0
      %2169 = vmatpush1.bf16.msra.mxu0 0
      %2170 = vmatprep.subr.bf16.mxu0 0
      %2171 = vmatpush1.bf16.msra.mxu0 0
      %2172 = vmatprep.mubr.bf16.mxu0 0
      %2173 = vmatmul.mubr.bf16.gmra.mrb[0].mxu0 %v2138
      %v2174 = vpop.f32.mrb[0].mxu0
      %v2175 = vadd.f32 0.0, %v2174
      %v2176 = vpop.f32.mrb[0].mxu0
      %v2177 = vadd.f32 0.0, %v2176
      %v2178 = vpop.f32.mrb[0].mxu0
      %v2179 = vadd.f32 0.0, %v2178
      %v2180 = vpop.f32.mrb[0].mxu0
      %v2181 = vadd.f32 0.0, %v2180
      %2182 = vdwg.mxu0
      %v2183 = vadd.f32 %v2123, %v2175
      %v2184 = vadd.f32 %v2124, %v2177
      %v2185 = vadd.f32 %v2125, %v2179
      %v2186 = vadd.f32 %v2126, %v2181
      %2187 = vrot.lane.b32.xlu0 %v1827, 127
      %v2188 = vpop.permute.xlu0 %2187
      %2189 = vrot.lane.b32.xlu0 %v1829, 127
      %v2190 = vpop.permute.xlu0 %2189
      %2191 = vrot.lane.b32.xlu0 %v1828, 127
      %v2192 = vpop.permute.xlu0 %2191
      %2193 = vrot.lane.b32.xlu0 %v1830, 127
      %v2194 = vpop.permute.xlu0 %2193
      %v2195 = vsel %vm1463, %v2188, %v2192
      %v2196 = vsel %vm1463, %v2190, %v2194
      %v2197 = vsel %vm1463, %v2192, %v2188
      %v2198 = vsel %vm1463, %v2194, %v2190
      %v2199 = vmul.f32 %v2195, %v1472
      %v2200 = vmul.f32 %v2197, %v1476
      %v2201 = vmul.f32 %v2196, %v1472
      %v2202 = vmul.f32 %v2198, %v1476
      %s2203 = scalar_lea.vmem %s6, 40
      %v2204 = vld [vmem:[%s2203] sm:$0xf]
      %v2205 = vld [vmem:[%s2203 + $0x4] sm:$0xf]
      %v2206 = vpack.c.bf16 %v2201, %v2199
      %v2207 = vpack.c.bf16 %v2202, %v2200
      %v2210 = vunpack.c.l.b16 %v2204
      %v2211 = vunpack.c.l.b16 %v2205
      %v2212 = vpack.c.b16 %v2211, %v2210
      %v2214 = vsel %vm1877, %v2212, 0
      %2216 = vmatprep.subr.bf16.mxu0 %v2207
      %2217 = vmatpush1.bf16.msra.mxu0 %v2206
      %2218 = vmatprep.subr.bf16.mxu0 0
      %2219 = vmatpush1.bf16.msra.mxu0 0
      %2220 = vmatprep.subr.bf16.mxu0 0
      %2221 = vmatpush1.bf16.msra.mxu0 0
      %2222 = vmatprep.subr.bf16.mxu0 0
      %2223 = vmatpush1.bf16.msra.mxu0 0
      %2224 = vmatprep.subr.bf16.mxu0 0
      %2225 = vmatpush1.bf16.msra.mxu0 0
      %2226 = vmatprep.subr.bf16.mxu0 0
      %2227 = vmatpush1.bf16.msra.mxu0 0
      %2228 = vmatprep.subr.bf16.mxu0 0
      %2229 = vmatpush1.bf16.msra.mxu0 0
      %2230 = vmatprep.subr.bf16.mxu0 0
      %2231 = vmatpush1.bf16.msra.mxu0 0
      %2232 = vmatprep.subr.bf16.mxu0 0
      %2233 = vmatpush1.bf16.msra.mxu0 0
      %2234 = vmatprep.subr.bf16.mxu0 0
      %2235 = vmatpush1.bf16.msra.mxu0 0
      %2236 = vmatprep.subr.bf16.mxu0 0
      %2237 = vmatpush1.bf16.msra.mxu0 0
      %2238 = vmatprep.subr.bf16.mxu0 0
      %2239 = vmatpush1.bf16.msra.mxu0 0
      %2240 = vmatprep.subr.bf16.mxu0 0
      %2241 = vmatpush1.bf16.msra.mxu0 0
      %2242 = vmatprep.subr.bf16.mxu0 0
      %2243 = vmatpush1.bf16.msra.mxu0 0
      %2244 = vmatprep.subr.bf16.mxu0 0
      %2245 = vmatpush1.bf16.msra.mxu0 0
      %2246 = vmatprep.subr.bf16.mxu0 0
      %2247 = vmatpush1.bf16.msra.mxu0 0
      %2248 = vmatprep.mubr.bf16.mxu0 0
      %2249 = vmatmul.mubr.bf16.gmra.mrb[0].mxu0 %v2214
      %v2250 = vpop.f32.mrb[0].mxu0
      %v2251 = vadd.f32 0.0, %v2250
      %v2252 = vpop.f32.mrb[0].mxu0
      %v2253 = vadd.f32 0.0, %v2252
      %v2254 = vpop.f32.mrb[0].mxu0
      %v2255 = vadd.f32 0.0, %v2254
      %v2256 = vpop.f32.mrb[0].mxu0
      %v2257 = vadd.f32 0.0, %v2256
      %2258 = vdwg.mxu0
      %v2259 = vadd.f32 %v2183, %v2251
      %v2260 = vadd.f32 %v2184, %v2253
      %v2261 = vadd.f32 %v2185, %v2255
      %v2262 = vadd.f32 %v2186, %v2257
      %2263 = vrot.lane.b32.xlu0 %v1827, 113
      %v2264 = vpop.permute.xlu0 %2263
      %2265 = vrot.lane.b32.xlu0 %v1829, 113
      %v2266 = vpop.permute.xlu0 %2265
      %2267 = vrot.lane.b32.xlu0 %v1828, 113
      %v2268 = vpop.permute.xlu0 %2267
      %2269 = vrot.lane.b32.xlu0 %v1830, 113
      %v2270 = vpop.permute.xlu0 %2269
      %v2271 = vsel %vm1551, %v2264, %v2268
      %v2272 = vsel %vm1551, %v2266, %v2270
      %v2273 = vsel %vm1551, %v2268, %v2264
      %v2274 = vsel %vm1551, %v2270, %v2266
      %v2275 = vmul.f32 %v2271, %v1560
      %v2276 = vmul.f32 %v2273, %v1564
      %v2277 = vmul.f32 %v2272, %v1560
      %v2278 = vmul.f32 %v2274, %v1564
      %s2279 = scalar_lea.vmem %s6, 48
      %v2280 = vld [vmem:[%s2279] sm:$0xf]
      %v2281 = vld [vmem:[%s2279 + $0x4] sm:$0xf]
      %v2282 = vpack.c.bf16 %v2277, %v2275
      %v2283 = vpack.c.bf16 %v2278, %v2276
      %v2286 = vunpack.c.l.b16 %v2280
      %v2287 = vunpack.c.l.b16 %v2281
      %v2288 = vpack.c.b16 %v2287, %v2286
      %v2290 = vsel %vm1877, %v2288, 0
      %2292 = vmatprep.subr.bf16.mxu0 %v2283
      %2293 = vmatpush1.bf16.msra.mxu0 %v2282
      %2294 = vmatprep.subr.bf16.mxu0 0
      %2295 = vmatpush1.bf16.msra.mxu0 0
      %2296 = vmatprep.subr.bf16.mxu0 0
      %2297 = vmatpush1.bf16.msra.mxu0 0
      %2298 = vmatprep.subr.bf16.mxu0 0
      %2299 = vmatpush1.bf16.msra.mxu0 0
      %2300 = vmatprep.subr.bf16.mxu0 0
      %2301 = vmatpush1.bf16.msra.mxu0 0
      %2302 = vmatprep.subr.bf16.mxu0 0
      %2303 = vmatpush1.bf16.msra.mxu0 0
      %2304 = vmatprep.subr.bf16.mxu0 0
      %2305 = vmatpush1.bf16.msra.mxu0 0
      %2306 = vmatprep.subr.bf16.mxu0 0
      %2307 = vmatpush1.bf16.msra.mxu0 0
      %2308 = vmatprep.subr.bf16.mxu0 0
      %2309 = vmatpush1.bf16.msra.mxu0 0
      %2310 = vmatprep.subr.bf16.mxu0 0
      %2311 = vmatpush1.bf16.msra.mxu0 0
      %2312 = vmatprep.subr.bf16.mxu0 0
      %2313 = vmatpush1.bf16.msra.mxu0 0
      %2314 = vmatprep.subr.bf16.mxu0 0
      %2315 = vmatpush1.bf16.msra.mxu0 0
      %2316 = vmatprep.subr.bf16.mxu0 0
      %2317 = vmatpush1.bf16.msra.mxu0 0
      %2318 = vmatprep.subr.bf16.mxu0 0
      %2319 = vmatpush1.bf16.msra.mxu0 0
      %2320 = vmatprep.subr.bf16.mxu0 0
      %2321 = vmatpush1.bf16.msra.mxu0 0
      %2322 = vmatprep.subr.bf16.mxu0 0
      %2323 = vmatpush1.bf16.msra.mxu0 0
      %2324 = vmatprep.mubr.bf16.mxu0 0
      %2325 = vmatmul.mubr.bf16.gmra.mrb[0].mxu0 %v2290
      %v2326 = vpop.f32.mrb[0].mxu0
      %v2327 = vadd.f32 0.0, %v2326
      %v2328 = vpop.f32.mrb[0].mxu0
      %v2329 = vadd.f32 0.0, %v2328
      %v2330 = vpop.f32.mrb[0].mxu0
      %v2331 = vadd.f32 0.0, %v2330
      %v2332 = vpop.f32.mrb[0].mxu0
      %v2333 = vadd.f32 0.0, %v2332
      %2334 = vdwg.mxu0
      %v2335 = vadd.f32 %v2259, %v2327
      %v2336 = vadd.f32 %v2260, %v2329
      %v2337 = vadd.f32 %v2261, %v2331
      %v2338 = vadd.f32 %v2262, %v2333
      %2339 = vrot.lane.b32.xlu0 %v1827, 112
      %v2340 = vpop.permute.xlu0 %2339
      %2341 = vrot.lane.b32.xlu0 %v1829, 112
      %v2342 = vpop.permute.xlu0 %2341
      %2343 = vrot.lane.b32.xlu0 %v1828, 112
      %v2344 = vpop.permute.xlu0 %2343
      %2345 = vrot.lane.b32.xlu0 %v1830, 112
      %v2346 = vpop.permute.xlu0 %2345
      %v2347 = vsel %vm1639, %v2340, %v2344
      %v2348 = vsel %vm1639, %v2342, %v2346
      %v2349 = vsel %vm1639, %v2344, %v2340
      %v2350 = vsel %vm1639, %v2346, %v2342
      %v2351 = vmul.f32 %v2347, %v1648
      %v2352 = vmul.f32 %v2349, %v1652
      %v2353 = vmul.f32 %v2348, %v1648
      %v2354 = vmul.f32 %v2350, %v1652
      %s2355 = scalar_lea.vmem %s6, 56
      %v2356 = vld [vmem:[%s2355] sm:$0xf]
      %v2357 = vld [vmem:[%s2355 + $0x4] sm:$0xf]
      %v2358 = vpack.c.bf16 %v2353, %v2351
      %v2359 = vpack.c.bf16 %v2354, %v2352
      %v2362 = vunpack.c.l.b16 %v2356
      %v2363 = vunpack.c.l.b16 %v2357
      %v2364 = vpack.c.b16 %v2363, %v2362
      %v2366 = vsel %vm1877, %v2364, 0
      %2368 = vmatprep.subr.bf16.mxu0 %v2359
      %2369 = vmatpush1.bf16.msra.mxu0 %v2358
      %2370 = vmatprep.subr.bf16.mxu0 0
      %2371 = vmatpush1.bf16.msra.mxu0 0
      %2372 = vmatprep.subr.bf16.mxu0 0
      %2373 = vmatpush1.bf16.msra.mxu0 0
      %2374 = vmatprep.subr.bf16.mxu0 0
      %2375 = vmatpush1.bf16.msra.mxu0 0
      %2376 = vmatprep.subr.bf16.mxu0 0
      %2377 = vmatpush1.bf16.msra.mxu0 0
      %2378 = vmatprep.subr.bf16.mxu0 0
      %2379 = vmatpush1.bf16.msra.mxu0 0
      %2380 = vmatprep.subr.bf16.mxu0 0
      %2381 = vmatpush1.bf16.msra.mxu0 0
      %2382 = vmatprep.subr.bf16.mxu0 0
      %2383 = vmatpush1.bf16.msra.mxu0 0
      %2384 = vmatprep.subr.bf16.mxu0 0
      %2385 = vmatpush1.bf16.msra.mxu0 0
      %2386 = vmatprep.subr.bf16.mxu0 0
      %2387 = vmatpush1.bf16.msra.mxu0 0
      %2388 = vmatprep.subr.bf16.mxu0 0
      %2389 = vmatpush1.bf16.msra.mxu0 0
      %2390 = vmatprep.subr.bf16.mxu0 0
      %2391 = vmatpush1.bf16.msra.mxu0 0
      %2392 = vmatprep.subr.bf16.mxu0 0
      %2393 = vmatpush1.bf16.msra.mxu0 0
      %2394 = vmatprep.subr.bf16.mxu0 0
      %2395 = vmatpush1.bf16.msra.mxu0 0
      %2396 = vmatprep.subr.bf16.mxu0 0
      %2397 = vmatpush1.bf16.msra.mxu0 0
      %2398 = vmatprep.subr.bf16.mxu0 0
      %2399 = vmatpush1.bf16.msra.mxu0 0
      %2400 = vmatprep.mubr.bf16.mxu0 0
      %2401 = vmatmul.mubr.bf16.gmra.mrb[0].mxu0 %v2366
      %v2402 = vpop.f32.mrb[0].mxu0
      %v2403 = vadd.f32 0.0, %v2402
      %v2404 = vpop.f32.mrb[0].mxu0
      %v2405 = vadd.f32 0.0, %v2404
      %v2406 = vpop.f32.mrb[0].mxu0
      %v2407 = vadd.f32 0.0, %v2406
      %v2408 = vpop.f32.mrb[0].mxu0
      %v2409 = vadd.f32 0.0, %v2408
      %2410 = vdwg.mxu0
      %v2411 = vadd.f32 %v2335, %v2403
      %v2412 = vadd.f32 %v2336, %v2405
      %v2413 = vadd.f32 %v2337, %v2407
      %v2414 = vadd.f32 %v2338, %v2409
      %2415 = vrot.lane.b32.xlu0 %v1827, 111
      %v2416 = vpop.permute.xlu0 %2415
      %2417 = vrot.lane.b32.xlu0 %v1829, 111
      %v2418 = vpop.permute.xlu0 %2417
      %2419 = vrot.lane.b32.xlu0 %v1828, 111
      %v2420 = vpop.permute.xlu0 %2419
      %2421 = vrot.lane.b32.xlu0 %v1830, 111
      %v2422 = vpop.permute.xlu0 %2421
      %v2423 = vsel %vm1727, %v2416, %v2420
      %v2424 = vsel %vm1727, %v2418, %v2422
      %v2425 = vsel %vm1727, %v2420, %v2416
      %v2426 = vsel %vm1727, %v2422, %v2418
      %v2427 = vmul.f32 %v2423, %v1736
      %v2428 = vmul.f32 %v2425, %v1740
      %v2429 = vmul.f32 %v2424, %v1736
      %v2430 = vmul.f32 %v2426, %v1740
      %s2431 = scalar_lea.vmem %s6, 64
      %v2432 = vld [vmem:[%s2431] sm:$0xf]
      %v2433 = vld [vmem:[%s2431 + $0x4] sm:$0xf]
      %v2434 = vpack.c.bf16 %v2429, %v2427
      %v2435 = vpack.c.bf16 %v2430, %v2428
      %v2438 = vunpack.c.l.b16 %v2432
      %v2439 = vunpack.c.l.b16 %v2433
      %v2440 = vpack.c.b16 %v2439, %v2438
      %v2442 = vsel %vm1877, %v2440, 0
      %2444 = vmatprep.subr.bf16.mxu0 %v2435
      %2445 = vmatpush1.bf16.msra.mxu0 %v2434
      %2446 = vmatprep.subr.bf16.mxu0 0
      %2447 = vmatpush1.bf16.msra.mxu0 0
      %2448 = vmatprep.subr.bf16.mxu0 0
      %2449 = vmatpush1.bf16.msra.mxu0 0
      %2450 = vmatprep.subr.bf16.mxu0 0
      %2451 = vmatpush1.bf16.msra.mxu0 0
      %2452 = vmatprep.subr.bf16.mxu0 0
      %2453 = vmatpush1.bf16.msra.mxu0 0
      %2454 = vmatprep.subr.bf16.mxu0 0
      %2455 = vmatpush1.bf16.msra.mxu0 0
      %2456 = vmatprep.subr.bf16.mxu0 0
      %2457 = vmatpush1.bf16.msra.mxu0 0
      %2458 = vmatprep.subr.bf16.mxu0 0
      %2459 = vmatpush1.bf16.msra.mxu0 0
      %2460 = vmatprep.subr.bf16.mxu0 0
      %2461 = vmatpush1.bf16.msra.mxu0 0
      %2462 = vmatprep.subr.bf16.mxu0 0
      %2463 = vmatpush1.bf16.msra.mxu0 0
      %2464 = vmatprep.subr.bf16.mxu0 0
      %2465 = vmatpush1.bf16.msra.mxu0 0
      %2466 = vmatprep.subr.bf16.mxu0 0
      %2467 = vmatpush1.bf16.msra.mxu0 0
      %2468 = vmatprep.subr.bf16.mxu0 0
      %2469 = vmatpush1.bf16.msra.mxu0 0
      %2470 = vmatprep.subr.bf16.mxu0 0
      %2471 = vmatpush1.bf16.msra.mxu0 0
      %2472 = vmatprep.subr.bf16.mxu0 0
      %2473 = vmatpush1.bf16.msra.mxu0 0
      %2474 = vmatprep.subr.bf16.mxu0 0
      %2475 = vmatpush1.bf16.msra.mxu0 0
      %2476 = vmatprep.mubr.bf16.mxu0 0
      %2477 = vmatmul.mubr.bf16.gmra.mrb[0].mxu0 %v2442
      %v2478 = vpop.f32.mrb[0].mxu0
      %v2479 = vadd.f32 0.0, %v2478
      %v2480 = vpop.f32.mrb[0].mxu0
      %v2481 = vadd.f32 0.0, %v2480
      %v2482 = vpop.f32.mrb[0].mxu0
      %v2483 = vadd.f32 0.0, %v2482
      %v2484 = vpop.f32.mrb[0].mxu0
      %v2485 = vadd.f32 0.0, %v2484
      %2486 = vdwg.mxu0
      %v2487 = vadd.f32 %v2411, %v2479
      %v2488 = vadd.f32 %v2412, %v2481
      %v2489 = vadd.f32 %v2413, %v2483
      %v2490 = vadd.f32 %v2414, %v2485
      %v2491 = vld [vmem:[%s7] sm:$0xff]
      %v2492 = vld [vmem:[%s7 + $0x8] sm:$0xff]
      %2494 = vset.pattern.permute.xlu0 0
      %2495 = vperm.xlu0 %2494, %v2491
      %v2496 = vpop.permute.xlu0 %2495
      %2499 = vset.pattern.permute.xlu0 0
      %2500 = vperm.xlu0 %2499, %v2492
      %v2501 = vpop.permute.xlu0 %2500
      %v2503 = vadd.f32 %v2487, %v2496
      %v2504 = vadd.f32 %v2488, %v2496
      %v2505 = vadd.f32 %v2489, %v2501
      %v2506 = vadd.f32 %v2490, %v2501
      %v2507 = vmax.f32 %v2503, 0.0
      %v2508 = vmax.f32 %v2504, 0.0
      %v2509 = vmax.f32 %v2505, 0.0
      %v2510 = vmax.f32 %v2506, 0.0
      %2511 = vrot.lane.b32.xlu0 %v2507, 17
      %v2512 = vpop.permute.xlu0 %2511
      %2513 = vrot.lane.b32.xlu0 %v2509, 17
      %v2514 = vpop.permute.xlu0 %2513
      %2515 = vrot.lane.b32.xlu0 %v2508, 17
      %v2516 = vpop.permute.xlu0 %2515
      %2517 = vrot.lane.b32.xlu0 %v2510, 17
      %v2518 = vpop.permute.xlu0 %2517
      %v2519 = vsel %vm1054, %v2512, %v2516
      %v2520 = vsel %vm1054, %v2514, %v2518
      %v2521 = vsel %vm1054, %v2516, %v2512
      %v2522 = vsel %vm1054, %v2518, %v2514
      %v2523 = vmul.f32 %v2521, %v1062
      %v2524 = vmul.f32 %v2519, %v1066
      %v2525 = vmul.f32 %v2522, %v1062
      %v2526 = vmul.f32 %v2520, %v1066
      %v2527 = vld [vmem:[%s8] sm:$0xf]
      %v2528 = vld [vmem:[%s8 + $0x4] sm:$0xf]
      %v2529 = vpack.c.bf16 %v2525, %v2523
      %v2530 = vpack.c.bf16 %v2526, %v2524
      %2531 = vrot.lane.b32.xlu0 %v2507, 16
      %v2532 = vpop.permute.xlu0 %2531
      %2533 = vrot.lane.b32.xlu0 %v2509, 16
      %v2534 = vpop.permute.xlu0 %2533
      %2535 = vrot.lane.b32.xlu0 %v2508, 16
      %v2536 = vpop.permute.xlu0 %2535
      %2537 = vrot.lane.b32.xlu0 %v2510, 16
      %v2538 = vpop.permute.xlu0 %2537
      %v2539 = vsel %vm1079, %v2532, %v2536
      %v2540 = vsel %vm1079, %v2534, %v2538
      %v2541 = vsel %vm1079, %v2536, %v2532
      %v2542 = vsel %vm1079, %v2538, %v2534
      %v2543 = vmul.f32 %v2541, %v1088
      %v2544 = vmul.f32 %v2539, %v1092
      %v2545 = vmul.f32 %v2542, %v1088
      %v2546 = vmul.f32 %v2540, %v1092
      %s2547 = scalar_lea.vmem %s8, 8
      %v2548 = vld [vmem:[%s2547] sm:$0xf]
      %v2549 = vld [vmem:[%s2547 + $0x4] sm:$0xf]
      %v2550 = vpack.c.bf16 %v2545, %v2543
      %v2551 = vpack.c.bf16 %v2546, %v2544
      %v2554 = vunpack.c.l.b16 %v2548
      %v2555 = vunpack.c.l.b16 %v2549
      %v2556 = vpack.c.b16 %v2555, %v2554
      %v2558 = vsel %vm1877, %v2556, 0
      %2560 = vmatprep.subr.bf16.mxu0 %v2551
      %2561 = vmatpush1.bf16.msra.mxu0 %v2550
      %2562 = vmatprep.subr.bf16.mxu0 0
      %2563 = vmatpush1.bf16.msra.mxu0 0
      %2564 = vmatprep.subr.bf16.mxu0 0
      %2565 = vmatpush1.bf16.msra.mxu0 0
      %2566 = vmatprep.subr.bf16.mxu0 0
      %2567 = vmatpush1.bf16.msra.mxu0 0
      %2568 = vmatprep.subr.bf16.mxu0 0
      %2569 = vmatpush1.bf16.msra.mxu0 0
      %2570 = vmatprep.subr.bf16.mxu0 0
      %2571 = vmatpush1.bf16.msra.mxu0 0
      %2572 = vmatprep.subr.bf16.mxu0 0
      %2573 = vmatpush1.bf16.msra.mxu0 0
      %2574 = vmatprep.subr.bf16.mxu0 0
      %2575 = vmatpush1.bf16.msra.mxu0 0
      %2576 = vmatprep.subr.bf16.mxu0 0
      %2577 = vmatpush1.bf16.msra.mxu0 0
      %2578 = vmatprep.subr.bf16.mxu0 0
      %2579 = vmatpush1.bf16.msra.mxu0 0
      %2580 = vmatprep.subr.bf16.mxu0 0
      %2581 = vmatpush1.bf16.msra.mxu0 0
      %2582 = vmatprep.subr.bf16.mxu0 0
      %2583 = vmatpush1.bf16.msra.mxu0 0
      %2584 = vmatprep.subr.bf16.mxu0 0
      %2585 = vmatpush1.bf16.msra.mxu0 0
      %2586 = vmatprep.subr.bf16.mxu0 0
      %2587 = vmatpush1.bf16.msra.mxu0 0
      %2588 = vmatprep.subr.bf16.mxu0 0
      %2589 = vmatpush1.bf16.msra.mxu0 0
      %2590 = vmatprep.subr.bf16.mxu0 0
      %2591 = vmatpush1.bf16.msra.mxu0 0
      %2592 = vmatprep.mubr.bf16.mxu0 0
      %2593 = vmatmul.mubr.bf16.gmra.mrb[0].mxu0 %v2558
      %v2594 = vpop.f32.mrb[0].mxu0
      %v2595 = vadd.f32 0.0, %v2594
      %v2596 = vpop.f32.mrb[0].mxu0
      %v2597 = vadd.f32 0.0, %v2596
      %v2598 = vpop.f32.mrb[0].mxu0
      %v2599 = vadd.f32 0.0, %v2598
      %v2600 = vpop.f32.mrb[0].mxu0
      %v2601 = vadd.f32 0.0, %v2600
      %2602 = vdwg.mxu0
      %v2605 = vunpack.c.l.b16 %v2527
      %v2606 = vunpack.c.l.b16 %v2528
      %v2607 = vpack.c.b16 %v2606, %v2605
      %v2609 = vsel %vm1877, %v2607, 0
      %2611 = vmatprep.subr.bf16.mxu0 %v2530
      %2612 = vmatpush1.bf16.msra.mxu0 %v2529
      %2613 = vmatprep.subr.bf16.mxu0 0
      %2614 = vmatpush1.bf16.msra.mxu0 0
      %2615 = vmatprep.subr.bf16.mxu0 0
      %2616 = vmatpush1.bf16.msra.mxu0 0
      %2617 = vmatprep.subr.bf16.mxu0 0
      %2618 = vmatpush1.bf16.msra.mxu0 0
      %2619 = vmatprep.subr.bf16.mxu0 0
      %2620 = vmatpush1.bf16.msra.mxu0 0
      %2621 = vmatprep.subr.bf16.mxu0 0
      %2622 = vmatpush1.bf16.msra.mxu0 0
      %2623 = vmatprep.subr.bf16.mxu0 0
      %2624 = vmatpush1.bf16.msra.mxu0 0
      %2625 = vmatprep.subr.bf16.mxu0 0
      %2626 = vmatpush1.bf16.msra.mxu0 0
      %2627 = vmatprep.subr.bf16.mxu0 0
      %2628 = vmatpush1.bf16.msra.mxu0 0
      %2629 = vmatprep.subr.bf16.mxu0 0
      %2630 = vmatpush1.bf16.msra.mxu0 0
      %2631 = vmatprep.subr.bf16.mxu0 0
      %2632 = vmatpush1.bf16.msra.mxu0 0
      %2633 = vmatprep.subr.bf16.mxu0 0
      %2634 = vmatpush1.bf16.msra.mxu0 0
      %2635 = vmatprep.subr.bf16.mxu0 0
      %2636 = vmatpush1.bf16.msra.mxu0 0
      %2637 = vmatprep.subr.bf16.mxu0 0
      %2638 = vmatpush1.bf16.msra.mxu0 0
      %2639 = vmatprep.subr.bf16.mxu0 0
      %2640 = vmatpush1.bf16.msra.mxu0 0
      %2641 = vmatprep.subr.bf16.mxu0 0
      %2642 = vmatpush1.bf16.msra.mxu0 0
      %2643 = vmatprep.mubr.bf16.mxu0 0
      %2644 = vmatmul.mubr.bf16.gmra.mrb[0].mxu0 %v2609
      %v2645 = vpop.f32.mrb[0].mxu0
      %v2646 = vadd.f32 %v2595, %v2645
      %v2647 = vpop.f32.mrb[0].mxu0
      %v2648 = vadd.f32 %v2597, %v2647
      %v2649 = vpop.f32.mrb[0].mxu0
      %v2650 = vadd.f32 %v2599, %v2649
      %v2651 = vpop.f32.mrb[0].mxu0
      %v2652 = vadd.f32 %v2601, %v2651
      %2653 = vdwg.mxu0
      %2654 = vrot.lane.b32.xlu0 %v2507, 15
      %v2655 = vpop.permute.xlu0 %2654
      %2656 = vrot.lane.b32.xlu0 %v2509, 15
      %v2657 = vpop.permute.xlu0 %2656
      %2658 = vrot.lane.b32.xlu0 %v2508, 15
      %v2659 = vpop.permute.xlu0 %2658
      %2660 = vrot.lane.b32.xlu0 %v2510, 15
      %v2661 = vpop.permute.xlu0 %2660
      %v2662 = vsel %vm1221, %v2655, %v2659
      %v2663 = vsel %vm1221, %v2657, %v2661
      %v2664 = vsel %vm1221, %v2659, %v2655
      %v2665 = vsel %vm1221, %v2661, %v2657
      %v2666 = vmul.f32 %v2664, %v1230
      %v2667 = vmul.f32 %v2662, %v1234
      %v2668 = vmul.f32 %v2665, %v1230
      %v2669 = vmul.f32 %v2663, %v1234
      %s2670 = scalar_lea.vmem %s8, 16
      %v2671 = vld [vmem:[%s2670] sm:$0xf]
      %v2672 = vld [vmem:[%s2670 + $0x4] sm:$0xf]
      %v2673 = vpack.c.bf16 %v2668, %v2666
      %v2674 = vpack.c.bf16 %v2669, %v2667
      %v2677 = vunpack.c.l.b16 %v2671
      %v2678 = vunpack.c.l.b16 %v2672
      %v2679 = vpack.c.b16 %v2678, %v2677
      %v2681 = vsel %vm1877, %v2679, 0
      %2683 = vmatprep.subr.bf16.mxu0 %v2674
      %2684 = vmatpush1.bf16.msra.mxu0 %v2673
      %2685 = vmatprep.subr.bf16.mxu0 0
      %2686 = vmatpush1.bf16.msra.mxu0 0
      %2687 = vmatprep.subr.bf16.mxu0 0
      %2688 = vmatpush1.bf16.msra.mxu0 0
      %2689 = vmatprep.subr.bf16.mxu0 0
      %2690 = vmatpush1.bf16.msra.mxu0 0
      %2691 = vmatprep.subr.bf16.mxu0 0
      %2692 = vmatpush1.bf16.msra.mxu0 0
      %2693 = vmatprep.subr.bf16.mxu0 0
      %2694 = vmatpush1.bf16.msra.mxu0 0
      %2695 = vmatprep.subr.bf16.mxu0 0
      %2696 = vmatpush1.bf16.msra.mxu0 0
      %2697 = vmatprep.subr.bf16.mxu0 0
      %2698 = vmatpush1.bf16.msra.mxu0 0
      %2699 = vmatprep.subr.bf16.mxu0 0
      %2700 = vmatpush1.bf16.msra.mxu0 0
      %2701 = vmatprep.subr.bf16.mxu0 0
      %2702 = vmatpush1.bf16.msra.mxu0 0
      %2703 = vmatprep.subr.bf16.mxu0 0
      %2704 = vmatpush1.bf16.msra.mxu0 0
      %2705 = vmatprep.subr.bf16.mxu0 0
      %2706 = vmatpush1.bf16.msra.mxu0 0
      %2707 = vmatprep.subr.bf16.mxu0 0
      %2708 = vmatpush1.bf16.msra.mxu0 0
      %2709 = vmatprep.subr.bf16.mxu0 0
      %2710 = vmatpush1.bf16.msra.mxu0 0
      %2711 = vmatprep.subr.bf16.mxu0 0
      %2712 = vmatpush1.bf16.msra.mxu0 0
      %2713 = vmatprep.subr.bf16.mxu0 0
      %2714 = vmatpush1.bf16.msra.mxu0 0
      %2715 = vmatprep.mubr.bf16.mxu0 0
      %2716 = vmatmul.mubr.bf16.gmra.mrb[0].mxu0 %v2681
      %v2717 = vpop.f32.mrb[0].mxu0
      %v2718 = vadd.f32 0.0, %v2717
      %v2719 = vpop.f32.mrb[0].mxu0
      %v2720 = vadd.f32 0.0, %v2719
      %v2721 = vpop.f32.mrb[0].mxu0
      %v2722 = vadd.f32 0.0, %v2721
      %v2723 = vpop.f32.mrb[0].mxu0
      %v2724 = vadd.f32 0.0, %v2723
      %2725 = vdwg.mxu0
      %v2726 = vadd.f32 %v2646, %v2718
      %v2727 = vadd.f32 %v2648, %v2720
      %v2728 = vadd.f32 %v2650, %v2722
      %v2729 = vadd.f32 %v2652, %v2724
      %2730 = vrot.lane.b32.xlu0 %v2507, 1
      %v2731 = vpop.permute.xlu0 %2730
      %2732 = vrot.lane.b32.xlu0 %v2509, 1
      %v2733 = vpop.permute.xlu0 %2732
      %2734 = vrot.lane.b32.xlu0 %v2508, 1
      %v2735 = vpop.permute.xlu0 %2734
      %2736 = vrot.lane.b32.xlu0 %v2510, 1
      %v2737 = vpop.permute.xlu0 %2736
      %v2738 = vsel %vm1309, %v2731, %v2735
      %v2739 = vsel %vm1309, %v2733, %v2737
      %v2740 = vsel %vm1309, %v2735, %v2731
      %v2741 = vsel %vm1309, %v2737, %v2733
      %v2742 = vmul.f32 %v2740, %v1318
      %v2743 = vmul.f32 %v2738, %v1322
      %v2744 = vmul.f32 %v2741, %v1318
      %v2745 = vmul.f32 %v2739, %v1322
      %s2746 = scalar_lea.vmem %s8, 24
      %v2747 = vld [vmem:[%s2746] sm:$0xf]
      %v2748 = vld [vmem:[%s2746 + $0x4] sm:$0xf]
      %v2749 = vpack.c.bf16 %v2744, %v2742
      %v2750 = vpack.c.bf16 %v2745, %v2743
      %v2753 = vunpack.c.l.b16 %v2747
      %v2754 = vunpack.c.l.b16 %v2748
      %v2755 = vpack.c.b16 %v2754, %v2753
      %v2757 = vsel %vm1877, %v2755, 0
      %2759 = vmatprep.subr.bf16.mxu0 %v2750
      %2760 = vmatpush1.bf16.msra.mxu0 %v2749
      %2761 = vmatprep.subr.bf16.mxu0 0
      %2762 = vmatpush1.bf16.msra.mxu0 0
      %2763 = vmatprep.subr.bf16.mxu0 0
      %2764 = vmatpush1.bf16.msra.mxu0 0
      %2765 = vmatprep.subr.bf16.mxu0 0
      %2766 = vmatpush1.bf16.msra.mxu0 0
      %2767 = vmatprep.subr.bf16.mxu0 0
      %2768 = vmatpush1.bf16.msra.mxu0 0
      %2769 = vmatprep.subr.bf16.mxu0 0
      %2770 = vmatpush1.bf16.msra.mxu0 0
      %2771 = vmatprep.subr.bf16.mxu0 0
      %2772 = vmatpush1.bf16.msra.mxu0 0
      %2773 = vmatprep.subr.bf16.mxu0 0
      %2774 = vmatpush1.bf16.msra.mxu0 0
      %2775 = vmatprep.subr.bf16.mxu0 0
      %2776 = vmatpush1.bf16.msra.mxu0 0
      %2777 = vmatprep.subr.bf16.mxu0 0
      %2778 = vmatpush1.bf16.msra.mxu0 0
      %2779 = vmatprep.subr.bf16.mxu0 0
      %2780 = vmatpush1.bf16.msra.mxu0 0
      %2781 = vmatprep.subr.bf16.mxu0 0
      %2782 = vmatpush1.bf16.msra.mxu0 0
      %2783 = vmatprep.subr.bf16.mxu0 0
      %2784 = vmatpush1.bf16.msra.mxu0 0
      %2785 = vmatprep.subr.bf16.mxu0 0
      %2786 = vmatpush1.bf16.msra.mxu0 0
      %2787 = vmatprep.subr.bf16.mxu0 0
      %2788 = vmatpush1.bf16.msra.mxu0 0
      %2789 = vmatprep.subr.bf16.mxu0 0
      %2790 = vmatpush1.bf16.msra.mxu0 0
      %2791 = vmatprep.mubr.bf16.mxu0 0
      %2792 = vmatmul.mubr.bf16.gmra.mrb[0].mxu0 %v2757
      %v2793 = vpop.f32.mrb[0].mxu0
      %v2794 = vadd.f32 0.0, %v2793
      %v2795 = vpop.f32.mrb[0].mxu0
      %v2796 = vadd.f32 0.0, %v2795
      %v2797 = vpop.f32.mrb[0].mxu0
      %v2798 = vadd.f32 0.0, %v2797
      %v2799 = vpop.f32.mrb[0].mxu0
      %v2800 = vadd.f32 0.0, %v2799
      %2801 = vdwg.mxu0
      %v2802 = vadd.f32 %v2726, %v2794
      %v2803 = vadd.f32 %v2727, %v2796
      %v2804 = vadd.f32 %v2728, %v2798
      %v2805 = vadd.f32 %v2729, %v2800
      %s2806 = scalar_lea.vmem %s8, 32
      %v2807 = vld [vmem:[%s2806] sm:$0xf]
      %v2808 = vld [vmem:[%s2806 + $0x4] sm:$0xf]
      %v2809 = vpack.c.bf16 %v2509, %v2507
      %v2810 = vpack.c.bf16 %v2510, %v2508
      %v2813 = vunpack.c.l.b16 %v2807
      %v2814 = vunpack.c.l.b16 %v2808
      %v2815 = vpack.c.b16 %v2814, %v2813
      %v2817 = vsel %vm1877, %v2815, 0
      %2819 = vmatprep.subr.bf16.mxu0 %v2810
      %2820 = vmatpush1.bf16.msra.mxu0 %v2809
      %2821 = vmatprep.subr.bf16.mxu0 0
      %2822 = vmatpush1.bf16.msra.mxu0 0
      %2823 = vmatprep.subr.bf16.mxu0 0
      %2824 = vmatpush1.bf16.msra.mxu0 0
      %2825 = vmatprep.subr.bf16.mxu0 0
      %2826 = vmatpush1.bf16.msra.mxu0 0
      %2827 = vmatprep.subr.bf16.mxu0 0
      %2828 = vmatpush1.bf16.msra.mxu0 0
      %2829 = vmatprep.subr.bf16.mxu0 0
      %2830 = vmatpush1.bf16.msra.mxu0 0
      %2831 = vmatprep.subr.bf16.mxu0 0
      %2832 = vmatpush1.bf16.msra.mxu0 0
      %2833 = vmatprep.subr.bf16.mxu0 0
      %2834 = vmatpush1.bf16.msra.mxu0 0
      %2835 = vmatprep.subr.bf16.mxu0 0
      %2836 = vmatpush1.bf16.msra.mxu0 0
      %2837 = vmatprep.subr.bf16.mxu0 0
      %2838 = vmatpush1.bf16.msra.mxu0 0
      %2839 = vmatprep.subr.bf16.mxu0 0
      %2840 = vmatpush1.bf16.msra.mxu0 0
      %2841 = vmatprep.subr.bf16.mxu0 0
      %2842 = vmatpush1.bf16.msra.mxu0 0
      %2843 = vmatprep.subr.bf16.mxu0 0
      %2844 = vmatpush1.bf16.msra.mxu0 0
      %2845 = vmatprep.subr.bf16.mxu0 0
      %2846 = vmatpush1.bf16.msra.mxu0 0
      %2847 = vmatprep.subr.bf16.mxu0 0
      %2848 = vmatpush1.bf16.msra.mxu0 0
      %2849 = vmatprep.subr.bf16.mxu0 0
      %2850 = vmatpush1.bf16.msra.mxu0 0
      %2851 = vmatprep.mubr.bf16.mxu0 0
      %2852 = vmatmul.mubr.bf16.gmra.mrb[0].mxu0 %v2817
      %v2853 = vpop.f32.mrb[0].mxu0
      %v2854 = vadd.f32 0.0, %v2853
      %v2855 = vpop.f32.mrb[0].mxu0
      %v2856 = vadd.f32 0.0, %v2855
      %v2857 = vpop.f32.mrb[0].mxu0
      %v2858 = vadd.f32 0.0, %v2857
      %v2859 = vpop.f32.mrb[0].mxu0
      %v2860 = vadd.f32 0.0, %v2859
      %2861 = vdwg.mxu0
      %v2862 = vadd.f32 %v2802, %v2854
      %v2863 = vadd.f32 %v2803, %v2856
      %v2864 = vadd.f32 %v2804, %v2858
      %v2865 = vadd.f32 %v2805, %v2860
      %2866 = vrot.lane.b32.xlu0 %v2507, 127
      %v2867 = vpop.permute.xlu0 %2866
      %2868 = vrot.lane.b32.xlu0 %v2509, 127
      %v2869 = vpop.permute.xlu0 %2868
      %2870 = vrot.lane.b32.xlu0 %v2508, 127
      %v2871 = vpop.permute.xlu0 %2870
      %2872 = vrot.lane.b32.xlu0 %v2510, 127
      %v2873 = vpop.permute.xlu0 %2872
      %v2874 = vsel %vm1463, %v2867, %v2871
      %v2875 = vsel %vm1463, %v2869, %v2873
      %v2876 = vsel %vm1463, %v2871, %v2867
      %v2877 = vsel %vm1463, %v2873, %v2869
      %v2878 = vmul.f32 %v2874, %v1472
      %v2879 = vmul.f32 %v2876, %v1476
      %v2880 = vmul.f32 %v2875, %v1472
      %v2881 = vmul.f32 %v2877, %v1476
      %s2882 = scalar_lea.vmem %s8, 40
      %v2883 = vld [vmem:[%s2882] sm:$0xf]
      %v2884 = vld [vmem:[%s2882 + $0x4] sm:$0xf]
      %v2885 = vpack.c.bf16 %v2880, %v2878
      %v2886 = vpack.c.bf16 %v2881, %v2879
      %v2889 = vunpack.c.l.b16 %v2883
      %v2890 = vunpack.c.l.b16 %v2884
      %v2891 = vpack.c.b16 %v2890, %v2889
      %v2893 = vsel %vm1877, %v2891, 0
      %2895 = vmatprep.subr.bf16.mxu0 %v2886
      %2896 = vmatpush1.bf16.msra.mxu0 %v2885
      %2897 = vmatprep.subr.bf16.mxu0 0
      %2898 = vmatpush1.bf16.msra.mxu0 0
      %2899 = vmatprep.subr.bf16.mxu0 0
      %2900 = vmatpush1.bf16.msra.mxu0 0
      %2901 = vmatprep.subr.bf16.mxu0 0
      %2902 = vmatpush1.bf16.msra.mxu0 0
      %2903 = vmatprep.subr.bf16.mxu0 0
      %2904 = vmatpush1.bf16.msra.mxu0 0
      %2905 = vmatprep.subr.bf16.mxu0 0
      %2906 = vmatpush1.bf16.msra.mxu0 0
      %2907 = vmatprep.subr.bf16.mxu0 0
      %2908 = vmatpush1.bf16.msra.mxu0 0
      %2909 = vmatprep.subr.bf16.mxu0 0
      %2910 = vmatpush1.bf16.msra.mxu0 0
      %2911 = vmatprep.subr.bf16.mxu0 0
      %2912 = vmatpush1.bf16.msra.mxu0 0
      %2913 = vmatprep.subr.bf16.mxu0 0
      %2914 = vmatpush1.bf16.msra.mxu0 0
      %2915 = vmatprep.subr.bf16.mxu0 0
      %2916 = vmatpush1.bf16.msra.mxu0 0
      %2917 = vmatprep.subr.bf16.mxu0 0
      %2918 = vmatpush1.bf16.msra.mxu0 0
      %2919 = vmatprep.subr.bf16.mxu0 0
      %2920 = vmatpush1.bf16.msra.mxu0 0
      %2921 = vmatprep.subr.bf16.mxu0 0
      %2922 = vmatpush1.bf16.msra.mxu0 0
      %2923 = vmatprep.subr.bf16.mxu0 0
      %2924 = vmatpush1.bf16.msra.mxu0 0
      %2925 = vmatprep.subr.bf16.mxu0 0
      %2926 = vmatpush1.bf16.msra.mxu0 0
      %2927 = vmatprep.mubr.bf16.mxu0 0
      %2928 = vmatmul.mubr.bf16.gmra.mrb[0].mxu0 %v2893
      %v2929 = vpop.f32.mrb[0].mxu0
      %v2930 = vadd.f32 0.0, %v2929
      %v2931 = vpop.f32.mrb[0].mxu0
      %v2932 = vadd.f32 0.0, %v2931
      %v2933 = vpop.f32.mrb[0].mxu0
      %v2934 = vadd.f32 0.0, %v2933
      %v2935 = vpop.f32.mrb[0].mxu0
      %v2936 = vadd.f32 0.0, %v2935
      %2937 = vdwg.mxu0
      %v2938 = vadd.f32 %v2862, %v2930
      %v2939 = vadd.f32 %v2863, %v2932
      %v2940 = vadd.f32 %v2864, %v2934
      %v2941 = vadd.f32 %v2865, %v2936
      %2942 = vrot.lane.b32.xlu0 %v2507, 113
      %v2943 = vpop.permute.xlu0 %2942
      %2944 = vrot.lane.b32.xlu0 %v2509, 113
      %v2945 = vpop.permute.xlu0 %2944
      %2946 = vrot.lane.b32.xlu0 %v2508, 113
      %v2947 = vpop.permute.xlu0 %2946
      %2948 = vrot.lane.b32.xlu0 %v2510, 113
      %v2949 = vpop.permute.xlu0 %2948
      %v2950 = vsel %vm1551, %v2943, %v2947
      %v2951 = vsel %vm1551, %v2945, %v2949
      %v2952 = vsel %vm1551, %v2947, %v2943
      %v2953 = vsel %vm1551, %v2949, %v2945
      %v2954 = vmul.f32 %v2950, %v1560
      %v2955 = vmul.f32 %v2952, %v1564
      %v2956 = vmul.f32 %v2951, %v1560
      %v2957 = vmul.f32 %v2953, %v1564
      %s2958 = scalar_lea.vmem %s8, 48
      %v2959 = vld [vmem:[%s2958] sm:$0xf]
      %v2960 = vld [vmem:[%s2958 + $0x4] sm:$0xf]
      %v2961 = vpack.c.bf16 %v2956, %v2954
      %v2962 = vpack.c.bf16 %v2957, %v2955
      %v2965 = vunpack.c.l.b16 %v2959
      %v2966 = vunpack.c.l.b16 %v2960
      %v2967 = vpack.c.b16 %v2966, %v2965
      %v2969 = vsel %vm1877, %v2967, 0
      %2971 = vmatprep.subr.bf16.mxu0 %v2962
      %2972 = vmatpush1.bf16.msra.mxu0 %v2961
      %2973 = vmatprep.subr.bf16.mxu0 0
      %2974 = vmatpush1.bf16.msra.mxu0 0
      %2975 = vmatprep.subr.bf16.mxu0 0
      %2976 = vmatpush1.bf16.msra.mxu0 0
      %2977 = vmatprep.subr.bf16.mxu0 0
      %2978 = vmatpush1.bf16.msra.mxu0 0
      %2979 = vmatprep.subr.bf16.mxu0 0
      %2980 = vmatpush1.bf16.msra.mxu0 0
      %2981 = vmatprep.subr.bf16.mxu0 0
      %2982 = vmatpush1.bf16.msra.mxu0 0
      %2983 = vmatprep.subr.bf16.mxu0 0
      %2984 = vmatpush1.bf16.msra.mxu0 0
      %2985 = vmatprep.subr.bf16.mxu0 0
      %2986 = vmatpush1.bf16.msra.mxu0 0
      %2987 = vmatprep.subr.bf16.mxu0 0
      %2988 = vmatpush1.bf16.msra.mxu0 0
      %2989 = vmatprep.subr.bf16.mxu0 0
      %2990 = vmatpush1.bf16.msra.mxu0 0
      %2991 = vmatprep.subr.bf16.mxu0 0
      %2992 = vmatpush1.bf16.msra.mxu0 0
      %2993 = vmatprep.subr.bf16.mxu0 0
      %2994 = vmatpush1.bf16.msra.mxu0 0
      %2995 = vmatprep.subr.bf16.mxu0 0
      %2996 = vmatpush1.bf16.msra.mxu0 0
      %2997 = vmatprep.subr.bf16.mxu0 0
      %2998 = vmatpush1.bf16.msra.mxu0 0
      %2999 = vmatprep.subr.bf16.mxu0 0
      %3000 = vmatpush1.bf16.msra.mxu0 0
      %3001 = vmatprep.subr.bf16.mxu0 0
      %3002 = vmatpush1.bf16.msra.mxu0 0
      %3003 = vmatprep.mubr.bf16.mxu0 0
      %3004 = vmatmul.mubr.bf16.gmra.mrb[0].mxu0 %v2969
      %v3005 = vpop.f32.mrb[0].mxu0
      %v3006 = vadd.f32 0.0, %v3005
      %v3007 = vpop.f32.mrb[0].mxu0
      %v3008 = vadd.f32 0.0, %v3007
      %v3009 = vpop.f32.mrb[0].mxu0
      %v3010 = vadd.f32 0.0, %v3009
      %v3011 = vpop.f32.mrb[0].mxu0
      %v3012 = vadd.f32 0.0, %v3011
      %3013 = vdwg.mxu0
      %v3014 = vadd.f32 %v2938, %v3006
      %v3015 = vadd.f32 %v2939, %v3008
      %v3016 = vadd.f32 %v2940, %v3010
      %v3017 = vadd.f32 %v2941, %v3012
      %3018 = vrot.lane.b32.xlu0 %v2507, 112
      %v3019 = vpop.permute.xlu0 %3018
      %3020 = vrot.lane.b32.xlu0 %v2509, 112
      %v3021 = vpop.permute.xlu0 %3020
      %3022 = vrot.lane.b32.xlu0 %v2508, 112
      %v3023 = vpop.permute.xlu0 %3022
      %3024 = vrot.lane.b32.xlu0 %v2510, 112
      %v3025 = vpop.permute.xlu0 %3024
      %v3026 = vsel %vm1639, %v3019, %v3023
      %v3027 = vsel %vm1639, %v3021, %v3025
      %v3028 = vsel %vm1639, %v3023, %v3019
      %v3029 = vsel %vm1639, %v3025, %v3021
      %v3030 = vmul.f32 %v3026, %v1648
      %v3031 = vmul.f32 %v3028, %v1652
      %v3032 = vmul.f32 %v3027, %v1648
      %v3033 = vmul.f32 %v3029, %v1652
      %s3034 = scalar_lea.vmem %s8, 56
      %v3035 = vld [vmem:[%s3034] sm:$0xf]
      %v3036 = vld [vmem:[%s3034 + $0x4] sm:$0xf]
      %v3037 = vpack.c.bf16 %v3032, %v3030
      %v3038 = vpack.c.bf16 %v3033, %v3031
      %v3041 = vunpack.c.l.b16 %v3035
      %v3042 = vunpack.c.l.b16 %v3036
      %v3043 = vpack.c.b16 %v3042, %v3041
      %v3045 = vsel %vm1877, %v3043, 0
      %3047 = vmatprep.subr.bf16.mxu0 %v3038
      %3048 = vmatpush1.bf16.msra.mxu0 %v3037
      %3049 = vmatprep.subr.bf16.mxu0 0
      %3050 = vmatpush1.bf16.msra.mxu0 0
      %3051 = vmatprep.subr.bf16.mxu0 0
      %3052 = vmatpush1.bf16.msra.mxu0 0
      %3053 = vmatprep.subr.bf16.mxu0 0
      %3054 = vmatpush1.bf16.msra.mxu0 0
      %3055 = vmatprep.subr.bf16.mxu0 0
      %3056 = vmatpush1.bf16.msra.mxu0 0
      %3057 = vmatprep.subr.bf16.mxu0 0
      %3058 = vmatpush1.bf16.msra.mxu0 0
      %3059 = vmatprep.subr.bf16.mxu0 0
      %3060 = vmatpush1.bf16.msra.mxu0 0
      %3061 = vmatprep.subr.bf16.mxu0 0
      %3062 = vmatpush1.bf16.msra.mxu0 0
      %3063 = vmatprep.subr.bf16.mxu0 0
      %3064 = vmatpush1.bf16.msra.mxu0 0
      %3065 = vmatprep.subr.bf16.mxu0 0
      %3066 = vmatpush1.bf16.msra.mxu0 0
      %3067 = vmatprep.subr.bf16.mxu0 0
      %3068 = vmatpush1.bf16.msra.mxu0 0
      %3069 = vmatprep.subr.bf16.mxu0 0
      %3070 = vmatpush1.bf16.msra.mxu0 0
      %3071 = vmatprep.subr.bf16.mxu0 0
      %3072 = vmatpush1.bf16.msra.mxu0 0
      %3073 = vmatprep.subr.bf16.mxu0 0
      %3074 = vmatpush1.bf16.msra.mxu0 0
      %3075 = vmatprep.subr.bf16.mxu0 0
      %3076 = vmatpush1.bf16.msra.mxu0 0
      %3077 = vmatprep.subr.bf16.mxu0 0
      %3078 = vmatpush1.bf16.msra.mxu0 0
      %3079 = vmatprep.mubr.bf16.mxu0 0
      %3080 = vmatmul.mubr.bf16.gmra.mrb[0].mxu0 %v3045
      %v3081 = vpop.f32.mrb[0].mxu0
      %v3082 = vadd.f32 0.0, %v3081
      %v3083 = vpop.f32.mrb[0].mxu0
      %v3084 = vadd.f32 0.0, %v3083
      %v3085 = vpop.f32.mrb[0].mxu0
      %v3086 = vadd.f32 0.0, %v3085
      %v3087 = vpop.f32.mrb[0].mxu0
      %v3088 = vadd.f32 0.0, %v3087
      %3089 = vdwg.mxu0
      %v3090 = vadd.f32 %v3014, %v3082
      %v3091 = vadd.f32 %v3015, %v3084
      %v3092 = vadd.f32 %v3016, %v3086
      %v3093 = vadd.f32 %v3017, %v3088
      %3094 = vrot.lane.b32.xlu0 %v2507, 111
      %v3095 = vpop.permute.xlu0 %3094
      %3096 = vrot.lane.b32.xlu0 %v2509, 111
      %v3097 = vpop.permute.xlu0 %3096
      %3098 = vrot.lane.b32.xlu0 %v2508, 111
      %v3099 = vpop.permute.xlu0 %3098
      %3100 = vrot.lane.b32.xlu0 %v2510, 111
      %v3101 = vpop.permute.xlu0 %3100
      %v3102 = vsel %vm1727, %v3095, %v3099
      %v3103 = vsel %vm1727, %v3097, %v3101
      %v3104 = vsel %vm1727, %v3099, %v3095
      %v3105 = vsel %vm1727, %v3101, %v3097
      %v3106 = vmul.f32 %v3102, %v1736
      %v3107 = vmul.f32 %v3104, %v1740
      %v3108 = vmul.f32 %v3103, %v1736
      %v3109 = vmul.f32 %v3105, %v1740
      %s3110 = scalar_lea.vmem %s8, 64
      %v3111 = vld [vmem:[%s3110] sm:$0xf]
      %v3112 = vld [vmem:[%s3110 + $0x4] sm:$0xf]
      %v3113 = vpack.c.bf16 %v3108, %v3106
      %v3114 = vpack.c.bf16 %v3109, %v3107
      %v3117 = vunpack.c.l.b16 %v3111
      %v3118 = vunpack.c.l.b16 %v3112
      %v3119 = vpack.c.b16 %v3118, %v3117
      %v3121 = vsel %vm1877, %v3119, 0
      %3123 = vmatprep.subr.bf16.mxu0 %v3114
      %3124 = vmatpush1.bf16.msra.mxu0 %v3113
      %3125 = vmatprep.subr.bf16.mxu0 0
      %3126 = vmatpush1.bf16.msra.mxu0 0
      %3127 = vmatprep.subr.bf16.mxu0 0
      %3128 = vmatpush1.bf16.msra.mxu0 0
      %3129 = vmatprep.subr.bf16.mxu0 0
      %3130 = vmatpush1.bf16.msra.mxu0 0
      %3131 = vmatprep.subr.bf16.mxu0 0
      %3132 = vmatpush1.bf16.msra.mxu0 0
      %3133 = vmatprep.subr.bf16.mxu0 0
      %3134 = vmatpush1.bf16.msra.mxu0 0
      %3135 = vmatprep.subr.bf16.mxu0 0
      %3136 = vmatpush1.bf16.msra.mxu0 0
      %3137 = vmatprep.subr.bf16.mxu0 0
      %3138 = vmatpush1.bf16.msra.mxu0 0
      %3139 = vmatprep.subr.bf16.mxu0 0
      %3140 = vmatpush1.bf16.msra.mxu0 0
      %3141 = vmatprep.subr.bf16.mxu0 0
      %3142 = vmatpush1.bf16.msra.mxu0 0
      %3143 = vmatprep.subr.bf16.mxu0 0
      %3144 = vmatpush1.bf16.msra.mxu0 0
      %3145 = vmatprep.subr.bf16.mxu0 0
      %3146 = vmatpush1.bf16.msra.mxu0 0
      %3147 = vmatprep.subr.bf16.mxu0 0
      %3148 = vmatpush1.bf16.msra.mxu0 0
      %3149 = vmatprep.subr.bf16.mxu0 0
      %3150 = vmatpush1.bf16.msra.mxu0 0
      %3151 = vmatprep.subr.bf16.mxu0 0
      %3152 = vmatpush1.bf16.msra.mxu0 0
      %3153 = vmatprep.subr.bf16.mxu0 0
      %3154 = vmatpush1.bf16.msra.mxu0 0
      %3155 = vmatprep.mubr.bf16.mxu0 0
      %3156 = vmatmul.mubr.bf16.gmra.mrb[0].mxu0 %v3121
      %v3157 = vpop.f32.mrb[0].mxu0
      %v3158 = vadd.f32 0.0, %v3157
      %v3159 = vpop.f32.mrb[0].mxu0
      %v3160 = vadd.f32 0.0, %v3159
      %v3161 = vpop.f32.mrb[0].mxu0
      %v3162 = vadd.f32 0.0, %v3161
      %v3163 = vpop.f32.mrb[0].mxu0
      %v3164 = vadd.f32 0.0, %v3163
      %3165 = vdwg.mxu0
      %v3166 = vadd.f32 %v3090, %v3158
      %v3167 = vadd.f32 %v3091, %v3160
      %v3168 = vadd.f32 %v3092, %v3162
      %v3169 = vadd.f32 %v3093, %v3164
      %v3170 = vld [vmem:[%s9] sm:$0xff]
      %v3171 = vld [vmem:[%s9 + $0x8] sm:$0xff]
      %3173 = vset.pattern.permute.xlu0 0
      %3174 = vperm.xlu0 %3173, %v3170
      %v3175 = vpop.permute.xlu0 %3174
      %3178 = vset.pattern.permute.xlu0 0
      %3179 = vperm.xlu0 %3178, %v3171
      %v3180 = vpop.permute.xlu0 %3179
      %v3182 = vadd.f32 %v3166, %v3175
      %v3183 = vadd.f32 %v3167, %v3175
      %v3184 = vadd.f32 %v3168, %v3180
      %v3185 = vadd.f32 %v3169, %v3180
      %v3186 = vmax.f32 %v3182, 0.0
      %v3187 = vmax.f32 %v3183, 0.0
      %v3188 = vmax.f32 %v3184, 0.0
      %v3189 = vmax.f32 %v3185, 0.0
      %v3190 = vld [vmem:[%s10] sm:$0x1]
      %v3191 = vpack.c.bf16 %v3188, %v3186
      %v3192 = vpack.c.bf16 %v3189, %v3187
      %s3193 = sld [smem:[#allocation4]]
      %v3194 = vstv %s3193
      %v3196 = vsel %vm1877, %v3190, 0
      %3198 = vmatprep.subr.bf16.mxu0 %v3192
      %3199 = vmatpush1.bf16.msra.mxu0 %v3191
      %3200 = vmatprep.subr.bf16.mxu0 0
      %3201 = vmatpush1.bf16.msra.mxu0 0
      %3202 = vmatprep.subr.bf16.mxu0 0
      %3203 = vmatpush1.bf16.msra.mxu0 0
      %3204 = vmatprep.subr.bf16.mxu0 0
      %3205 = vmatpush1.bf16.msra.mxu0 0
      %3206 = vmatprep.subr.bf16.mxu0 0
      %3207 = vmatpush1.bf16.msra.mxu0 0
      %3208 = vmatprep.subr.bf16.mxu0 0
      %3209 = vmatpush1.bf16.msra.mxu0 0
      %3210 = vmatprep.subr.bf16.mxu0 0
      %3211 = vmatpush1.bf16.msra.mxu0 0
      %3212 = vmatprep.subr.bf16.mxu0 0
      %3213 = vmatpush1.bf16.msra.mxu0 0
      %3214 = vmatprep.subr.bf16.mxu0 0
      %3215 = vmatpush1.bf16.msra.mxu0 0
      %3216 = vmatprep.subr.bf16.mxu0 0
      %3217 = vmatpush1.bf16.msra.mxu0 0
      %3218 = vmatprep.subr.bf16.mxu0 0
      %3219 = vmatpush1.bf16.msra.mxu0 0
      %3220 = vmatprep.subr.bf16.mxu0 0
      %3221 = vmatpush1.bf16.msra.mxu0 0
      %3222 = vmatprep.subr.bf16.mxu0 0
      %3223 = vmatpush1.bf16.msra.mxu0 0
      %3224 = vmatprep.subr.bf16.mxu0 0
      %3225 = vmatpush1.bf16.msra.mxu0 0
      %3226 = vmatprep.subr.bf16.mxu0 0
      %3227 = vmatpush1.bf16.msra.mxu0 0
      %3228 = vmatprep.subr.bf16.mxu0 0
      %3229 = vmatpush1.bf16.msra.mxu0 0
      %3230 = vmatprep.mubr.bf16.mxu0 0
      %3231 = vmatmul.mubr.bf16.gmra.mrb[0].mxu0 %v3196
      %v3232 = vpop.f32.mrb[0].mxu0
      %v3233 = vadd.f32 %v3194, %v3232
      %v3234 = vpop.f32.mrb[0].mxu0
      %v3235 = vadd.f32 %v3194, %v3234
      %v3236 = vpop.f32.mrb[0].mxu0
      %v3237 = vpop.f32.mrb[0].mxu0
      %3238 = vdwg.mxu0
      %v3239 = vxor.u32 %v3233, 2147483648
      %v3240 = vxor.u32 %v3235, 2147483648
      %v3241 = vmul.f32 %v3239, 1.442695
      %v3242 = vpow.pop %v3241
      %v3243 = vmul.f32 %v3240, 1.442695
      %v3244 = vpow.pop %v3243
      %v3245 = vadd.f32 %v3242, 1.0
      %v3246 = vadd.f32 %v3244, 1.0
      %v3247 = vrcp.pop %v3245
      %v3248 = vmul.f32 1.0, %v3247
      %v3249 = vrcp.pop %v3246
      %v3250 = vmul.f32 1.0, %v3249
      %v3251 = vlaneseq
      %v3252 = vshrl.u32 %v3251, 7
      %v3253 = vsub.s32 0, %v3252
      %v3254 = vrot.slane %v3248, %v3253
      %v3255 = vlaneseq
      %v3256 = vshrl.u32 %v3255, 7
      %v3257 = vsub.s32 0, %v3256
      %v3258 = vrot.slane %v3250, %v3257
      %v3259 = vmul.f32 %v976, %v3254
      %v3260 = vmul.f32 %v977, %v3258
      %p3261 = scmp.eq.s32.totalorder %s40, 0
      // Predicated region
      $region89: #{stage_net_forward.1} parent=87 // pred_check
        %p3262 = pneg %p3261
      $region90: #{stage_net_forward.1} parent=87 // pred_check_branch
        %3264 = sbr.rel (%p3262) target = $region92
      $region91: #{stage_net_forward.1} parent=87 // pred_region
        %3265 = vst [vmem:[#allocation2] sm:$0xff] %v3259
        %3266 = vst [vmem:[#allocation2 + $0x8] sm:$0xff] %v3260
        %v3269 = vcombine.low %v3248, %v3250
        %v3271 = vunpack.c.l.s4 1966171168
        %v3272 = vunpack.c.0.s8 %v3271
        %v3273 = vlaneseq
        %v3274 = vshrl.u32 %v3273, 7
        %v3275 = vsub.s32 %v3272, %v3274
        %v3276 = vrot.slane %v3269, %v3275
        %v3278 = vunpack.c.l.s4 1966171168
        %v3279 = vunpack.c.0.s8 %v3278
        %v3280 = vlaneseq
        %v3281 = vshrl.u32 %v3280, 7
        %v3282 = vsub.s32 %v3279, %v3281
        %v3283 = vrot.slane %v3276, %v3282
        %v3285 = vlaneseq
        %vm3286 = vcmp.ge.s32.totalorder %v3285, 0
        %vm3287 = vcmp.lt.s32.totalorder %v3285, 256
        %vm3288 = vmand %vm3286, %vm3287
        %3289 = vst.msk [vmem:[#allocation3] sm:$0x3] %vm3288, %v3283
      $region92: #{stage_net_forward.1} parent=87 // pred_fallthru
        _
      %p3290 = scmp.gt.s32.totalorder %s40, 0
      // Predicated region
      $region93: #{stage_net_forward.1} parent=87 // pred_check
        %p3291 = pneg %p3290
      $region94: #{stage_net_forward.1} parent=87 // pred_check_branch
        %3293 = sbr.rel (%p3291) target = $region96
      $region95: #{stage_net_forward.1} parent=87 // pred_region
        %v3294 = vld [vmem:[#allocation2] sm:$0xff]
        %v3295 = vld [vmem:[#allocation2 + $0x8] sm:$0xff]
        %v3296 = vadd.f32 %v3294, %v3259
        %v3297 = vadd.f32 %v3295, %v3260
        %3298 = vst [vmem:[#allocation2] sm:$0xff] %v3296
        %3299 = vst [vmem:[#allocation2 + $0x8] sm:$0xff] %v3297
        %v3300 = vld [vmem:[#allocation3] sm:$0x3]
        %v3303 = vcombine.low %v3248, %v3250
        %v3305 = vunpack.c.l.s4 1966171168
        %v3306 = vunpack.c.0.s8 %v3305
        %v3307 = vlaneseq
        %v3308 = vshrl.u32 %v3307, 7
        %v3309 = vsub.s32 %v3306, %v3308
        %v3310 = vrot.slane %v3303, %v3309
        %v3312 = vunpack.c.l.s4 1966171168
        %v3313 = vunpack.c.0.s8 %v3312
        %v3314 = vlaneseq
        %v3315 = vshrl.u32 %v3314, 7
        %v3316 = vsub.s32 %v3313, %v3315
        %v3317 = vrot.slane %v3310, %v3316
        %v3319 = vadd.f32 %v3300, %v3317
        %v3320 = vlaneseq
        %vm3321 = vcmp.ge.s32.totalorder %v3320, 0
        %vm3322 = vcmp.lt.s32.totalorder %v3320, 256
        %vm3323 = vmand %vm3321, %vm3322
        %3324 = vst.msk [vmem:[#allocation3] sm:$0x3] %vm3323, %v3319
      $region96: #{stage_net_forward.1} parent=87 // pred_fallthru
        _
      %p3325 = scmp.eq.s32.totalorder %s40, 1
      // Predicated region
      $region97: #{stage_net_forward.1} parent=87 // pred_check
        %p3326 = pneg %p3325
      $region98: #{stage_net_forward.1} parent=87 // pred_check_branch
        %3328 = sbr.rel (%p3326) target = $region100
      $region99: #{stage_net_forward.1} parent=87 // pred_region
        %v3329 = vld [vmem:[#allocation2] sm:$0xff]
        %v3330 = vld [vmem:[#allocation2 + $0x8] sm:$0xff]
        %v3331 = vld [vmem:[#allocation3] sm:$0x3]
        %v3332 = vadd.f32 %v3331, 1e-06
        %v3334 = vlaneseq
        %v3335 = vshrl.u32 %v3334, 7
        %v3336 = vsub.s32 0, %v3335
        %v3337 = vrot.slane %v3332, %v3336
        %v3338 = vlaneseq
        %v3339 = vshrl.u32 %v3338, 7
        %v3340 = vsub.s32 1, %v3339
        %v3341 = vrot.slane %v3332, %v3340
        %v3344 = vrcp.pop %v3337
        %v3345 = vmul.f32 %v3329, %v3344
        %v3346 = vrcp.pop %v3341
        %v3347 = vmul.f32 %v3330, %v3346
        %s3348 = sld [smem:[#allocation5]]
        %v3349 = vstv %s3348
        %v3350 = vadd.f32 %v3345, %v3349
        %v3351 = vadd.f32 %v3347, %v3349
        %v3352 = vrot.slane %v3350, 4
        %v3353 = vmax.f32 %v3350, %v3352
        %v3354 = vrot.slane %v3353, 2
        %v3355 = vmax.f32 %v3353, %v3354
        %v3356 = vrot.slane %v3355, 1
        %v3357 = vmax.f32 %v3355, %v3356
        %v3358 = vrot.slane %v3351, 4
        %v3359 = vmax.f32 %v3351, %v3358
        %v3360 = vrot.slane %v3359, 2
        %v3361 = vmax.f32 %v3359, %v3360
        %v3362 = vrot.slane %v3361, 1
        %v3363 = vmax.f32 %v3361, %v3362
        %v3364 = vsub.f32 %v3350, %v3357
        %v3365 = vsub.f32 %v3351, %v3363
        %v3366 = vmul.f32 %v3364, 1.442695
        %v3367 = vpow.pop %v3366
        %v3368 = vmul.f32 %v3365, 1.442695
        %v3369 = vpow.pop %v3368
        %v3370 = vrot.slane %v3367, 4
        %v3371 = vadd.f32 %v3367, %v3370
        %v3372 = vrot.slane %v3371, 2
        %v3373 = vadd.f32 %v3371, %v3372
        %v3374 = vrot.slane %v3373, 1
        %v3375 = vadd.f32 %v3373, %v3374
        %v3376 = vrot.slane %v3369, 4
        %v3377 = vadd.f32 %v3369, %v3376
        %v3378 = vrot.slane %v3377, 2
        %v3379 = vadd.f32 %v3377, %v3378
        %v3380 = vrot.slane %v3379, 1
        %v3381 = vadd.f32 %v3379, %v3380
        %v3382 = vrcp.pop %v3375
        %v3383 = vmul.f32 %v3367, %v3382
        %v3384 = vrcp.pop %v3381
        %v3385 = vmul.f32 %v3369, %v3384
        %3386 = vst [vmem:[%s759] sm:$0xff] %v3383
        %3387 = vst [vmem:[%s759 + $0x8] sm:$0xff] %v3385
        %v3388 = vrot.slane %v3383, 4
        %v3389 = vmax.f32 %v3383, %v3388
        %v3390 = vrot.slane %v3389, 2
        %v3391 = vmax.f32 %v3389, %v3390
        %v3392 = vrot.slane %v3391, 1
        %v3393 = vmax.f32 %v3391, %v3392
        %v3394 = vrot.slane %v3385, 4
        %v3395 = vmax.f32 %v3385, %v3394
        %v3396 = vrot.slane %v3395, 2
        %v3397 = vmax.f32 %v3395, %v3396
        %v3398 = vrot.slane %v3397, 1
        %v3399 = vmax.f32 %v3397, %v3398
        %v3402 = vcombine.low %v3393, %v3399
        %v3404 = vunpack.c.l.s4 1966171168
        %v3405 = vunpack.c.0.s8 %v3404
        %v3406 = vlaneseq
        %v3407 = vshrl.u32 %v3406, 7
        %v3408 = vsub.s32 %v3405, %v3407
        %v3409 = vrot.slane %v3402, %v3408
        %v3411 = vunpack.c.l.s4 1966171168
        %v3412 = vunpack.c.0.s8 %v3411
        %v3413 = vlaneseq
        %v3414 = vshrl.u32 %v3413, 7
        %v3415 = vsub.s32 %v3412, %v3414
        %v3416 = vrot.slane %v3409, %v3415
        %v3418 = vlaneseq
        %vm3419 = vcmp.ge.s32.totalorder %v3418, 0
        %vm3420 = vcmp.lt.s32.totalorder %v3418, 256
        %vm3421 = vmand %vm3419, %vm3420
        %3422 = vst.msk [vmem:[%s767] sm:$0x3] %vm3421, %v3416
        %v3423 = vld [vmem:[%s754] sm:$0xff]
        %3425 = vset.pattern.permute.xlu0 0
        %3426 = vperm.xlu0 %3425, %v3423
        %v3427 = vpop.permute.xlu0 %3426
        %v3429 = vmul.f32 %v3383, %v3427
        %v3430 = vmul.f32 %v3385, %v3427
        %v3431 = vrot.slane %v3429, 4
        %v3432 = vadd.f32 %v3429, %v3431
        %v3433 = vrot.slane %v3432, 2
        %v3434 = vadd.f32 %v3432, %v3433
        %v3435 = vrot.slane %v3434, 1
        %v3436 = vadd.f32 %v3434, %v3435
        %v3437 = vrot.slane %v3430, 4
        %v3438 = vadd.f32 %v3430, %v3437
        %v3439 = vrot.slane %v3438, 2
        %v3440 = vadd.f32 %v3438, %v3439
        %v3441 = vrot.slane %v3440, 1
        %v3442 = vadd.f32 %v3440, %v3441
        %v3445 = vcombine.low %v3436, %v3442
        %v3447 = vunpack.c.l.s4 1966171168
        %v3448 = vunpack.c.0.s8 %v3447
        %v3449 = vlaneseq
        %v3450 = vshrl.u32 %v3449, 7
        %v3451 = vsub.s32 %v3448, %v3450
        %v3452 = vrot.slane %v3445, %v3451
        %v3454 = vunpack.c.l.s4 1966171168
        %v3455 = vunpack.c.0.s8 %v3454
        %v3456 = vlaneseq
        %v3457 = vshrl.u32 %v3456, 7
        %v3458 = vsub.s32 %v3455, %v3457
        %v3459 = vrot.slane %v3452, %v3458
        %3461 = vst.msk [vmem:[%s763] sm:$0x3] %vm3421, %v3459
        %v3462 = vld [vmem:[%s14] sm:$0xff]
        %3464 = vset.pattern.permute.xlu0 0
        %3465 = vperm.xlu0 %3464, %v3462
        %v3466 = vpop.permute.xlu0 %3465
        %v3468 = vmul.f32 %v3383, %v3466
        %v3469 = vmul.f32 %v3385, %v3466
        %v3470 = vrot.slane %v3468, 4
        %v3471 = vadd.f32 %v3468, %v3470
        %v3472 = vrot.slane %v3471, 2
        %v3473 = vadd.f32 %v3471, %v3472
        %v3474 = vrot.slane %v3473, 1
        %v3475 = vadd.f32 %v3473, %v3474
        %v3476 = vrot.slane %v3469, 4
        %v3477 = vadd.f32 %v3469, %v3476
        %v3478 = vrot.slane %v3477, 2
        %v3479 = vadd.f32 %v3477, %v3478
        %v3480 = vrot.slane %v3479, 1
        %v3481 = vadd.f32 %v3479, %v3480
        %s3482 = sld [smem:[#allocation6]]
        %v3483 = vstv %s3482
        %v3484 = vadd.f32 %v3475, %v3483
        %v3485 = vadd.f32 %v3481, %v3483
        %v3486 = vxor.u32 %v3484, 2147483648
        %v3487 = vxor.u32 %v3485, 2147483648
        %v3488 = vmul.f32 %v3486, 1.442695
        %v3489 = vpow.pop %v3488
        %v3490 = vmul.f32 %v3487, 1.442695
        %v3491 = vpow.pop %v3490
        %v3492 = vadd.f32 %v3489, 1.0
        %v3493 = vadd.f32 %v3491, 1.0
        %v3494 = vrcp.pop %v3492
        %v3495 = vmul.f32 1.0, %v3494
        %v3496 = vrcp.pop %v3493
        %v3497 = vmul.f32 1.0, %v3496
        %v3500 = vcombine.low %v3495, %v3497
        %v3502 = vunpack.c.l.s4 1966171168
        %v3503 = vunpack.c.0.s8 %v3502
        %v3504 = vlaneseq
        %v3505 = vshrl.u32 %v3504, 7
        %v3506 = vsub.s32 %v3503, %v3505
        %v3507 = vrot.slane %v3500, %v3506
        %v3509 = vunpack.c.l.s4 1966171168
        %v3510 = vunpack.c.0.s8 %v3509
        %v3511 = vlaneseq
        %v3512 = vshrl.u32 %v3511, 7
        %v3513 = vsub.s32 %v3510, %v3512
        %v3514 = vrot.slane %v3507, %v3513
        %3516 = vst.msk [vmem:[%s771] sm:$0x3] %vm3421, %v3514
      $region100: #{stage_net_forward.1} parent=87 // pred_fallthru
        _
      %p3517 = scmp.lt.s32.totalorder %s39, 1
      %s3518 = scalar_select %p3517, %s39, 1
      %s3519 = smul.addr %s3518, 2
      %s3520 = smul.addr %s3519, 8
      %s3521 = scalar_lea.vmem %s17, %s3520
      %p3522 = scmp.lt.s32.totalorder %s39, 1
      %s3523 = scalar_select %p3522, %s39, 1
      %s3524 = smul.addr %s3523, 2
      %s3525 = scalar_lea.vmem %s18, %s3524
      %p3526 = scmp.lt.s32.totalorder %s39, 1
      %s3527 = scalar_select %p3526, %s39, 1
      %s3528 = smul.addr %s3527, 2
      %s3529 = scalar_lea.vmem %s19, %s3528
      %p3530 = scmp.lt.s32.totalorder %s39, 1
      %s3531 = scalar_select %p3530, %s39, 1
      %s3532 = smul.addr %s3531, 2
      %s3533 = scalar_lea.vmem %s20, %s3532
      // Predicated region
      $region101: #{stage_net_forward.1} parent=87 // pred_check
        %p3534 = pneg %p448
      $region102: #{stage_net_forward.1} parent=87 // pred_check_branch
        %3536 = sbr.rel (%p3534) target = $region104
      $region103: #{stage_net_forward.1} parent=87 // pred_region
        _
      $region104: #{stage_net_forward.1} parent=87 // pred_fallthru
        _
      // Predicated region
      $region105: #{stage_net_forward.1} parent=87 // pred_check
        %p3537 = pneg %p474
      $region106: #{stage_net_forward.1} parent=87 // pred_check_branch
        %3539 = sbr.rel (%p3537) target = $region108
      $region107: #{stage_net_forward.1} parent=87 // pred_region
        _
      $region108: #{stage_net_forward.1} parent=87 // pred_fallthru
        _
      // Predicated region
      $region109: #{stage_net_forward.1} parent=87 // pred_check
        %p3540 = pneg %p500
      $region110: #{stage_net_forward.1} parent=87 // pred_check_branch
        %3542 = sbr.rel (%p3540) target = $region112
      $region111: #{stage_net_forward.1} parent=87 // pred_region
        _
      $region112: #{stage_net_forward.1} parent=87 // pred_fallthru
        _
      // Predicated region
      $region113: #{stage_net_forward.1} parent=87 // pred_check
        %p3543 = pneg %p526
      $region114: #{stage_net_forward.1} parent=87 // pred_check_branch
        %3545 = sbr.rel (%p3543) target = $region116
      $region115: #{stage_net_forward.1} parent=87 // pred_region
        _
      $region116: #{stage_net_forward.1} parent=87 // pred_fallthru
        _
    $region88: #{stage_net_forward.1} parent=5 // pred_fallthru
      _
    %p3546 = scmp.le.s32.totalorder 2, %s30
    // Predicated region
    $region117: #{stage_net_forward.1} parent=5 // pred_check
      %p3547 = pneg %p3546
    $region118: #{stage_net_forward.1} parent=5 // pred_check_branch
      %3549 = sbr.rel (%p3547) target = $region120
    $region119: #{stage_net_forward.1} parent=5 // pred_region
      %s3550 = ssub.s32 %s30, 2
      // Predicated region
      $region121: #{stage_net_forward.1} parent=119 // pred_check
        %p3551 = pneg %p454
      $region122: #{stage_net_forward.1} parent=119 // pred_check_branch
        %3553 = sbr.rel (%p3551) target = $region124
      $region123: #{stage_net_forward.1} parent=119 // pred_region
        %p3554 = scmp.lt.s32.totalorder %s41, 1
        %s3555 = scalar_select %p3554, %s41, 1
        %s3556 = smul.addr %s3555, 2
        %s3557 = smul.addr %s3556, 8
        %s3558 = scalar_lea.vmem %s17, %s3557
      $region124: #{stage_net_forward.1} parent=119 // pred_fallthru
        _
      // Predicated region
      $region125: #{stage_net_forward.1} parent=119 // pred_check
        %p3559 = pneg %p480
      $region126: #{stage_net_forward.1} parent=119 // pred_check_branch
        %3561 = sbr.rel (%p3559) target = $region128
      $region127: #{stage_net_forward.1} parent=119 // pred_region
        %p3562 = scmp.lt.s32.totalorder %s41, 1
        %s3563 = scalar_select %p3562, %s41, 1
        %s3564 = smul.addr %s3563, 2
        %s3565 = scalar_lea.vmem %s18, %s3564
      $region128: #{stage_net_forward.1} parent=119 // pred_fallthru
        _
      // Predicated region
      $region129: #{stage_net_forward.1} parent=119 // pred_check
        %p3566 = pneg %p506
      $region130: #{stage_net_forward.1} parent=119 // pred_check_branch
        %3568 = sbr.rel (%p3566) target = $region132
      $region131: #{stage_net_forward.1} parent=119 // pred_region
        %p3569 = scmp.lt.s32.totalorder %s41, 1
        %s3570 = scalar_select %p3569, %s41, 1
        %s3571 = smul.addr %s3570, 2
        %s3572 = scalar_lea.vmem %s19, %s3571
      $region132: #{stage_net_forward.1} parent=119 // pred_fallthru
        _
      // Predicated region
      $region133: #{stage_net_forward.1} parent=119 // pred_check
        %p3573 = pneg %p532
      $region134: #{stage_net_forward.1} parent=119 // pred_check_branch
        %3575 = sbr.rel (%p3573) target = $region136
      $region135: #{stage_net_forward.1} parent=119 // pred_region
        %p3576 = scmp.lt.s32.totalorder %s41, 1
        %s3577 = scalar_select %p3576, %s41, 1
        %s3578 = smul.addr %s3577, 2
        %s3579 = scalar_lea.vmem %s20, %s3578
      $region136: #{stage_net_forward.1} parent=119 // pred_fallthru
        _
    $region120: #{stage_net_forward.1} parent=5 // pred_fallthru
      _
  $region6: #{stage_net_forward.1} parent=0 // loop_footer
    %s34 = sadd.s32 1, %s30
  $region7: #{stage_net_forward.1} parent=0 // loop_footer_branch
    %29 = sbr.rel target = $region3
  $region8: #{stage_net_forward.1} parent=0 // loop_exit
    _

</llo_original>
